<compile_context>
chip_gen: v6e
topology: v6e:2x2x1
jax: 0.10.0
libtpu: 0.0.40
codegen_flags: <defaults>
</compile_context>

<pallas_src>
import functools
import math

import jax
import jax.numpy as jnp
from jax.experimental import pallas as pl
from jax.experimental.pallas import tpu as pltpu


# ----------------------------------------------------------------------------
# Pointwise (1x1) conv + folded-BN bias + activation, with optional fused
# shortcut (identity add or a second 1x1 conv), as a row-tiled matmul.
# ----------------------------------------------------------------------------
def _pick_tm(m, cap=1024):
    """Largest row tile <= cap that divides m (multiple of 8 unless tm == m)."""
    if m <= cap:
        return m
    tm = cap
    while tm >= 8 and m % tm:
        tm //= 2
    if tm < 8 or m % tm:
        return m
    return tm


def _make_pw_kernel(act, mode):
    # mode: "plain" | "identity" (y += x) | "conv" (y += x @ wsc)
    def kernel(h_ref, w_ref, b_ref, *rest):
        if mode == "plain":
            (o_ref,) = rest
        elif mode == "identity":
            x_ref, o_ref = rest
        else:  # "conv"
            x_ref, wsc_ref, o_ref = rest
        y = jnp.dot(h_ref[...], w_ref[...], preferred_element_type=jnp.float32)
        y = y + b_ref[...]
        if act == "relu6":
            y = jnp.clip(y, 0.0, 6.0)
        elif act == "relu":
            y = jnp.maximum(y, 0.0)
        if mode == "identity":
            y = y + x_ref[...].astype(jnp.float32)
        elif mode == "conv":
            y = y + jnp.dot(x_ref[...], wsc_ref[...],
                            preferred_element_type=jnp.float32)
        o_ref[...] = y.astype(o_ref.dtype)

    return kernel


@functools.lru_cache(maxsize=None)
def _pw_callable(m, cin, cout, cin_sc, act, mode, tm, out_dtype_name):
    out_dtype = jnp.dtype(out_dtype_name)
    in_specs = [
        pl.BlockSpec((tm, cin), lambda i: (i, 0)),
        pl.BlockSpec((cin, cout), lambda i: (0, 0)),
        pl.BlockSpec((1, cout), lambda i: (0, 0)),
    ]
    if mode == "identity":
        in_specs.append(pl.BlockSpec((tm, cout), lambda i: (i, 0)))
    elif mode == "conv":
        in_specs.append(pl.BlockSpec((tm, cin_sc), lambda i: (i, 0)))
        in_specs.append(pl.BlockSpec((cin_sc, cout), lambda i: (0, 0)))
    return pl.pallas_call(
        _make_pw_kernel(act, mode),
        out_shape=jax.ShapeDtypeStruct((m, cout), out_dtype),
        grid_spec=pltpu.PrefetchScalarGridSpec(
            num_scalar_prefetch=0,
            grid=(m // tm,),
            in_specs=in_specs,
            out_specs=pl.BlockSpec((tm, cout), lambda i: (i, 0)),
        ),
        compiler_params=pltpu.CompilerParams(dimension_semantics=("parallel",)),
    )


def pw_conv(h, w, b, act="none", mode="plain", x=None, wsc=None,
            out_dtype=jnp.bfloat16):
    """h: (..., Cin) -> (..., Cout);  y = act(h @ w + b) [+ shortcut]."""
    lead = h.shape[:-1]
    cin = h.shape[-1]
    cout = w.shape[-1]
    hm = h.reshape(-1, cin)
    m = hm.shape[0]
    tm = _pick_tm(m)
    assert m % tm == 0, (m, tm)
    args = [hm, w, b.reshape(1, cout)]
    cin_sc = 0
    if mode == "identity":
        args.append(x.reshape(-1, cout))
    elif mode == "conv":
        cin_sc = x.shape[-1]
        args.append(x.reshape(-1, cin_sc))
        args.append(wsc)
    fn = _pw_callable(m, cin, cout, cin_sc, act, mode, tm,
                      jnp.dtype(out_dtype).name)
    return fn(*args).reshape(lead + (cout,))


# ----------------------------------------------------------------------------
# Depthwise 3x3 conv (padding=1, stride 1 or 2) + folded-BN bias + ReLU6.
# Whole padded image per block (channel-tiled); BlockSpec auto-pipelining keeps
# the input DMA double-buffered against the 9-tap VPU compute.
# ----------------------------------------------------------------------------
def _pick_ct(c):
    if c % 128:
        return c          # full-dim block (lanes padded internally)
    for ct in (256, 128):
        if c % ct == 0:
            return ct
    return c


def _dw_s1_kernel(x_ref, w_ref, b_ref, o_ref):
    _, ho, wo, ct = o_ref.shape
    acc = jnp.zeros((ho, wo, ct), jnp.float32)
    for di in range(3):
        for dj in range(3):
            patch = x_ref[di:di + ho, dj:dj + wo, :].astype(jnp.float32)
            acc = acc + patch * w_ref[di:di + 1, dj:dj + 1, :]
    y = jnp.clip(acc + b_ref[...], 0.0, 6.0)
    o_ref[...] = y.reshape(o_ref.shape).astype(o_ref.dtype)


def _dw_s2_kernel(x00_ref, x01_ref, x10_ref, x11_ref, w_ref, b_ref, o_ref):
    planes = ((x00_ref, x01_ref), (x10_ref, x11_ref))
    _, ho, wo, ct = o_ref.shape
    acc = jnp.zeros((ho, wo, ct), jnp.float32)
    for di in range(3):
        for dj in range(3):
            pref = planes[di & 1][dj & 1]
            i0, j0 = di // 2, dj // 2
            patch = pref[i0:i0 + ho, j0:j0 + wo, :].astype(jnp.float32)
            acc = acc + patch * w_ref[di:di + 1, dj:dj + 1, :]
    y = jnp.clip(acc + b_ref[...], 0.0, 6.0)
    o_ref[...] = y.reshape(o_ref.shape).astype(o_ref.dtype)


@functools.lru_cache(maxsize=None)
def _dw_s1_callable(n, hdim, wdim, c, ct):
    hp, wp = hdim + 2, wdim + 2
    return pl.pallas_call(
        _dw_s1_kernel,
        out_shape=jax.ShapeDtypeStruct((n, hdim, wdim, c), jnp.bfloat16),
        grid_spec=pltpu.PrefetchScalarGridSpec(
            num_scalar_prefetch=0,
            grid=(n, c // ct),
            in_specs=[
                pl.BlockSpec((None, hp, wp, ct), lambda b, cb: (b, 0, 0, cb)),
                pl.BlockSpec((3, 3, ct), lambda b, cb: (0, 0, cb)),
                pl.BlockSpec((1, 1, ct), lambda b, cb: (0, 0, cb)),
            ],
            out_specs=pl.BlockSpec((1, hdim, wdim, ct),
                                   lambda b, cb: (b, 0, 0, cb)),
        ),
        compiler_params=pltpu.CompilerParams(
            dimension_semantics=("parallel", "parallel")),
    )


@functools.lru_cache(maxsize=None)
def _dw_s2_callable(n, hdim, wdim, c, ct):
    hh, wh = hdim // 2 + 1, wdim // 2 + 1
    ho, wo = hdim // 2, wdim // 2
    plane_spec = pl.BlockSpec((None, hh, wh, ct), lambda b, cb: (b, 0, 0, cb))
    return pl.pallas_call(
        _dw_s2_kernel,
        out_shape=jax.ShapeDtypeStruct((n, ho, wo, c), jnp.bfloat16),
        grid_spec=pltpu.PrefetchScalarGridSpec(
            num_scalar_prefetch=0,
            grid=(n, c // ct),
            in_specs=[
                plane_spec, plane_spec, plane_spec, plane_spec,
                pl.BlockSpec((3, 3, ct), lambda b, cb: (0, 0, cb)),
                pl.BlockSpec((1, 1, ct), lambda b, cb: (0, 0, cb)),
            ],
            out_specs=pl.BlockSpec((1, ho, wo, ct), lambda b, cb: (b, 0, 0, cb)),
        ),
        compiler_params=pltpu.CompilerParams(
            dimension_semantics=("parallel", "parallel")),
    )


def dw_conv3x3(x, w, b, stride):
    """x: (N, H, W, C) bf16; w: (3, 3, C) f32 (BN scale folded); b: (C,) f32."""
    n, h, wdim, c = x.shape
    ct = _pick_ct(c)
    xpad = jnp.pad(x, ((0, 0), (1, 1), (1, 1), (0, 0)))
    bias = b.reshape(1, 1, c)
    if stride == 1:
        return _dw_s1_callable(n, h, wdim, c, ct)(xpad, w, bias)
    assert stride == 2 and h % 2 == 0 and wdim % 2 == 0, (stride, h, wdim)
    # Parity-plane re-layout (host glue): plane (a, b) holds xpad[:, a::2, b::2].
    # Every tap then reads a contiguous slice and only stride-2 outputs are
    # computed / written.
    planes = [xpad[:, a::2, b2::2, :] for a in (0, 1) for b2 in (0, 1)]
    return _dw_s2_callable(n, h, wdim, c, ct)(*planes, w, bias)


# ----------------------------------------------------------------------------
# Block forward (matches the PyTorch Block.forward semantics; BatchNorm in
# inference mode, folded into the conv weights / bias).
# ----------------------------------------------------------------------------
def block_forward(params, x_nchw, stride):
    x = jnp.transpose(x_nchw, (0, 2, 3, 1)).astype(jnp.bfloat16)   # NCHW -> NHWC
    h = pw_conv(x, params["w1"], params["b1"], act="relu6")
    h = dw_conv3x3(h, params["wd"], params["bd"], stride)
    if stride == 1 and "wsc" in params:
        out = pw_conv(h, params["w3"], params["b3"], mode="conv",
                      x=x, wsc=params["wsc"], out_dtype=jnp.float32)
    elif stride == 1:
        out = pw_conv(h, params["w3"], params["b3"], mode="identity",
                      x=x, out_dtype=jnp.float32)
    else:
        out = pw_conv(h, params["w3"], params["b3"], mode="plain",
                      out_dtype=jnp.float32)
    return jnp.transpose(out, (0, 3, 1, 2))                         # back to NCHW


block_apply = jax.jit(block_forward, static_argnums=2)


# ----------------------------------------------------------------------------
# Parameter init (synthetic inference-mode BN folded into scale/bias, then the
# scale folded into the conv weights) + pure-JAX f32 reference.
# ----------------------------------------------------------------------------
def init_block_params(key, in_planes, out_planes, expansion, stride):
    planes = expansion * in_planes
    ks = jax.random.split(key, 8)

    def he(k, shape, fan_in):
        return jax.random.normal(k, shape, jnp.float32) * math.sqrt(2.0 / fan_in)

    def bn(k, c):
        k1, k2, k3, k4 = jax.random.split(k, 4)
        gamma = 1.0 + 0.1 * jax.random.normal(k1, (c,), jnp.float32)
        beta = 0.1 * jax.random.normal(k2, (c,), jnp.float32)
        mean = 0.1 * jax.random.normal(k3, (c,), jnp.float32)
        var = 0.5 + jax.random.uniform(k4, (c,), jnp.float32)
        scale = gamma * jax.lax.rsqrt(var + 1e-5)
        return scale, beta - mean * scale

    w1 = he(ks[0], (in_planes, planes), in_planes)
    s1, b1 = bn(ks[1], planes)
    wd = he(ks[2], (3, 3, planes), 9)
    sd, bd = bn(ks[3], planes)
    w3 = he(ks[4], (planes, out_planes), planes)
    s3, b3 = bn(ks[5], out_planes)

    w1f = w1 * s1[None, :]          # fold BN scale into the weights (offline)
    wdf = wd * sd[None, None, :]
    w3f = w3 * s3[None, :]

    ref = {"w1": w1f, "b1": b1, "wd": wdf, "bd": bd, "w3": w3f, "b3": b3}
    par = {"w1": w1f.astype(jnp.bfloat16), "b1": b1,
           "wd": wdf, "bd": bd,
           "w3": w3f.astype(jnp.bfloat16), "b3": b3}

    if stride == 1 and in_planes != out_planes:
        wsc = he(ks[6], (in_planes, out_planes), in_planes)
        ssc, bsc = bn(ks[7], out_planes)
        wscf = wsc * ssc[None, :]
        ref["wsc"] = wscf
        ref["b3"] = b3 + bsc         # shortcut BN bias merged into the main bias
        par["wsc"] = wscf.astype(jnp.bfloat16)
        par["b3"] = b3 + bsc
    return par, ref


def _ref_dw(v, w, b, s):
    n, hh, ww, c = v.shape
    vp = jnp.pad(v, ((0, 0), (1, 1), (1, 1), (0, 0)))
    ho, wo = hh // s, ww // s
    acc = jnp.zeros((n, ho, wo, c), jnp.float32)
    for di in range(3):
        for dj in range(3):
            acc = acc + vp[:, di:di + (ho - 1) * s + 1:s,
                           dj:dj + (wo - 1) * s + 1:s, :] * w[di, dj]
    return jnp.clip(acc + b, 0.0, 6.0)


def ref_block(x_nchw, rp, stride):
    x = jnp.transpose(x_nchw, (0, 2, 3, 1)).astype(jnp.float32)
    h = jnp.clip(jnp.einsum('nhwc,cd->nhwd', x, rp["w1"]) + rp["b1"], 0.0, 6.0)
    h = _ref_dw(h, rp["wd"], rp["bd"], stride)
    out = jnp.einsum('nhwc,cd->nhwd', h, rp["w3"]) + rp["b3"]
    if stride == 1:
        if "wsc" in rp:
            out = out + jnp.einsum('nhwc,cd->nhwd', x, rp["wsc"])
        else:
            out = out + x
    return jnp.transpose(out, (0, 3, 1, 2))


if __name__ == "__main__":
    key = jax.random.PRNGKey(0)
    N, H, W = 2, 16, 16
    configs = [
        # (in_planes, out_planes, expansion, stride) -> exercises all Block paths
        (16, 16, 6, 1),    # stride 1, identity shortcut
        (16, 32, 6, 1),    # stride 1, 1x1-conv + BN shortcut
        (32, 64, 6, 2),    # stride 2, no shortcut
    ]
    for idx, (cin, cout, exp, s) in enumerate(configs):
        kp, kx = jax.random.split(jax.random.fold_in(key, idx))
        params, ref_params = init_block_params(kp, cin, cout, exp, s)
        x = jax.random.normal(kx, (N, cin, H, W), jnp.float32)
        out = jax.block_until_ready(block_apply(params, x, s))
        ref = ref_block(x, ref_params, s)
        assert out.shape == (N, cout, H // s, W // s), (idx, out.shape)
        assert bool(jnp.all(jnp.isfinite(out))), idx
        err = float(jnp.max(jnp.abs(out.astype(jnp.float32) - ref)))
        scale = float(jnp.max(jnp.abs(ref)))
        assert err <= 8e-2 * scale + 1e-2, (idx, err, scale)
    print("KERNEL_OK")
</pallas_src>

<mosaic_0001>
module attributes {stable_mosaic.version = 11 : i64} {
  func.func @kernel(%arg0: i32, %arg1: memref<512x16xbf16, #tpu.memory_space<vmem>>, %arg2: memref<16x96xbf16, #tpu.memory_space<vmem>>, %arg3: memref<1x96xf32, #tpu.memory_space<vmem>>, %arg4: memref<512x96xbf16, #tpu.memory_space<vmem>>) attributes {dimension_semantics = [#tpu.dimension_semantics<parallel>], iteration_bounds = array<i64: 1>, scalar_prefetch = 0 : i64, scratch_operands = 0 : i64, tpu.core_type = #tpu.core_type<tc>, window_params = [{transform_indices = @transform_0, window_bounds = array<i64: 512, 16>}, {pipeline_mode = #tpu.pipeline_mode<synchronous>, transform_indices = @transform_1, window_bounds = array<i64: 16, 96>}, {pipeline_mode = #tpu.pipeline_mode<synchronous>, transform_indices = @transform_2, window_bounds = array<i64: 1, 96>}, {transform_indices = @transform_3, window_bounds = array<i64: 512, 96>}]} {
    %c0 = arith.constant 0 : index
    %c0_0 = arith.constant 0 : index
    %0 = vector.load %arg1[%c0, %c0_0] : memref<512x16xbf16, #tpu.memory_space<vmem>>, vector<512x16xbf16>
    %c0_1 = arith.constant 0 : index
    %c0_2 = arith.constant 0 : index
    %1 = vector.load %arg2[%c0_1, %c0_2] : memref<16x96xbf16, #tpu.memory_space<vmem>>, vector<16x96xbf16>
    %cst = arith.constant dense<0.000000e+00> : vector<512x96xf32>
    %2 = tpu.matmul %0, %1, %cst {dimension_numbers = #tpu.dot_dimension_numbers<[1], [0], [0], [1], [0, 0, 1, 1], [], []>} : vector<512x16xbf16>, vector<16x96xbf16>, vector<512x96xf32> -> vector<512x96xf32>
    %c0_3 = arith.constant 0 : index
    %c0_4 = arith.constant 0 : index
    %3 = vector.load %arg3[%c0_3, %c0_4] : memref<1x96xf32, #tpu.memory_space<vmem>>, vector<1x96xf32>
    %4 = vector.broadcast %3 : vector<1x96xf32> to vector<512x96xf32>
    %5 = arith.addf %2, %4 : vector<512x96xf32>
    %cst_5 = arith.constant 0.000000e+00 : f32
    %cst_6 = arith.constant 6.000000e+00 : f32
    %6 = vector.broadcast %cst_5 : f32 to vector<512x96xf32>
    %7 = arith.maximumf %6, %5 : vector<512x96xf32>
    %8 = vector.broadcast %cst_6 : f32 to vector<512x96xf32>
    %9 = arith.minimumf %8, %7 : vector<512x96xf32>
    %10 = arith.truncf %9 : vector<512x96xf32> to vector<512x96xbf16>
    %c0_7 = arith.constant 0 : index
    %c0_8 = arith.constant 0 : index
    %11 = vector.load %arg4[%c0_7, %c0_8] : memref<512x96xbf16, #tpu.memory_space<vmem>>, vector<512x96xbf16>
    tpu.vector_store %arg4[%c0_7, %c0_8], %10 {strides = array<i32>} : memref<512x96xbf16, #tpu.memory_space<vmem>>, vector<512x96xbf16>,
    return
  }
  func.func @transform_0(%arg0: i32) -> (i32, i32) {
    %c0_i32 = arith.constant 0 : i32
    %c0_i32_0 = arith.constant 0 : i32
    return %arg0, %c0_i32 : i32, i32
  }
  func.func @transform_1(%arg0: i32) -> (i32, i32) {
    %c0_i32 = arith.constant 0 : i32
    %c0_i32_0 = arith.constant 0 : i32
    %c0_i32_1 = arith.constant 0 : i32
    return %c0_i32, %c0_i32_0 : i32, i32
  }
  func.func @transform_2(%arg0: i32) -> (i32, i32) {
    %c0_i32 = arith.constant 0 : i32
    %c0_i32_0 = arith.constant 0 : i32
    %c0_i32_1 = arith.constant 0 : i32
    return %c0_i32, %c0_i32_0 : i32, i32
  }
  func.func @transform_3(%arg0: i32) -> (i32, i32) {
    %c0_i32 = arith.constant 0 : i32
    %c0_i32_0 = arith.constant 0 : i32
    return %arg0, %c0_i32 : i32, i32
  }
}

module attributes {stable_mosaic.version = 11 : i64} {
  func.func @_dw_s1_kernel(%arg0: i32, %arg1: i32, %arg2: memref<1x18x18x96xbf16, #tpu.memory_space<vmem>>, %arg3: memref<3x3x96xf32, #tpu.memory_space<vmem>>, %arg4: memref<1x1x96xf32, #tpu.memory_space<vmem>>, %arg5: memref<1x16x16x96xbf16, #tpu.memory_space<vmem>>) attributes {dimension_semantics = [#tpu.dimension_semantics<parallel>, #tpu.dimension_semantics<parallel>], iteration_bounds = array<i64: 2, 1>, scalar_prefetch = 0 : i64, scratch_operands = 0 : i64, tpu.core_type = #tpu.core_type<tc>, window_params = [{transform_indices = @transform_0, window_bounds = array<i64: 1, 18, 18, 96>}, {transform_indices = @transform_1, window_bounds = array<i64: 3, 3, 96>}, {transform_indices = @transform_2, window_bounds = array<i64: 1, 1, 96>}, {transform_indices = @transform_3, window_bounds = array<i64: 1, 16, 16, 96>}]} {
    %cst = arith.constant 0.000000e+00 : f32
    %0 = vector.broadcast %cst : f32 to vector<16x16x96xf32>
    %c0 = arith.constant 0 : index
    %c0_0 = arith.constant 0 : index
    %c0_1 = arith.constant 0 : index
    %c0_2 = arith.constant 0 : index
    %1 = vector.load %arg2[%c0, %c0_0, %c0_1, %c0_2] : memref<1x18x18x96xbf16, #tpu.memory_space<vmem>>, vector<1x16x16x96xbf16>
    %2 = vector.shape_cast %1 : vector<1x16x16x96xbf16> to vector<16x16x96xbf16>
    %3 = arith.extf %2 : vector<16x16x96xbf16> to vector<16x16x96xf32>
    %c0_3 = arith.constant 0 : index
    %c0_4 = arith.constant 0 : index
    %c0_5 = arith.constant 0 : index
    %4 = vector.load %arg3[%c0_3, %c0_4, %c0_5] : memref<3x3x96xf32, #tpu.memory_space<vmem>>, vector<1x1x96xf32>
    %5 = vector.broadcast %4 : vector<1x1x96xf32> to vector<16x16x96xf32>
    %6 = arith.mulf %3, %5 : vector<16x16x96xf32>
    %7 = arith.addf %0, %6 : vector<16x16x96xf32>
    %c0_6 = arith.constant 0 : index
    %c0_7 = arith.constant 0 : index
    %c1 = arith.constant 1 : index
    %c0_8 = arith.constant 0 : index
    %8 = vector.load %arg2[%c0_6, %c0_7, %c1, %c0_8] : memref<1x18x18x96xbf16, #tpu.memory_space<vmem>>, vector<1x16x16x96xbf16>
    %9 = vector.shape_cast %8 : vector<1x16x16x96xbf16> to vector<16x16x96xbf16>
    %10 = arith.extf %9 : vector<16x16x96xbf16> to vector<16x16x96xf32>
    %c0_9 = arith.constant 0 : index
    %c1_10 = arith.constant 1 : index
    %c0_11 = arith.constant 0 : index
    %11 = vector.load %arg3[%c0_9, %c1_10, %c0_11] : memref<3x3x96xf32, #tpu.memory_space<vmem>>, vector<1x1x96xf32>
    %12 = vector.broadcast %11 : vector<1x1x96xf32> to vector<16x16x96xf32>
    %13 = arith.mulf %10, %12 : vector<16x16x96xf32>
    %14 = arith.addf %7, %13 : vector<16x16x96xf32>
    %c0_12 = arith.constant 0 : index
    %c0_13 = arith.constant 0 : index
    %c2 = arith.constant 2 : index
    %c0_14 = arith.constant 0 : index
    %15 = vector.load %arg2[%c0_12, %c0_13, %c2, %c0_14] : memref<1x18x18x96xbf16, #tpu.memory_space<vmem>>, vector<1x16x16x96xbf16>
    %16 = vector.shape_cast %15 : vector<1x16x16x96xbf16> to vector<16x16x96xbf16>
    %17 = arith.extf %16 : vector<16x16x96xbf16> to vector<16x16x96xf32>
    %c0_15 = arith.constant 0 : index
    %c2_16 = arith.constant 2 : index
    %c0_17 = arith.constant 0 : index
    %18 = vector.load %arg3[%c0_15, %c2_16, %c0_17] : memref<3x3x96xf32, #tpu.memory_space<vmem>>, vector<1x1x96xf32>
    %19 = vector.broadcast %18 : vector<1x1x96xf32> to vector<16x16x96xf32>
    %20 = arith.mulf %17, %19 : vector<16x16x96xf32>
    %21 = arith.addf %14, %20 : vector<16x16x96xf32>
    %c0_18 = arith.constant 0 : index
    %c1_19 = arith.constant 1 : index
    %c0_20 = arith.constant 0 : index
    %c0_21 = arith.constant 0 : index
    %22 = vector.load %arg2[%c0_18, %c1_19, %c0_20, %c0_21] : memref<1x18x18x96xbf16, #tpu.memory_space<vmem>>, vector<1x16x16x96xbf16>
    %23 = vector.shape_cast %22 : vector<1x16x16x96xbf16> to vector<16x16x96xbf16>
    %24 = arith.extf %23 : vector<16x16x96xbf16> to vector<16x16x96xf32>
    %c1_22 = arith.constant 1 : index
    %c0_23 = arith.constant 0 : index
    %c0_24 = arith.constant 0 : index
    %25 = vector.load %arg3[%c1_22, %c0_23, %c0_24] : memref<3x3x96xf32, #tpu.memory_space<vmem>>, vector<1x1x96xf32>
    %26 = vector.broadcast %25 : vector<1x1x96xf32> to vector<16x16x96xf32>
    %27 = arith.mulf %24, %26 : vector<16x16x96xf32>
    %28 = arith.addf %21, %27 : vector<16x16x96xf32>
    %c0_25 = arith.constant 0 : index
    %c1_26 = arith.constant 1 : index
    %c1_27 = arith.constant 1 : index
    %c0_28 = arith.constant 0 : index
    %29 = vector.load %arg2[%c0_25, %c1_26, %c1_27, %c0_28] : memref<1x18x18x96xbf16, #tpu.memory_space<vmem>>, vector<1x16x16x96xbf16>
    %30 = vector.shape_cast %29 : vector<1x16x16x96xbf16> to vector<16x16x96xbf16>
    %31 = arith.extf %30 : vector<16x16x96xbf16> to vector<16x16x96xf32>
    %c1_29 = arith.constant 1 : index
    %c1_30 = arith.constant 1 : index
    %c0_31 = arith.constant 0 : index
    %32 = vector.load %arg3[%c1_29, %c1_30, %c0_31] : memref<3x3x96xf32, #tpu.memory_space<vmem>>, vector<1x1x96xf32>
    %33 = vector.broadcast %32 : vector<1x1x96xf32> to vector<16x16x96xf32>
    %34 = arith.mulf %31, %33 : vector<16x16x96xf32>
    %35 = arith.addf %28, %34 : vector<16x16x96xf32>
    %c0_32 = arith.constant 0 : index
    %c1_33 = arith.constant 1 : index
    %c2_34 = arith.constant 2 : index
    %c0_35 = arith.constant 0 : index
    %36 = vector.load %arg2[%c0_32, %c1_33, %c2_34, %c0_35] : memref<1x18x18x96xbf16, #tpu.memory_space<vmem>>, vector<1x16x16x96xbf16>
    %37 = vector.shape_cast %36 : vector<1x16x16x96xbf16> to vector<16x16x96xbf16>
    %38 = arith.extf %37 : vector<16x16x96xbf16> to vector<16x16x96xf32>
    %c1_36 = arith.constant 1 : index
    %c2_37 = arith.constant 2 : index
    %c0_38 = arith.constant 0 : index
    %39 = vector.load %arg3[%c1_36, %c2_37, %c0_38] : memref<3x3x96xf32, #tpu.memory_space<vmem>>, vector<1x1x96xf32>
    %40 = vector.broadcast %39 : vector<1x1x96xf32> to vector<16x16x96xf32>
    %41 = arith.mulf %38, %40 : vector<16x16x96xf32>
    %42 = arith.addf %35, %41 : vector<16x16x96xf32>
    %c0_39 = arith.constant 0 : index
    %c2_40 = arith.constant 2 : index
    %c0_41 = arith.constant 0 : index
    %c0_42 = arith.constant 0 : index
    %43 = vector.load %arg2[%c0_39, %c2_40, %c0_41, %c0_42] : memref<1x18x18x96xbf16, #tpu.memory_space<vmem>>, vector<1x16x16x96xbf16>
    %44 = vector.shape_cast %43 : vector<1x16x16x96xbf16> to vector<16x16x96xbf16>
    %45 = arith.extf %44 : vector<16x16x96xbf16> to vector<16x16x96xf32>
    %c2_43 = arith.constant 2 : index
    %c0_44 = arith.constant 0 : index
    %c0_45 = arith.constant 0 : index
    %46 = vector.load %arg3[%c2_43, %c0_44, %c0_45] : memref<3x3x96xf32, #tpu.memory_space<vmem>>, vector<1x1x96xf32>
    %47 = vector.broadcast %46 : vector<1x1x96xf32> to vector<16x16x96xf32>
    %48 = arith.mulf %45, %47 : vector<16x16x96xf32>
    %49 = arith.addf %42, %48 : vector<16x16x96xf32>
    %c0_46 = arith.constant 0 : index
    %c2_47 = arith.constant 2 : index
    %c1_48 = arith.constant 1 : index
    %c0_49 = arith.constant 0 : index
    %50 = vector.load %arg2[%c0_46, %c2_47, %c1_48, %c0_49] : memref<1x18x18x96xbf16, #tpu.memory_space<vmem>>, vector<1x16x16x96xbf16>
    %51 = vector.shape_cast %50 : vector<1x16x16x96xbf16> to vector<16x16x96xbf16>
    %52 = arith.extf %51 : vector<16x16x96xbf16> to vector<16x16x96xf32>
    %c2_50 = arith.constant 2 : index
    %c1_51 = arith.constant 1 : index
    %c0_52 = arith.constant 0 : index
    %53 = vector.load %arg3[%c2_50, %c1_51, %c0_52] : memref<3x3x96xf32, #tpu.memory_space<vmem>>, vector<1x1x96xf32>
    %54 = vector.broadcast %53 : vector<1x1x96xf32> to vector<16x16x96xf32>
    %55 = arith.mulf %52, %54 : vector<16x16x96xf32>
    %56 = arith.addf %49, %55 : vector<16x16x96xf32>
    %c0_53 = arith.constant 0 : index
    %c2_54 = arith.constant 2 : index
    %c2_55 = arith.constant 2 : index
    %c0_56 = arith.constant 0 : index
    %57 = vector.load %arg2[%c0_53, %c2_54, %c2_55, %c0_56] : memref<1x18x18x96xbf16, #tpu.memory_space<vmem>>, vector<1x16x16x96xbf16>
    %58 = vector.shape_cast %57 : vector<1x16x16x96xbf16> to vector<16x16x96xbf16>
    %59 = arith.extf %58 : vector<16x16x96xbf16> to vector<16x16x96xf32>
    %c2_57 = arith.constant 2 : index
    %c2_58 = arith.constant 2 : index
    %c0_59 = arith.constant 0 : index
    %60 = vector.load %arg3[%c2_57, %c2_58, %c0_59] : memref<3x3x96xf32, #tpu.memory_space<vmem>>, vector<1x1x96xf32>
    %61 = vector.broadcast %60 : vector<1x1x96xf32> to vector<16x16x96xf32>
    %62 = arith.mulf %59, %61 : vector<16x16x96xf32>
    %63 = arith.addf %56, %62 : vector<16x16x96xf32>
    %c0_60 = arith.constant 0 : index
    %c0_61 = arith.constant 0 : index
    %c0_62 = arith.constant 0 : index
    %64 = vector.load %arg4[%c0_60, %c0_61, %c0_62] : memref<1x1x96xf32, #tpu.memory_space<vmem>>, vector<1x1x96xf32>
    %65 = vector.broadcast %64 : vector<1x1x96xf32> to vector<16x16x96xf32>
    %66 = arith.addf %63, %65 : vector<16x16x96xf32>
    %cst_63 = arith.constant 0.000000e+00 : f32
    %cst_64 = arith.constant 6.000000e+00 : f32
    %67 = vector.broadcast %cst_63 : f32 to vector<16x16x96xf32>
    %68 = arith.maximumf %67, %66 : vector<16x16x96xf32>
    %69 = vector.broadcast %cst_64 : f32 to vector<16x16x96xf32>
    %70 = arith.minimumf %69, %68 : vector<16x16x96xf32>
    %71 = vector.shape_cast %70 : vector<16x16x96xf32> to vector<1x16x16x96xf32>
    %72 = arith.truncf %71 : vector<1x16x16x96xf32> to vector<1x16x16x96xbf16>
    %c0_65 = arith.constant 0 : index
    %c0_66 = arith.constant 0 : index
    %c0_67 = arith.constant 0 : index
    %c0_68 = arith.constant 0 : index
    %73 = vector.load %arg5[%c0_65, %c0_66, %c0_67, %c0_68] : memref<1x16x16x96xbf16, #tpu.memory_space<vmem>>, vector<1x16x16x96xbf16>
    tpu.vector_store %arg5[%c0_65, %c0_66, %c0_67, %c0_68], %72 {strides = array<i32>} : memref<1x16x16x96xbf16, #tpu.memory_space<vmem>>, vector<1x16x16x96xbf16>,
    return
  }
  func.func @transform_0(%arg0: i32, %arg1: i32) -> (i32, i32, i32, i32) {
    %c0_i32 = arith.constant 0 : i32
    %c0_i32_0 = arith.constant 0 : i32
    %c0_i32_1 = arith.constant 0 : i32
    return %arg0, %c0_i32, %c0_i32_0, %arg1 : i32, i32, i32, i32
  }
  func.func @transform_1(%arg0: i32, %arg1: i32) -> (i32, i32, i32) {
    %c0_i32 = arith.constant 0 : i32
    %c0_i32_0 = arith.constant 0 : i32
    %c0_i32_1 = arith.constant 0 : i32
    return %c0_i32, %c0_i32_0, %arg1 : i32, i32, i32
  }
  func.func @transform_2(%arg0: i32, %arg1: i32) -> (i32, i32, i32) {
    %c0_i32 = arith.constant 0 : i32
    %c0_i32_0 = arith.constant 0 : i32
    %c0_i32_1 = arith.constant 0 : i32
    return %c0_i32, %c0_i32_0, %arg1 : i32, i32, i32
  }
  func.func @transform_3(%arg0: i32, %arg1: i32) -> (i32, i32, i32, i32) {
    %c0_i32 = arith.constant 0 : i32
    %c0_i32_0 = arith.constant 0 : i32
    %c0_i32_1 = arith.constant 0 : i32
    return %arg0, %c0_i32, %c0_i32_0, %arg1 : i32, i32, i32, i32
  }
}

module attributes {stable_mosaic.version = 11 : i64} {
  func.func @kernel(%arg0: i32, %arg1: memref<512x96xbf16, #tpu.memory_space<vmem>>, %arg2: memref<96x16xbf16, #tpu.memory_space<vmem>>, %arg3: memref<1x16xf32, #tpu.memory_space<vmem>>, %arg4: memref<512x16xbf16, #tpu.memory_space<vmem>>, %arg5: memref<512x16xf32, #tpu.memory_space<vmem>>) attributes {dimension_semantics = [#tpu.dimension_semantics<parallel>], iteration_bounds = array<i64: 1>, scalar_prefetch = 0 : i64, scratch_operands = 0 : i64, tpu.core_type = #tpu.core_type<tc>, window_params = [{transform_indices = @transform_0, window_bounds = array<i64: 512, 96>}, {pipeline_mode = #tpu.pipeline_mode<synchronous>, transform_indices = @transform_1, window_bounds = array<i64: 96, 16>}, {pipeline_mode = #tpu.pipeline_mode<synchronous>, transform_indices = @transform_2, window_bounds = array<i64: 1, 16>}, {transform_indices = @transform_3, window_bounds = array<i64: 512, 16>}, {transform_indices = @transform_4, window_bounds = array<i64: 512, 16>}]} {
    %c0 = arith.constant 0 : index
    %c0_0 = arith.constant 0 : index
    %0 = vector.load %arg1[%c0, %c0_0] : memref<512x96xbf16, #tpu.memory_space<vmem>>, vector<512x96xbf16>
    %c0_1 = arith.constant 0 : index
    %c0_2 = arith.constant 0 : index
    %1 = vector.load %arg2[%c0_1, %c0_2] : memref<96x16xbf16, #tpu.memory_space<vmem>>, vector<96x16xbf16>
    %cst = arith.constant dense<0.000000e+00> : vector<512x16xf32>
    %2 = tpu.matmul %0, %1, %cst {dimension_numbers = #tpu.dot_dimension_numbers<[1], [0], [0], [1], [0, 0, 1, 1], [], []>} : vector<512x96xbf16>, vector<96x16xbf16>, vector<512x16xf32> -> vector<512x16xf32>
    %c0_3 = arith.constant 0 : index
    %c0_4 = arith.constant 0 : index
    %3 = vector.load %arg3[%c0_3, %c0_4] : memref<1x16xf32, #tpu.memory_space<vmem>>, vector<1x16xf32>
    %4 = vector.broadcast %3 : vector<1x16xf32> to vector<512x16xf32>
    %5 = arith.addf %2, %4 : vector<512x16xf32>
    %c0_5 = arith.constant 0 : index
    %c0_6 = arith.constant 0 : index
    %6 = vector.load %arg4[%c0_5, %c0_6] : memref<512x16xbf16, #tpu.memory_space<vmem>>, vector<512x16xbf16>
    %7 = arith.extf %6 : vector<512x16xbf16> to vector<512x16xf32>
    %8 = arith.addf %5, %7 : vector<512x16xf32>
    %c0_7 = arith.constant 0 : index
    %c0_8 = arith.constant 0 : index
    %9 = vector.load %arg5[%c0_7, %c0_8] : memref<512x16xf32, #tpu.memory_space<vmem>>, vector<512x16xf32>
    tpu.vector_store %arg5[%c0_7, %c0_8], %8 {strides = array<i32>} : memref<512x16xf32, #tpu.memory_space<vmem>>, vector<512x16xf32>,
    return
  }
  func.func @transform_0(%arg0: i32) -> (i32, i32) {
    %c0_i32 = arith.constant 0 : i32
    %c0_i32_0 = arith.constant 0 : i32
    return %arg0, %c0_i32 : i32, i32
  }
  func.func @transform_1(%arg0: i32) -> (i32, i32) {
    %c0_i32 = arith.constant 0 : i32
    %c0_i32_0 = arith.constant 0 : i32
    %c0_i32_1 = arith.constant 0 : i32
    return %c0_i32, %c0_i32_0 : i32, i32
  }
  func.func @transform_2(%arg0: i32) -> (i32, i32) {
    %c0_i32 = arith.constant 0 : i32
    %c0_i32_0 = arith.constant 0 : i32
    %c0_i32_1 = arith.constant 0 : i32
    return %c0_i32, %c0_i32_0 : i32, i32
  }
  func.func @transform_3(%arg0: i32) -> (i32, i32) {
    %c0_i32 = arith.constant 0 : i32
    %c0_i32_0 = arith.constant 0 : i32
    return %arg0, %c0_i32 : i32, i32
  }
  func.func @transform_4(%arg0: i32) -> (i32, i32) {
    %c0_i32 = arith.constant 0 : i32
    %c0_i32_0 = arith.constant 0 : i32
    return %arg0, %c0_i32 : i32, i32
  }
}

</mosaic_0001>

<llo_original>
// kernel: block_forward.3
$region0: #{block_forward.3}
  #allocation0 [shape = 'u32[]', space=smem, size = 0x4, offset = 0x4, fixed_abs, tag = 'smem constant byte address 0x4 - core index']
  #allocation1 [shape = 'u32[144,128]{1,0:T(1,128)}', space=vmem, size = 0x12000, scoped, tag = 'internal scratch']
  %s0 = inlined_call_operand.vmem [shape: bf16[512,16], index: 0, kind: input, shape index: {}]
  %s1 = inlined_call_operand.vmem [shape: bf16[16,96], index: 1, kind: input, shape index: {}]
  %s2 = inlined_call_operand.vmem [shape: f32[1,96], index: 2, kind: input, shape index: {}]
  %s3 = inlined_call_operand.vmem [shape: bf16[512,96], index: 3, kind: output, shape index: {}]
  %s4 = sld [smem:[#allocation0]]
  $region22: #{block_forward.3} parent=0
    _
  %s6 = ssub.s32 1, %s4
  %s7 = scalar_select 0, %s6, %s4
  // Predicated region
  $region2: #{block_forward.3} parent=0 // pred_check
    _
  $region3: #{block_forward.3} parent=0 // pred_check_branch
    %9 = sbr.rel (0) target = $region5
  $region4: #{block_forward.3} parent=0 // pred_region
    _
  $region5: #{block_forward.3} parent=0 // pred_fallthru
    _
  // Predicated region
  $region6: #{block_forward.3} parent=0 // pred_check
    _
  $region7: #{block_forward.3} parent=0 // pred_check_branch
    %11 = sbr.rel (0) target = $region9
  $region8: #{block_forward.3} parent=0 // pred_region
    _
  $region9: #{block_forward.3} parent=0 // pred_fallthru
    _
  // Predicated region
  $region10: #{block_forward.3} parent=0 // pred_check
    _
  $region11: #{block_forward.3} parent=0 // pred_check_branch
    %13 = sbr.rel (0) target = $region13
  $region12: #{block_forward.3} parent=0 // pred_region
    _
  $region13: #{block_forward.3} parent=0 // pred_fallthru
    _
  %v15 = vld [vmem:[%s0] sm:$0xf]
  %v16 = vld [vmem:[%s0 + $0x4] sm:$0xf]
  %v17 = vld [vmem:[%s0 + $0x8] sm:$0xf]
  %v18 = vld [vmem:[%s0 + $0xc] sm:$0xf]
  %v19 = vld [vmem:[%s0 + $0x10] sm:$0xf]
  %v20 = vld [vmem:[%s0 + $0x14] sm:$0xf]
  %v21 = vld [vmem:[%s0 + $0x18] sm:$0xf]
  %v22 = vld [vmem:[%s0 + $0x1c] sm:$0xf]
  %v23 = vld [vmem:[%s0 + $0x20] sm:$0xf]
  %v24 = vld [vmem:[%s0 + $0x24] sm:$0xf]
  %v25 = vld [vmem:[%s0 + $0x28] sm:$0xf]
  %v26 = vld [vmem:[%s0 + $0x2c] sm:$0xf]
  %v27 = vld [vmem:[%s0 + $0x30] sm:$0xf]
  %v28 = vld [vmem:[%s0 + $0x34] sm:$0xf]
  %v29 = vld [vmem:[%s0 + $0x38] sm:$0xf]
  %v30 = vld [vmem:[%s0 + $0x3c] sm:$0xf]
  %v31 = vld [vmem:[%s0 + $0x40] sm:$0xf]
  %v32 = vld [vmem:[%s0 + $0x44] sm:$0xf]
  %v33 = vld [vmem:[%s0 + $0x48] sm:$0xf]
  %v34 = vld [vmem:[%s0 + $0x4c] sm:$0xf]
  %v35 = vld [vmem:[%s0 + $0x50] sm:$0xf]
  %v36 = vld [vmem:[%s0 + $0x54] sm:$0xf]
  %v37 = vld [vmem:[%s0 + $0x58] sm:$0xf]
  %v38 = vld [vmem:[%s0 + $0x5c] sm:$0xf]
  %v39 = vld [vmem:[%s0 + $0x60] sm:$0xf]
  %v40 = vld [vmem:[%s0 + $0x64] sm:$0xf]
  %v41 = vld [vmem:[%s0 + $0x68] sm:$0xf]
  %v42 = vld [vmem:[%s0 + $0x6c] sm:$0xf]
  %v43 = vld [vmem:[%s0 + $0x70] sm:$0xf]
  %v44 = vld [vmem:[%s0 + $0x74] sm:$0xf]
  %v45 = vld [vmem:[%s0 + $0x78] sm:$0xf]
  %v46 = vld [vmem:[%s0 + $0x7c] sm:$0xf]
  %v47 = vld [vmem:[%s0 + $0x80] sm:$0xf]
  %v48 = vld [vmem:[%s0 + $0x84] sm:$0xf]
  %v49 = vld [vmem:[%s0 + $0x88] sm:$0xf]
  %v50 = vld [vmem:[%s0 + $0x8c] sm:$0xf]
  %v51 = vld [vmem:[%s0 + $0x90] sm:$0xf]
  %v52 = vld [vmem:[%s0 + $0x94] sm:$0xf]
  %v53 = vld [vmem:[%s0 + $0x98] sm:$0xf]
  %v54 = vld [vmem:[%s0 + $0x9c] sm:$0xf]
  %v55 = vld [vmem:[%s0 + $0xa0] sm:$0xf]
  %v56 = vld [vmem:[%s0 + $0xa4] sm:$0xf]
  %v57 = vld [vmem:[%s0 + $0xa8] sm:$0xf]
  %v58 = vld [vmem:[%s0 + $0xac] sm:$0xf]
  %v59 = vld [vmem:[%s0 + $0xb0] sm:$0xf]
  %v60 = vld [vmem:[%s0 + $0xb4] sm:$0xf]
  %v61 = vld [vmem:[%s0 + $0xb8] sm:$0xf]
  %v62 = vld [vmem:[%s0 + $0xbc] sm:$0xf]
  %v63 = vld [vmem:[%s0 + $0xc0] sm:$0xf]
  %v64 = vld [vmem:[%s0 + $0xc4] sm:$0xf]
  %v65 = vld [vmem:[%s0 + $0xc8] sm:$0xf]
  %v66 = vld [vmem:[%s0 + $0xcc] sm:$0xf]
  %v67 = vld [vmem:[%s0 + $0xd0] sm:$0xf]
  %v68 = vld [vmem:[%s0 + $0xd4] sm:$0xf]
  %v69 = vld [vmem:[%s0 + $0xd8] sm:$0xf]
  %v70 = vld [vmem:[%s0 + $0xdc] sm:$0xf]
  %v71 = vld [vmem:[%s0 + $0xe0] sm:$0xf]
  %v72 = vld [vmem:[%s0 + $0xe4] sm:$0xf]
  %v73 = vld [vmem:[%s0 + $0xe8] sm:$0xf]
  %v74 = vld [vmem:[%s0 + $0xec] sm:$0xf]
  %v75 = vld [vmem:[%s0 + $0xf0] sm:$0xf]
  %v76 = vld [vmem:[%s0 + $0xf4] sm:$0xf]
  %v77 = vld [vmem:[%s0 + $0xf8] sm:$0xf]
  %v78 = vld [vmem:[%s0 + $0xfc] sm:$0xf]
  %v79 = vld [vmem:[%s1] sm:$0xf]
  %v80 = vld [vmem:[%s1 + $0x4] sm:$0xf]
  %v81 = vld [vmem:[%s2] sm:$0x1]
  %v83 = vlaneseq
  %v84 = vshrl.u32 %v83, 7
  %v85 = vsub.s32 0, %v84
  %v86 = vrot.slane %v81, %v85
  %v152 = vunpack.c.l.b16 %v15
  %v153 = vunpack.c.l.b16 %v16
  %v154 = vunpack.c.l.b16 %v17
  %v155 = vunpack.c.l.b16 %v18
  %v156 = vunpack.c.l.b16 %v19
  %v157 = vunpack.c.l.b16 %v20
  %v158 = vunpack.c.l.b16 %v21
  %v159 = vunpack.c.l.b16 %v22
  %v160 = vunpack.c.l.b16 %v23
  %v161 = vunpack.c.l.b16 %v24
  %v162 = vunpack.c.l.b16 %v25
  %v163 = vunpack.c.l.b16 %v26
  %v164 = vunpack.c.l.b16 %v27
  %v165 = vunpack.c.l.b16 %v28
  %v166 = vunpack.c.l.b16 %v29
  %v167 = vunpack.c.l.b16 %v30
  %v168 = vunpack.c.l.b16 %v31
  %v169 = vunpack.c.l.b16 %v32
  %v170 = vunpack.c.l.b16 %v33
  %v171 = vunpack.c.l.b16 %v34
  %v172 = vunpack.c.l.b16 %v35
  %v173 = vunpack.c.l.b16 %v36
  %v174 = vunpack.c.l.b16 %v37
  %v175 = vunpack.c.l.b16 %v38
  %v176 = vunpack.c.l.b16 %v39
  %v177 = vunpack.c.l.b16 %v40
  %v178 = vunpack.c.l.b16 %v41
  %v179 = vunpack.c.l.b16 %v42
  %v180 = vunpack.c.l.b16 %v43
  %v181 = vunpack.c.l.b16 %v44
  %v182 = vunpack.c.l.b16 %v45
  %v183 = vunpack.c.l.b16 %v46
  %v184 = vunpack.c.l.b16 %v47
  %v185 = vunpack.c.l.b16 %v48
  %v186 = vunpack.c.l.b16 %v49
  %v187 = vunpack.c.l.b16 %v50
  %v188 = vunpack.c.l.b16 %v51
  %v189 = vunpack.c.l.b16 %v52
  %v190 = vunpack.c.l.b16 %v53
  %v191 = vunpack.c.l.b16 %v54
  %v192 = vunpack.c.l.b16 %v55
  %v193 = vunpack.c.l.b16 %v56
  %v194 = vunpack.c.l.b16 %v57
  %v195 = vunpack.c.l.b16 %v58
  %v196 = vunpack.c.l.b16 %v59
  %v197 = vunpack.c.l.b16 %v60
  %v198 = vunpack.c.l.b16 %v61
  %v199 = vunpack.c.l.b16 %v62
  %v200 = vunpack.c.l.b16 %v63
  %v201 = vunpack.c.l.b16 %v64
  %v202 = vunpack.c.l.b16 %v65
  %v203 = vunpack.c.l.b16 %v66
  %v204 = vunpack.c.l.b16 %v67
  %v205 = vunpack.c.l.b16 %v68
  %v206 = vunpack.c.l.b16 %v69
  %v207 = vunpack.c.l.b16 %v70
  %v208 = vunpack.c.l.b16 %v71
  %v209 = vunpack.c.l.b16 %v72
  %v210 = vunpack.c.l.b16 %v73
  %v211 = vunpack.c.l.b16 %v74
  %v212 = vunpack.c.l.b16 %v75
  %v213 = vunpack.c.l.b16 %v76
  %v214 = vunpack.c.l.b16 %v77
  %v215 = vunpack.c.l.b16 %v78
  %v216 = vpack.c.b16 %v153, %v152
  %v217 = vpack.c.b16 %v155, %v154
  %v218 = vpack.c.b16 %v157, %v156
  %v219 = vpack.c.b16 %v159, %v158
  %v220 = vpack.c.b16 %v161, %v160
  %v221 = vpack.c.b16 %v163, %v162
  %v222 = vpack.c.b16 %v165, %v164
  %v223 = vpack.c.b16 %v167, %v166
  %v224 = vpack.c.b16 %v169, %v168
  %v225 = vpack.c.b16 %v171, %v170
  %v226 = vpack.c.b16 %v173, %v172
  %v227 = vpack.c.b16 %v175, %v174
  %v228 = vpack.c.b16 %v177, %v176
  %v229 = vpack.c.b16 %v179, %v178
  %v230 = vpack.c.b16 %v181, %v180
  %v231 = vpack.c.b16 %v183, %v182
  %v232 = vpack.c.b16 %v185, %v184
  %v233 = vpack.c.b16 %v187, %v186
  %v234 = vpack.c.b16 %v189, %v188
  %v235 = vpack.c.b16 %v191, %v190
  %v236 = vpack.c.b16 %v193, %v192
  %v237 = vpack.c.b16 %v195, %v194
  %v238 = vpack.c.b16 %v197, %v196
  %v239 = vpack.c.b16 %v199, %v198
  %v240 = vpack.c.b16 %v201, %v200
  %v241 = vpack.c.b16 %v203, %v202
  %v242 = vpack.c.b16 %v205, %v204
  %v243 = vpack.c.b16 %v207, %v206
  %v244 = vpack.c.b16 %v209, %v208
  %v245 = vpack.c.b16 %v211, %v210
  %v246 = vpack.c.b16 %v213, %v212
  %v247 = vpack.c.b16 %v215, %v214
  %v250 = vunpack.c.l.b16 %v79
  %v251 = vunpack.c.l.b16 %v80
  %v252 = vpack.c.b16 %v251, %v250
  %vm254 = vcmask 130048
  %v256 = vsel %vm254, %v216, 0
  %v259 = vsel %vm254, %v217, 0
  %v262 = vsel %vm254, %v218, 0
  %v265 = vsel %vm254, %v219, 0
  %v268 = vsel %vm254, %v220, 0
  %v271 = vsel %vm254, %v221, 0
  %v274 = vsel %vm254, %v222, 0
  %v277 = vsel %vm254, %v223, 0
  %v280 = vsel %vm254, %v224, 0
  %v283 = vsel %vm254, %v225, 0
  %v286 = vsel %vm254, %v226, 0
  %v289 = vsel %vm254, %v227, 0
  %v292 = vsel %vm254, %v228, 0
  %v295 = vsel %vm254, %v229, 0
  %v298 = vsel %vm254, %v230, 0
  %v301 = vsel %vm254, %v231, 0
  %v304 = vsel %vm254, %v232, 0
  %v307 = vsel %vm254, %v233, 0
  %v310 = vsel %vm254, %v234, 0
  %v313 = vsel %vm254, %v235, 0
  %v316 = vsel %vm254, %v236, 0
  %v319 = vsel %vm254, %v237, 0
  %v322 = vsel %vm254, %v238, 0
  %v325 = vsel %vm254, %v239, 0
  %v328 = vsel %vm254, %v240, 0
  %v331 = vsel %vm254, %v241, 0
  %v334 = vsel %vm254, %v242, 0
  %v337 = vsel %vm254, %v243, 0
  %v340 = vsel %vm254, %v244, 0
  %v343 = vsel %vm254, %v245, 0
  %v346 = vsel %vm254, %v246, 0
  %v349 = vsel %vm254, %v247, 0
  %351 = vmatprep.subr.bf16.mxu0 0
  %352 = vmatpush1.bf16.msra.mxu0 0
  %353 = vmatprep.subr.bf16.mxu0 0
  %354 = vmatpush1.bf16.msra.mxu0 0
  %355 = vmatprep.subr.bf16.mxu0 0
  %356 = vmatpush1.bf16.msra.mxu0 0
  %357 = vmatprep.subr.bf16.mxu0 0
  %358 = vmatpush1.bf16.msra.mxu0 0
  %359 = vmatprep.subr.bf16.mxu0 0
  %360 = vmatpush1.bf16.msra.mxu0 0
  %361 = vmatprep.subr.bf16.mxu0 0
  %362 = vmatpush1.bf16.msra.mxu0 0
  %363 = vmatprep.subr.bf16.mxu0 0
  %364 = vmatpush1.bf16.msra.mxu0 0
  %365 = vmatprep.subr.bf16.mxu0 0
  %366 = vmatpush1.bf16.msra.mxu0 %v252
  %367 = vmatprep.subr.bf16.mxu0 0
  %368 = vmatpush2.bf16.msra.mxu0 0
  %369 = vmatprep.subr.bf16.mxu0 0
  %370 = vmatpush2.bf16.msra.mxu0 0
  %371 = vmatprep.subr.bf16.mxu0 0
  %372 = vmatpush2.bf16.msra.mxu0 0
  %373 = vmatprep.subr.bf16.mxu0 0
  %374 = vmatpush2.bf16.msra.mxu0 0
  %375 = vmatprep.subr.bf16.mxu0 0
  %376 = vmatpush2.bf16.msra.mxu0 0
  %377 = vmatprep.subr.bf16.mxu0 0
  %378 = vmatpush2.bf16.msra.mxu0 0
  %379 = vmatprep.subr.bf16.mxu0 0
  %380 = vmatpush2.bf16.msra.mxu0 0
  %381 = vmatprep.subr.bf16.mxu0 0
  %382 = vmatpush2.bf16.msra.mxu0 0
  %383 = vmatprep.mubr.bf16.mxu0 0
  %384 = vmatmul.mubr.bf16.gmra.mxu0 %v256
  %v385 = vpop.f32.mrf.mxu0
  %v386 = vadd.f32 %v86, %v385
  %v387 = vpop.f32.mrf.mxu0
  %v388 = vpop.f32.mrf.mxu0
  %v389 = vadd.f32 %v86, %v388
  %v390 = vpop.f32.mrf.mxu0
  %391 = vmatprep.mubr.bf16.mxu0 0
  %392 = vmatmul.mubr.bf16.gmra.mxu0 %v259
  %v393 = vpop.f32.mrf.mxu0
  %v394 = vadd.f32 %v86, %v393
  %v395 = vpop.f32.mrf.mxu0
  %v396 = vpop.f32.mrf.mxu0
  %v397 = vadd.f32 %v86, %v396
  %v398 = vpop.f32.mrf.mxu0
  %399 = vmatprep.mubr.bf16.mxu0 0
  %400 = vmatmul.mubr.bf16.gmra.mxu0 %v262
  %v401 = vpop.f32.mrf.mxu0
  %v402 = vadd.f32 %v86, %v401
  %v403 = vpop.f32.mrf.mxu0
  %v404 = vpop.f32.mrf.mxu0
  %v405 = vadd.f32 %v86, %v404
  %v406 = vpop.f32.mrf.mxu0
  %407 = vmatprep.mubr.bf16.mxu0 0
  %408 = vmatmul.mubr.bf16.gmra.mxu0 %v265
  %v409 = vpop.f32.mrf.mxu0
  %v410 = vadd.f32 %v86, %v409
  %v411 = vpop.f32.mrf.mxu0
  %v412 = vpop.f32.mrf.mxu0
  %v413 = vadd.f32 %v86, %v412
  %v414 = vpop.f32.mrf.mxu0
  %415 = vmatprep.mubr.bf16.mxu0 0
  %416 = vmatmul.mubr.bf16.gmra.mxu0 %v268
  %v417 = vpop.f32.mrf.mxu0
  %v418 = vadd.f32 %v86, %v417
  %v419 = vpop.f32.mrf.mxu0
  %v420 = vpop.f32.mrf.mxu0
  %v421 = vadd.f32 %v86, %v420
  %v422 = vpop.f32.mrf.mxu0
  %423 = vmatprep.mubr.bf16.mxu0 0
  %424 = vmatmul.mubr.bf16.gmra.mxu0 %v271
  %v425 = vpop.f32.mrf.mxu0
  %v426 = vadd.f32 %v86, %v425
  %v427 = vpop.f32.mrf.mxu0
  %v428 = vpop.f32.mrf.mxu0
  %v429 = vadd.f32 %v86, %v428
  %v430 = vpop.f32.mrf.mxu0
  %431 = vmatprep.mubr.bf16.mxu0 0
  %432 = vmatmul.mubr.bf16.gmra.mxu0 %v274
  %v433 = vpop.f32.mrf.mxu0
  %v434 = vadd.f32 %v86, %v433
  %v435 = vpop.f32.mrf.mxu0
  %v436 = vpop.f32.mrf.mxu0
  %v437 = vadd.f32 %v86, %v436
  %v438 = vpop.f32.mrf.mxu0
  %439 = vmatprep.mubr.bf16.mxu0 0
  %440 = vmatmul.mubr.bf16.gmra.mxu0 %v277
  %v441 = vpop.f32.mrf.mxu0
  %v442 = vadd.f32 %v86, %v441
  %v443 = vpop.f32.mrf.mxu0
  %v444 = vpop.f32.mrf.mxu0
  %v445 = vadd.f32 %v86, %v444
  %v446 = vpop.f32.mrf.mxu0
  %447 = vmatprep.mubr.bf16.mxu0 0
  %448 = vmatmul.mubr.bf16.gmra.mxu0 %v280
  %v449 = vpop.f32.mrf.mxu0
  %v450 = vadd.f32 %v86, %v449
  %v451 = vpop.f32.mrf.mxu0
  %v452 = vpop.f32.mrf.mxu0
  %v453 = vadd.f32 %v86, %v452
  %v454 = vpop.f32.mrf.mxu0
  %455 = vmatprep.mubr.bf16.mxu0 0
  %456 = vmatmul.mubr.bf16.gmra.mxu0 %v283
  %v457 = vpop.f32.mrf.mxu0
  %v458 = vadd.f32 %v86, %v457
  %v459 = vpop.f32.mrf.mxu0
  %v460 = vpop.f32.mrf.mxu0
  %v461 = vadd.f32 %v86, %v460
  %v462 = vpop.f32.mrf.mxu0
  %463 = vmatprep.mubr.bf16.mxu0 0
  %464 = vmatmul.mubr.bf16.gmra.mxu0 %v286
  %v465 = vpop.f32.mrf.mxu0
  %v466 = vadd.f32 %v86, %v465
  %v467 = vpop.f32.mrf.mxu0
  %v468 = vpop.f32.mrf.mxu0
  %v469 = vadd.f32 %v86, %v468
  %v470 = vpop.f32.mrf.mxu0
  %471 = vmatprep.mubr.bf16.mxu0 0
  %472 = vmatmul.mubr.bf16.gmra.mxu0 %v289
  %v473 = vpop.f32.mrf.mxu0
  %v474 = vadd.f32 %v86, %v473
  %v475 = vpop.f32.mrf.mxu0
  %v476 = vpop.f32.mrf.mxu0
  %v477 = vadd.f32 %v86, %v476
  %v478 = vpop.f32.mrf.mxu0
  %479 = vmatprep.mubr.bf16.mxu0 0
  %480 = vmatmul.mubr.bf16.gmra.mxu0 %v292
  %v481 = vpop.f32.mrf.mxu0
  %v482 = vadd.f32 %v86, %v481
  %v483 = vpop.f32.mrf.mxu0
  %v484 = vpop.f32.mrf.mxu0
  %v485 = vadd.f32 %v86, %v484
  %v486 = vpop.f32.mrf.mxu0
  %487 = vmatprep.mubr.bf16.mxu0 0
  %488 = vmatmul.mubr.bf16.gmra.mxu0 %v295
  %v489 = vpop.f32.mrf.mxu0
  %v490 = vadd.f32 %v86, %v489
  %v491 = vpop.f32.mrf.mxu0
  %v492 = vpop.f32.mrf.mxu0
  %v493 = vadd.f32 %v86, %v492
  %v494 = vpop.f32.mrf.mxu0
  %495 = vmatprep.mubr.bf16.mxu0 0
  %496 = vmatmul.mubr.bf16.gmra.mxu0 %v298
  %v497 = vpop.f32.mrf.mxu0
  %v498 = vadd.f32 %v86, %v497
  %v499 = vpop.f32.mrf.mxu0
  %v500 = vpop.f32.mrf.mxu0
  %v501 = vadd.f32 %v86, %v500
  %v502 = vpop.f32.mrf.mxu0
  %503 = vmatprep.mubr.bf16.mxu0 0
  %504 = vmatmul.mubr.bf16.gmra.mxu0 %v301
  %v505 = vpop.f32.mrf.mxu0
  %v506 = vadd.f32 %v86, %v505
  %v507 = vpop.f32.mrf.mxu0
  %v508 = vpop.f32.mrf.mxu0
  %v509 = vadd.f32 %v86, %v508
  %v510 = vpop.f32.mrf.mxu0
  %511 = vmatprep.mubr.bf16.mxu0 0
  %512 = vmatmul.mubr.bf16.gmra.mxu0 %v304
  %v513 = vpop.f32.mrf.mxu0
  %v514 = vadd.f32 %v86, %v513
  %v515 = vpop.f32.mrf.mxu0
  %v516 = vpop.f32.mrf.mxu0
  %v517 = vadd.f32 %v86, %v516
  %v518 = vpop.f32.mrf.mxu0
  %519 = vmatprep.mubr.bf16.mxu0 0
  %520 = vmatmul.mubr.bf16.gmra.mxu0 %v307
  %v521 = vpop.f32.mrf.mxu0
  %v522 = vadd.f32 %v86, %v521
  %v523 = vpop.f32.mrf.mxu0
  %v524 = vpop.f32.mrf.mxu0
  %v525 = vadd.f32 %v86, %v524
  %v526 = vpop.f32.mrf.mxu0
  %527 = vmatprep.mubr.bf16.mxu0 0
  %528 = vmatmul.mubr.bf16.gmra.mxu0 %v310
  %v529 = vpop.f32.mrf.mxu0
  %v530 = vadd.f32 %v86, %v529
  %v531 = vpop.f32.mrf.mxu0
  %v532 = vpop.f32.mrf.mxu0
  %v533 = vadd.f32 %v86, %v532
  %v534 = vpop.f32.mrf.mxu0
  %535 = vmatprep.mubr.bf16.mxu0 0
  %536 = vmatmul.mubr.bf16.gmra.mxu0 %v313
  %v537 = vpop.f32.mrf.mxu0
  %v538 = vadd.f32 %v86, %v537
  %v539 = vpop.f32.mrf.mxu0
  %v540 = vpop.f32.mrf.mxu0
  %v541 = vadd.f32 %v86, %v540
  %v542 = vpop.f32.mrf.mxu0
  %543 = vmatprep.mubr.bf16.mxu0 0
  %544 = vmatmul.mubr.bf16.gmra.mxu0 %v316
  %v545 = vpop.f32.mrf.mxu0
  %v546 = vadd.f32 %v86, %v545
  %v547 = vpop.f32.mrf.mxu0
  %v548 = vpop.f32.mrf.mxu0
  %v549 = vadd.f32 %v86, %v548
  %v550 = vpop.f32.mrf.mxu0
  %551 = vmatprep.mubr.bf16.mxu0 0
  %552 = vmatmul.mubr.bf16.gmra.mxu0 %v319
  %v553 = vpop.f32.mrf.mxu0
  %v554 = vadd.f32 %v86, %v553
  %v555 = vpop.f32.mrf.mxu0
  %v556 = vpop.f32.mrf.mxu0
  %v557 = vadd.f32 %v86, %v556
  %v558 = vpop.f32.mrf.mxu0
  %559 = vmatprep.mubr.bf16.mxu0 0
  %560 = vmatmul.mubr.bf16.gmra.mxu0 %v322
  %v561 = vpop.f32.mrf.mxu0
  %v562 = vadd.f32 %v86, %v561
  %v563 = vpop.f32.mrf.mxu0
  %v564 = vpop.f32.mrf.mxu0
  %v565 = vadd.f32 %v86, %v564
  %v566 = vpop.f32.mrf.mxu0
  %567 = vmatprep.mubr.bf16.mxu0 0
  %568 = vmatmul.mubr.bf16.gmra.mxu0 %v325
  %v569 = vpop.f32.mrf.mxu0
  %v570 = vadd.f32 %v86, %v569
  %v571 = vpop.f32.mrf.mxu0
  %v572 = vpop.f32.mrf.mxu0
  %v573 = vadd.f32 %v86, %v572
  %v574 = vpop.f32.mrf.mxu0
  %575 = vmatprep.mubr.bf16.mxu0 0
  %576 = vmatmul.mubr.bf16.gmra.mxu0 %v328
  %v577 = vpop.f32.mrf.mxu0
  %v578 = vadd.f32 %v86, %v577
  %v579 = vpop.f32.mrf.mxu0
  %v580 = vpop.f32.mrf.mxu0
  %v581 = vadd.f32 %v86, %v580
  %v582 = vpop.f32.mrf.mxu0
  %583 = vmatprep.mubr.bf16.mxu0 0
  %584 = vmatmul.mubr.bf16.gmra.mxu0 %v331
  %v585 = vpop.f32.mrf.mxu0
  %v586 = vadd.f32 %v86, %v585
  %v587 = vpop.f32.mrf.mxu0
  %v588 = vpop.f32.mrf.mxu0
  %v589 = vadd.f32 %v86, %v588
  %v590 = vpop.f32.mrf.mxu0
  %591 = vmatprep.mubr.bf16.mxu0 0
  %592 = vmatmul.mubr.bf16.gmra.mxu0 %v334
  %v593 = vpop.f32.mrf.mxu0
  %v594 = vadd.f32 %v86, %v593
  %v595 = vpop.f32.mrf.mxu0
  %v596 = vpop.f32.mrf.mxu0
  %v597 = vadd.f32 %v86, %v596
  %v598 = vpop.f32.mrf.mxu0
  %599 = vmatprep.mubr.bf16.mxu0 0
  %600 = vmatmul.mubr.bf16.gmra.mxu0 %v337
  %v601 = vpop.f32.mrf.mxu0
  %v602 = vadd.f32 %v86, %v601
  %v603 = vpop.f32.mrf.mxu0
  %v604 = vpop.f32.mrf.mxu0
  %v605 = vadd.f32 %v86, %v604
  %v606 = vpop.f32.mrf.mxu0
  %607 = vmatprep.mubr.bf16.mxu0 0
  %608 = vmatmul.mubr.bf16.gmra.mxu0 %v340
  %v609 = vpop.f32.mrf.mxu0
  %v610 = vadd.f32 %v86, %v609
  %v611 = vpop.f32.mrf.mxu0
  %v612 = vpop.f32.mrf.mxu0
  %v613 = vadd.f32 %v86, %v612
  %v614 = vpop.f32.mrf.mxu0
  %615 = vmatprep.mubr.bf16.mxu0 0
  %616 = vmatmul.mubr.bf16.gmra.mxu0 %v343
  %v617 = vpop.f32.mrf.mxu0
  %v618 = vadd.f32 %v86, %v617
  %v619 = vpop.f32.mrf.mxu0
  %v620 = vpop.f32.mrf.mxu0
  %v621 = vadd.f32 %v86, %v620
  %v622 = vpop.f32.mrf.mxu0
  %623 = vmatprep.mubr.bf16.mxu0 0
  %624 = vmatmul.mubr.bf16.gmra.mxu0 %v346
  %v625 = vpop.f32.mrf.mxu0
  %v626 = vadd.f32 %v86, %v625
  %v627 = vpop.f32.mrf.mxu0
  %v628 = vpop.f32.mrf.mxu0
  %v629 = vadd.f32 %v86, %v628
  %v630 = vpop.f32.mrf.mxu0
  %631 = vmatprep.mubr.bf16.mxu0 0
  %632 = vmatmul.mubr.bf16.gmra.mxu0 %v349
  %v633 = vpop.f32.mrf.mxu0
  %v634 = vadd.f32 %v86, %v633
  %v635 = vpop.f32.mrf.mxu0
  %v636 = vpop.f32.mrf.mxu0
  %v637 = vadd.f32 %v86, %v636
  %v638 = vpop.f32.mrf.mxu0
  %639 = vdwg.mxu0
  %v640 = vmax.f32 %v386, 0.0
  %v641 = vmax.f32 %v389, 0.0
  %v642 = vmax.f32 %v394, 0.0
  %v643 = vmax.f32 %v397, 0.0
  %v644 = vmax.f32 %v402, 0.0
  %v645 = vmax.f32 %v405, 0.0
  %v646 = vmax.f32 %v410, 0.0
  %v647 = vmax.f32 %v413, 0.0
  %v648 = vmax.f32 %v418, 0.0
  %v649 = vmax.f32 %v421, 0.0
  %v650 = vmax.f32 %v426, 0.0
  %v651 = vmax.f32 %v429, 0.0
  %v652 = vmax.f32 %v434, 0.0
  %v653 = vmax.f32 %v437, 0.0
  %v654 = vmax.f32 %v442, 0.0
  %v655 = vmax.f32 %v445, 0.0
  %v656 = vmax.f32 %v450, 0.0
  %v657 = vmax.f32 %v453, 0.0
  %v658 = vmax.f32 %v458, 0.0
  %v659 = vmax.f32 %v461, 0.0
  %v660 = vmax.f32 %v466, 0.0
  %v661 = vmax.f32 %v469, 0.0
  %v662 = vmax.f32 %v474, 0.0
  %v663 = vmax.f32 %v477, 0.0
  %v664 = vmax.f32 %v482, 0.0
  %v665 = vmax.f32 %v485, 0.0
  %v666 = vmax.f32 %v490, 0.0
  %v667 = vmax.f32 %v493, 0.0
  %v668 = vmax.f32 %v498, 0.0
  %v669 = vmax.f32 %v501, 0.0
  %v670 = vmax.f32 %v506, 0.0
  %v671 = vmax.f32 %v509, 0.0
  %v672 = vmax.f32 %v514, 0.0
  %v673 = vmax.f32 %v517, 0.0
  %v674 = vmax.f32 %v522, 0.0
  %v675 = vmax.f32 %v525, 0.0
  %v676 = vmax.f32 %v530, 0.0
  %v677 = vmax.f32 %v533, 0.0
  %v678 = vmax.f32 %v538, 0.0
  %v679 = vmax.f32 %v541, 0.0
  %v680 = vmax.f32 %v546, 0.0
  %v681 = vmax.f32 %v549, 0.0
  %v682 = vmax.f32 %v554, 0.0
  %v683 = vmax.f32 %v557, 0.0
  %v684 = vmax.f32 %v562, 0.0
  %v685 = vmax.f32 %v565, 0.0
  %v686 = vmax.f32 %v570, 0.0
  %v687 = vmax.f32 %v573, 0.0
  %v688 = vmax.f32 %v578, 0.0
  %v689 = vmax.f32 %v581, 0.0
  %v690 = vmax.f32 %v586, 0.0
  %v691 = vmax.f32 %v589, 0.0
  %v692 = vmax.f32 %v594, 0.0
  %v693 = vmax.f32 %v597, 0.0
  %v694 = vmax.f32 %v602, 0.0
  %v695 = vmax.f32 %v605, 0.0
  %v696 = vmax.f32 %v610, 0.0
  %v697 = vmax.f32 %v613, 0.0
  %v698 = vmax.f32 %v618, 0.0
  %v699 = vmax.f32 %v621, 0.0
  %v700 = vmax.f32 %v626, 0.0
  %v701 = vmax.f32 %v629, 0.0
  %v702 = vmax.f32 %v634, 0.0
  %v703 = vmax.f32 %v637, 0.0
  %v704 = vmin.f32 %v640, 6.0
  %v705 = vmin.f32 %v641, 6.0
  %v706 = vmin.f32 %v642, 6.0
  %v707 = vmin.f32 %v643, 6.0
  %v708 = vmin.f32 %v644, 6.0
  %v709 = vmin.f32 %v645, 6.0
  %v710 = vmin.f32 %v646, 6.0
  %v711 = vmin.f32 %v647, 6.0
  %v712 = vmin.f32 %v648, 6.0
  %v713 = vmin.f32 %v649, 6.0
  %v714 = vmin.f32 %v650, 6.0
  %v715 = vmin.f32 %v651, 6.0
  %v716 = vmin.f32 %v652, 6.0
  %v717 = vmin.f32 %v653, 6.0
  %v718 = vmin.f32 %v654, 6.0
  %v719 = vmin.f32 %v655, 6.0
  %v720 = vmin.f32 %v656, 6.0
  %v721 = vmin.f32 %v657, 6.0
  %v722 = vmin.f32 %v658, 6.0
  %v723 = vmin.f32 %v659, 6.0
  %v724 = vmin.f32 %v660, 6.0
  %v725 = vmin.f32 %v661, 6.0
  %v726 = vmin.f32 %v662, 6.0
  %v727 = vmin.f32 %v663, 6.0
  %v728 = vmin.f32 %v664, 6.0
  %v729 = vmin.f32 %v665, 6.0
  %v730 = vmin.f32 %v666, 6.0
  %v731 = vmin.f32 %v667, 6.0
  %v732 = vmin.f32 %v668, 6.0
  %v733 = vmin.f32 %v669, 6.0
  %v734 = vmin.f32 %v670, 6.0
  %v735 = vmin.f32 %v671, 6.0
  %v736 = vmin.f32 %v672, 6.0
  %v737 = vmin.f32 %v673, 6.0
  %v738 = vmin.f32 %v674, 6.0
  %v739 = vmin.f32 %v675, 6.0
  %v740 = vmin.f32 %v676, 6.0
  %v741 = vmin.f32 %v677, 6.0
  %v742 = vmin.f32 %v678, 6.0
  %v743 = vmin.f32 %v679, 6.0
  %v744 = vmin.f32 %v680, 6.0
  %v745 = vmin.f32 %v681, 6.0
  %v746 = vmin.f32 %v682, 6.0
  %v747 = vmin.f32 %v683, 6.0
  %v748 = vmin.f32 %v684, 6.0
  %v749 = vmin.f32 %v685, 6.0
  %v750 = vmin.f32 %v686, 6.0
  %v751 = vmin.f32 %v687, 6.0
  %v752 = vmin.f32 %v688, 6.0
  %v753 = vmin.f32 %v689, 6.0
  %v754 = vmin.f32 %v690, 6.0
  %v755 = vmin.f32 %v691, 6.0
  %v756 = vmin.f32 %v692, 6.0
  %v757 = vmin.f32 %v693, 6.0
  %v758 = vmin.f32 %v694, 6.0
  %v759 = vmin.f32 %v695, 6.0
  %v760 = vmin.f32 %v696, 6.0
  %v761 = vmin.f32 %v697, 6.0
  %v762 = vmin.f32 %v698, 6.0
  %v763 = vmin.f32 %v699, 6.0
  %v764 = vmin.f32 %v700, 6.0
  %v765 = vmin.f32 %v701, 6.0
  %v766 = vmin.f32 %v702, 6.0
  %v767 = vmin.f32 %v703, 6.0
  %v768 = vpack.c.bf16 %v705, %v704
  %v769 = vpack.c.bf16 %v707, %v706
  %v770 = vpack.c.bf16 %v709, %v708
  %v771 = vpack.c.bf16 %v711, %v710
  %v772 = vpack.c.bf16 %v713, %v712
  %v773 = vpack.c.bf16 %v715, %v714
  %v774 = vpack.c.bf16 %v717, %v716
  %v775 = vpack.c.bf16 %v719, %v718
  %v776 = vpack.c.bf16 %v721, %v720
  %v777 = vpack.c.bf16 %v723, %v722
  %v778 = vpack.c.bf16 %v725, %v724
  %v779 = vpack.c.bf16 %v727, %v726
  %v780 = vpack.c.bf16 %v729, %v728
  %v781 = vpack.c.bf16 %v731, %v730
  %v782 = vpack.c.bf16 %v733, %v732
  %v783 = vpack.c.bf16 %v735, %v734
  %v784 = vpack.c.bf16 %v737, %v736
  %v785 = vpack.c.bf16 %v739, %v738
  %v786 = vpack.c.bf16 %v741, %v740
  %v787 = vpack.c.bf16 %v743, %v742
  %v788 = vpack.c.bf16 %v745, %v744
  %v789 = vpack.c.bf16 %v747, %v746
  %v790 = vpack.c.bf16 %v749, %v748
  %v791 = vpack.c.bf16 %v751, %v750
  %v792 = vpack.c.bf16 %v753, %v752
  %v793 = vpack.c.bf16 %v755, %v754
  %v794 = vpack.c.bf16 %v757, %v756
  %v795 = vpack.c.bf16 %v759, %v758
  %v796 = vpack.c.bf16 %v761, %v760
  %v797 = vpack.c.bf16 %v763, %v762
  %v798 = vpack.c.bf16 %v765, %v764
  %v799 = vpack.c.bf16 %v767, %v766
  %v832 = vunpack.c.l.b16 %v768
  %v833 = vunpack.c.h.b16 %v768
  %v834 = vunpack.c.l.b16 %v769
  %v835 = vunpack.c.h.b16 %v769
  %v836 = vunpack.c.l.b16 %v770
  %v837 = vunpack.c.h.b16 %v770
  %v838 = vunpack.c.l.b16 %v771
  %v839 = vunpack.c.h.b16 %v771
  %v840 = vunpack.c.l.b16 %v772
  %v841 = vunpack.c.h.b16 %v772
  %v842 = vunpack.c.l.b16 %v773
  %v843 = vunpack.c.h.b16 %v773
  %v844 = vunpack.c.l.b16 %v774
  %v845 = vunpack.c.h.b16 %v774
  %v846 = vunpack.c.l.b16 %v775
  %v847 = vunpack.c.h.b16 %v775
  %v848 = vunpack.c.l.b16 %v776
  %v849 = vunpack.c.h.b16 %v776
  %v850 = vunpack.c.l.b16 %v777
  %v851 = vunpack.c.h.b16 %v777
  %v852 = vunpack.c.l.b16 %v778
  %v853 = vunpack.c.h.b16 %v778
  %v854 = vunpack.c.l.b16 %v779
  %v855 = vunpack.c.h.b16 %v779
  %v856 = vunpack.c.l.b16 %v780
  %v857 = vunpack.c.h.b16 %v780
  %v858 = vunpack.c.l.b16 %v781
  %v859 = vunpack.c.h.b16 %v781
  %v860 = vunpack.c.l.b16 %v782
  %v861 = vunpack.c.h.b16 %v782
  %v862 = vunpack.c.l.b16 %v783
  %v863 = vunpack.c.h.b16 %v783
  %v864 = vunpack.c.l.b16 %v784
  %v865 = vunpack.c.h.b16 %v784
  %v866 = vunpack.c.l.b16 %v785
  %v867 = vunpack.c.h.b16 %v785
  %v868 = vunpack.c.l.b16 %v786
  %v869 = vunpack.c.h.b16 %v786
  %v870 = vunpack.c.l.b16 %v787
  %v871 = vunpack.c.h.b16 %v787
  %v872 = vunpack.c.l.b16 %v788
  %v873 = vunpack.c.h.b16 %v788
  %v874 = vunpack.c.l.b16 %v789
  %v875 = vunpack.c.h.b16 %v789
  %v876 = vunpack.c.l.b16 %v790
  %v877 = vunpack.c.h.b16 %v790
  %v878 = vunpack.c.l.b16 %v791
  %v879 = vunpack.c.h.b16 %v791
  %v880 = vunpack.c.l.b16 %v792
  %v881 = vunpack.c.h.b16 %v792
  %v882 = vunpack.c.l.b16 %v793
  %v883 = vunpack.c.h.b16 %v793
  %v884 = vunpack.c.l.b16 %v794
  %v885 = vunpack.c.h.b16 %v794
  %v886 = vunpack.c.l.b16 %v795
  %v887 = vunpack.c.h.b16 %v795
  %v888 = vunpack.c.l.b16 %v796
  %v889 = vunpack.c.h.b16 %v796
  %v890 = vunpack.c.l.b16 %v797
  %v891 = vunpack.c.h.b16 %v797
  %v892 = vunpack.c.l.b16 %v798
  %v893 = vunpack.c.h.b16 %v798
  %v894 = vunpack.c.l.b16 %v799
  %v895 = vunpack.c.h.b16 %v799
  %v896 = vpack.c.b16 %v832, %v832
  %v897 = vpack.c.b16 %v833, %v833
  %v898 = vpack.c.b16 %v834, %v834
  %v899 = vpack.c.b16 %v835, %v835
  %v900 = vpack.c.b16 %v836, %v836
  %v901 = vpack.c.b16 %v837, %v837
  %v902 = vpack.c.b16 %v838, %v838
  %v903 = vpack.c.b16 %v839, %v839
  %v904 = vpack.c.b16 %v840, %v840
  %v905 = vpack.c.b16 %v841, %v841
  %v906 = vpack.c.b16 %v842, %v842
  %v907 = vpack.c.b16 %v843, %v843
  %v908 = vpack.c.b16 %v844, %v844
  %v909 = vpack.c.b16 %v845, %v845
  %v910 = vpack.c.b16 %v846, %v846
  %v911 = vpack.c.b16 %v847, %v847
  %v912 = vpack.c.b16 %v848, %v848
  %v913 = vpack.c.b16 %v849, %v849
  %v914 = vpack.c.b16 %v850, %v850
  %v915 = vpack.c.b16 %v851, %v851
  %v916 = vpack.c.b16 %v852, %v852
  %v917 = vpack.c.b16 %v853, %v853
  %v918 = vpack.c.b16 %v854, %v854
  %v919 = vpack.c.b16 %v855, %v855
  %v920 = vpack.c.b16 %v856, %v856
  %v921 = vpack.c.b16 %v857, %v857
  %v922 = vpack.c.b16 %v858, %v858
  %v923 = vpack.c.b16 %v859, %v859
  %v924 = vpack.c.b16 %v860, %v860
  %v925 = vpack.c.b16 %v861, %v861
  %v926 = vpack.c.b16 %v862, %v862
  %v927 = vpack.c.b16 %v863, %v863
  %v928 = vpack.c.b16 %v864, %v864
  %v929 = vpack.c.b16 %v865, %v865
  %v930 = vpack.c.b16 %v866, %v866
  %v931 = vpack.c.b16 %v867, %v867
  %v932 = vpack.c.b16 %v868, %v868
  %v933 = vpack.c.b16 %v869, %v869
  %v934 = vpack.c.b16 %v870, %v870
  %v935 = vpack.c.b16 %v871, %v871
  %v936 = vpack.c.b16 %v872, %v872
  %v937 = vpack.c.b16 %v873, %v873
  %v938 = vpack.c.b16 %v874, %v874
  %v939 = vpack.c.b16 %v875, %v875
  %v940 = vpack.c.b16 %v876, %v876
  %v941 = vpack.c.b16 %v877, %v877
  %v942 = vpack.c.b16 %v878, %v878
  %v943 = vpack.c.b16 %v879, %v879
  %v944 = vpack.c.b16 %v880, %v880
  %v945 = vpack.c.b16 %v881, %v881
  %v946 = vpack.c.b16 %v882, %v882
  %v947 = vpack.c.b16 %v883, %v883
  %v948 = vpack.c.b16 %v884, %v884
  %v949 = vpack.c.b16 %v885, %v885
  %v950 = vpack.c.b16 %v886, %v886
  %v951 = vpack.c.b16 %v887, %v887
  %v952 = vpack.c.b16 %v888, %v888
  %v953 = vpack.c.b16 %v889, %v889
  %v954 = vpack.c.b16 %v890, %v890
  %v955 = vpack.c.b16 %v891, %v891
  %v956 = vpack.c.b16 %v892, %v892
  %v957 = vpack.c.b16 %v893, %v893
  %v958 = vpack.c.b16 %v894, %v894
  %v959 = vpack.c.b16 %v895, %v895
  %vm1024 = vcmask 781312
  %1025 = vst.msk [vmem:[%s3] sm:$0xf] %vm1024, %v896
  %1026 = vst.msk [vmem:[%s3 + $0x4] sm:$0xf] %vm1024, %v897
  %1027 = vst.msk [vmem:[%s3 + $0x8] sm:$0xf] %vm1024, %v898
  %1028 = vst.msk [vmem:[%s3 + $0xc] sm:$0xf] %vm1024, %v899
  %1029 = vst.msk [vmem:[%s3 + $0x10] sm:$0xf] %vm1024, %v900
  %1030 = vst.msk [vmem:[%s3 + $0x14] sm:$0xf] %vm1024, %v901
  %1031 = vst.msk [vmem:[%s3 + $0x18] sm:$0xf] %vm1024, %v902
  %1032 = vst.msk [vmem:[%s3 + $0x1c] sm:$0xf] %vm1024, %v903
  %1033 = vst.msk [vmem:[%s3 + $0x20] sm:$0xf] %vm1024, %v904
  %1034 = vst.msk [vmem:[%s3 + $0x24] sm:$0xf] %vm1024, %v905
  %1035 = vst.msk [vmem:[%s3 + $0x28] sm:$0xf] %vm1024, %v906
  %1036 = vst.msk [vmem:[%s3 + $0x2c] sm:$0xf] %vm1024, %v907
  %1037 = vst.msk [vmem:[%s3 + $0x30] sm:$0xf] %vm1024, %v908
  %1038 = vst.msk [vmem:[%s3 + $0x34] sm:$0xf] %vm1024, %v909
  %1039 = vst.msk [vmem:[%s3 + $0x38] sm:$0xf] %vm1024, %v910
  %1040 = vst.msk [vmem:[%s3 + $0x3c] sm:$0xf] %vm1024, %v911
  %1041 = vst.msk [vmem:[%s3 + $0x40] sm:$0xf] %vm1024, %v912
  %1042 = vst.msk [vmem:[%s3 + $0x44] sm:$0xf] %vm1024, %v913
  %1043 = vst.msk [vmem:[%s3 + $0x48] sm:$0xf] %vm1024, %v914
  %1044 = vst.msk [vmem:[%s3 + $0x4c] sm:$0xf] %vm1024, %v915
  %1045 = vst.msk [vmem:[%s3 + $0x50] sm:$0xf] %vm1024, %v916
  %1046 = vst.msk [vmem:[%s3 + $0x54] sm:$0xf] %vm1024, %v917
  %1047 = vst.msk [vmem:[%s3 + $0x58] sm:$0xf] %vm1024, %v918
  %1048 = vst.msk [vmem:[%s3 + $0x5c] sm:$0xf] %vm1024, %v919
  %1049 = vst.msk [vmem:[%s3 + $0x60] sm:$0xf] %vm1024, %v920
  %1050 = vst.msk [vmem:[%s3 + $0x64] sm:$0xf] %vm1024, %v921
  %1051 = vst.msk [vmem:[%s3 + $0x68] sm:$0xf] %vm1024, %v922
  %1052 = vst.msk [vmem:[%s3 + $0x6c] sm:$0xf] %vm1024, %v923
  %1053 = vst.msk [vmem:[%s3 + $0x70] sm:$0xf] %vm1024, %v924
  %1054 = vst.msk [vmem:[%s3 + $0x74] sm:$0xf] %vm1024, %v925
  %1055 = vst.msk [vmem:[%s3 + $0x78] sm:$0xf] %vm1024, %v926
  %1056 = vst.msk [vmem:[%s3 + $0x7c] sm:$0xf] %vm1024, %v927
  %1057 = vst.msk [vmem:[%s3 + $0x80] sm:$0xf] %vm1024, %v928
  %1058 = vst.msk [vmem:[%s3 + $0x84] sm:$0xf] %vm1024, %v929
  %1059 = vst.msk [vmem:[%s3 + $0x88] sm:$0xf] %vm1024, %v930
  %1060 = vst.msk [vmem:[%s3 + $0x8c] sm:$0xf] %vm1024, %v931
  %1061 = vst.msk [vmem:[%s3 + $0x90] sm:$0xf] %vm1024, %v932
  %1062 = vst.msk [vmem:[%s3 + $0x94] sm:$0xf] %vm1024, %v933
  %1063 = vst.msk [vmem:[%s3 + $0x98] sm:$0xf] %vm1024, %v934
  %1064 = vst.msk [vmem:[%s3 + $0x9c] sm:$0xf] %vm1024, %v935
  %1065 = vst.msk [vmem:[%s3 + $0xa0] sm:$0xf] %vm1024, %v936
  %1066 = vst.msk [vmem:[%s3 + $0xa4] sm:$0xf] %vm1024, %v937
  %1067 = vst.msk [vmem:[%s3 + $0xa8] sm:$0xf] %vm1024, %v938
  %1068 = vst.msk [vmem:[%s3 + $0xac] sm:$0xf] %vm1024, %v939
  %1069 = vst.msk [vmem:[%s3 + $0xb0] sm:$0xf] %vm1024, %v940
  %1070 = vst.msk [vmem:[%s3 + $0xb4] sm:$0xf] %vm1024, %v941
  %1071 = vst.msk [vmem:[%s3 + $0xb8] sm:$0xf] %vm1024, %v942
  %1072 = vst.msk [vmem:[%s3 + $0xbc] sm:$0xf] %vm1024, %v943
  %1073 = vst.msk [vmem:[%s3 + $0xc0] sm:$0xf] %vm1024, %v944
  %1074 = vst.msk [vmem:[%s3 + $0xc4] sm:$0xf] %vm1024, %v945
  %1075 = vst.msk [vmem:[%s3 + $0xc8] sm:$0xf] %vm1024, %v946
  %1076 = vst.msk [vmem:[%s3 + $0xcc] sm:$0xf] %vm1024, %v947
  %1077 = vst.msk [vmem:[%s3 + $0xd0] sm:$0xf] %vm1024, %v948
  %1078 = vst.msk [vmem:[%s3 + $0xd4] sm:$0xf] %vm1024, %v949
  %1079 = vst.msk [vmem:[%s3 + $0xd8] sm:$0xf] %vm1024, %v950
  %1080 = vst.msk [vmem:[%s3 + $0xdc] sm:$0xf] %vm1024, %v951
  %1081 = vst.msk [vmem:[%s3 + $0xe0] sm:$0xf] %vm1024, %v952
  %1082 = vst.msk [vmem:[%s3 + $0xe4] sm:$0xf] %vm1024, %v953
  %1083 = vst.msk [vmem:[%s3 + $0xe8] sm:$0xf] %vm1024, %v954
  %1084 = vst.msk [vmem:[%s3 + $0xec] sm:$0xf] %vm1024, %v955
  %1085 = vst.msk [vmem:[%s3 + $0xf0] sm:$0xf] %vm1024, %v956
  %1086 = vst.msk [vmem:[%s3 + $0xf4] sm:$0xf] %vm1024, %v957
  %1087 = vst.msk [vmem:[%s3 + $0xf8] sm:$0xf] %vm1024, %v958
  %1088 = vst.msk [vmem:[%s3 + $0xfc] sm:$0xf] %vm1024, %v959
  // Predicated region
  $region14: #{block_forward.3} parent=0 // pred_check
    _
  $region15: #{block_forward.3} parent=0 // pred_check_branch
    %1090 = sbr.rel (0) target = $region17
  $region16: #{block_forward.3} parent=0 // pred_region
    _
  $region17: #{block_forward.3} parent=0 // pred_fallthru
    _
  // Predicated region
  $region18: #{block_forward.3} parent=0 // pred_check
    _
  $region19: #{block_forward.3} parent=0 // pred_check_branch
    %1092 = sbr.rel (0) target = $region21
  $region20: #{block_forward.3} parent=0 // pred_region
    _
  $region21: #{block_forward.3} parent=0 // pred_fallthru
    _

// kernel: block_forward.5
$region0: #{block_forward.5}
  #allocation0 [shape = 'u32[]', space=smem, size = 0x4, offset = 0x4, fixed_abs, tag = 'smem constant byte address 0x4 - core index']
  #allocation1 [shape = 'u32[144,128]{1,0:T(1,128)}', space=vmem, size = 0x12000, scoped, tag = 'internal scratch']
  %s0 = inlined_call_operand.vmem [shape: bf16[512,96], index: 0, kind: input, shape index: {}]
  %s1 = inlined_call_operand.vmem [shape: bf16[96,16], index: 1, kind: input, shape index: {}]
  %s2 = inlined_call_operand.vmem [shape: f32[1,16], index: 2, kind: input, shape index: {}]
  %s3 = inlined_call_operand.vmem [shape: bf16[512,16], index: 3, kind: input, shape index: {}]
  %s4 = inlined_call_operand.vmem [shape: f32[512,16], index: 4, kind: output, shape index: {}]
  %s5 = sld [smem:[#allocation0]]
  $region26: #{block_forward.5} parent=0
    _
  %s7 = ssub.s32 1, %s5
  %s8 = scalar_select 0, %s7, %s5
  // Predicated region
  $region2: #{block_forward.5} parent=0 // pred_check
    _
  $region3: #{block_forward.5} parent=0 // pred_check_branch
    %10 = sbr.rel (0) target = $region5
  $region4: #{block_forward.5} parent=0 // pred_region
    _
  $region5: #{block_forward.5} parent=0 // pred_fallthru
    _
  // Predicated region
  $region6: #{block_forward.5} parent=0 // pred_check
    _
  $region7: #{block_forward.5} parent=0 // pred_check_branch
    %12 = sbr.rel (0) target = $region9
  $region8: #{block_forward.5} parent=0 // pred_region
    _
  $region9: #{block_forward.5} parent=0 // pred_fallthru
    _
  // Predicated region
  $region10: #{block_forward.5} parent=0 // pred_check
    _
  $region11: #{block_forward.5} parent=0 // pred_check_branch
    %14 = sbr.rel (0) target = $region13
  $region12: #{block_forward.5} parent=0 // pred_region
    _
  $region13: #{block_forward.5} parent=0 // pred_fallthru
    _
  // Predicated region
  $region14: #{block_forward.5} parent=0 // pred_check
    _
  $region15: #{block_forward.5} parent=0 // pred_check_branch
    %16 = sbr.rel (0) target = $region17
  $region16: #{block_forward.5} parent=0 // pred_region
    _
  $region17: #{block_forward.5} parent=0 // pred_fallthru
    _
  %v18 = vld [vmem:[%s0] sm:$0xf]
  %v19 = vld [vmem:[%s0 + $0x4] sm:$0xf]
  %v20 = vld [vmem:[%s0 + $0x8] sm:$0xf]
  %v21 = vld [vmem:[%s0 + $0xc] sm:$0xf]
  %v22 = vld [vmem:[%s0 + $0x10] sm:$0xf]
  %v23 = vld [vmem:[%s0 + $0x14] sm:$0xf]
  %v24 = vld [vmem:[%s0 + $0x18] sm:$0xf]
  %v25 = vld [vmem:[%s0 + $0x1c] sm:$0xf]
  %v26 = vld [vmem:[%s0 + $0x20] sm:$0xf]
  %v27 = vld [vmem:[%s0 + $0x24] sm:$0xf]
  %v28 = vld [vmem:[%s0 + $0x28] sm:$0xf]
  %v29 = vld [vmem:[%s0 + $0x2c] sm:$0xf]
  %v30 = vld [vmem:[%s0 + $0x30] sm:$0xf]
  %v31 = vld [vmem:[%s0 + $0x34] sm:$0xf]
  %v32 = vld [vmem:[%s0 + $0x38] sm:$0xf]
  %v33 = vld [vmem:[%s0 + $0x3c] sm:$0xf]
  %v34 = vld [vmem:[%s0 + $0x40] sm:$0xf]
  %v35 = vld [vmem:[%s0 + $0x44] sm:$0xf]
  %v36 = vld [vmem:[%s0 + $0x48] sm:$0xf]
  %v37 = vld [vmem:[%s0 + $0x4c] sm:$0xf]
  %v38 = vld [vmem:[%s0 + $0x50] sm:$0xf]
  %v39 = vld [vmem:[%s0 + $0x54] sm:$0xf]
  %v40 = vld [vmem:[%s0 + $0x58] sm:$0xf]
  %v41 = vld [vmem:[%s0 + $0x5c] sm:$0xf]
  %v42 = vld [vmem:[%s0 + $0x60] sm:$0xf]
  %v43 = vld [vmem:[%s0 + $0x64] sm:$0xf]
  %v44 = vld [vmem:[%s0 + $0x68] sm:$0xf]
  %v45 = vld [vmem:[%s0 + $0x6c] sm:$0xf]
  %v46 = vld [vmem:[%s0 + $0x70] sm:$0xf]
  %v47 = vld [vmem:[%s0 + $0x74] sm:$0xf]
  %v48 = vld [vmem:[%s0 + $0x78] sm:$0xf]
  %v49 = vld [vmem:[%s0 + $0x7c] sm:$0xf]
  %v50 = vld [vmem:[%s0 + $0x80] sm:$0xf]
  %v51 = vld [vmem:[%s0 + $0x84] sm:$0xf]
  %v52 = vld [vmem:[%s0 + $0x88] sm:$0xf]
  %v53 = vld [vmem:[%s0 + $0x8c] sm:$0xf]
  %v54 = vld [vmem:[%s0 + $0x90] sm:$0xf]
  %v55 = vld [vmem:[%s0 + $0x94] sm:$0xf]
  %v56 = vld [vmem:[%s0 + $0x98] sm:$0xf]
  %v57 = vld [vmem:[%s0 + $0x9c] sm:$0xf]
  %v58 = vld [vmem:[%s0 + $0xa0] sm:$0xf]
  %v59 = vld [vmem:[%s0 + $0xa4] sm:$0xf]
  %v60 = vld [vmem:[%s0 + $0xa8] sm:$0xf]
  %v61 = vld [vmem:[%s0 + $0xac] sm:$0xf]
  %v62 = vld [vmem:[%s0 + $0xb0] sm:$0xf]
  %v63 = vld [vmem:[%s0 + $0xb4] sm:$0xf]
  %v64 = vld [vmem:[%s0 + $0xb8] sm:$0xf]
  %v65 = vld [vmem:[%s0 + $0xbc] sm:$0xf]
  %v66 = vld [vmem:[%s0 + $0xc0] sm:$0xf]
  %v67 = vld [vmem:[%s0 + $0xc4] sm:$0xf]
  %v68 = vld [vmem:[%s0 + $0xc8] sm:$0xf]
  %v69 = vld [vmem:[%s0 + $0xcc] sm:$0xf]
  %v70 = vld [vmem:[%s0 + $0xd0] sm:$0xf]
  %v71 = vld [vmem:[%s0 + $0xd4] sm:$0xf]
  %v72 = vld [vmem:[%s0 + $0xd8] sm:$0xf]
  %v73 = vld [vmem:[%s0 + $0xdc] sm:$0xf]
  %v74 = vld [vmem:[%s0 + $0xe0] sm:$0xf]
  %v75 = vld [vmem:[%s0 + $0xe4] sm:$0xf]
  %v76 = vld [vmem:[%s0 + $0xe8] sm:$0xf]
  %v77 = vld [vmem:[%s0 + $0xec] sm:$0xf]
  %v78 = vld [vmem:[%s0 + $0xf0] sm:$0xf]
  %v79 = vld [vmem:[%s0 + $0xf4] sm:$0xf]
  %v80 = vld [vmem:[%s0 + $0xf8] sm:$0xf]
  %v81 = vld [vmem:[%s0 + $0xfc] sm:$0xf]
  %v82 = vld [vmem:[%s1] sm:$0xf]
  %v83 = vld [vmem:[%s1 + $0x4] sm:$0xf]
  %v84 = vld [vmem:[%s1 + $0x8] sm:$0xf]
  %v85 = vld [vmem:[%s1 + $0xc] sm:$0xf]
  %v86 = vld [vmem:[%s1 + $0x10] sm:$0xf]
  %v87 = vld [vmem:[%s1 + $0x14] sm:$0xf]
  %v88 = vld [vmem:[%s1 + $0x18] sm:$0xf]
  %v89 = vld [vmem:[%s1 + $0x1c] sm:$0xf]
  %v90 = vld [vmem:[%s1 + $0x20] sm:$0xf]
  %v91 = vld [vmem:[%s1 + $0x24] sm:$0xf]
  %v92 = vld [vmem:[%s1 + $0x28] sm:$0xf]
  %v93 = vld [vmem:[%s1 + $0x2c] sm:$0xf]
  %v94 = vld [vmem:[%s2] sm:$0x1]
  %v96 = vlaneseq
  %v97 = vshrl.u32 %v96, 7
  %v98 = vsub.s32 0, %v97
  %v99 = vrot.slane %v94, %v98
  %v165 = vunpack.c.l.b16 %v18
  %v166 = vunpack.c.l.b16 %v19
  %v167 = vunpack.c.l.b16 %v20
  %v168 = vunpack.c.l.b16 %v21
  %v169 = vunpack.c.l.b16 %v22
  %v170 = vunpack.c.l.b16 %v23
  %v171 = vunpack.c.l.b16 %v24
  %v172 = vunpack.c.l.b16 %v25
  %v173 = vunpack.c.l.b16 %v26
  %v174 = vunpack.c.l.b16 %v27
  %v175 = vunpack.c.l.b16 %v28
  %v176 = vunpack.c.l.b16 %v29
  %v177 = vunpack.c.l.b16 %v30
  %v178 = vunpack.c.l.b16 %v31
  %v179 = vunpack.c.l.b16 %v32
  %v180 = vunpack.c.l.b16 %v33
  %v181 = vunpack.c.l.b16 %v34
  %v182 = vunpack.c.l.b16 %v35
  %v183 = vunpack.c.l.b16 %v36
  %v184 = vunpack.c.l.b16 %v37
  %v185 = vunpack.c.l.b16 %v38
  %v186 = vunpack.c.l.b16 %v39
  %v187 = vunpack.c.l.b16 %v40
  %v188 = vunpack.c.l.b16 %v41
  %v189 = vunpack.c.l.b16 %v42
  %v190 = vunpack.c.l.b16 %v43
  %v191 = vunpack.c.l.b16 %v44
  %v192 = vunpack.c.l.b16 %v45
  %v193 = vunpack.c.l.b16 %v46
  %v194 = vunpack.c.l.b16 %v47
  %v195 = vunpack.c.l.b16 %v48
  %v196 = vunpack.c.l.b16 %v49
  %v197 = vunpack.c.l.b16 %v50
  %v198 = vunpack.c.l.b16 %v51
  %v199 = vunpack.c.l.b16 %v52
  %v200 = vunpack.c.l.b16 %v53
  %v201 = vunpack.c.l.b16 %v54
  %v202 = vunpack.c.l.b16 %v55
  %v203 = vunpack.c.l.b16 %v56
  %v204 = vunpack.c.l.b16 %v57
  %v205 = vunpack.c.l.b16 %v58
  %v206 = vunpack.c.l.b16 %v59
  %v207 = vunpack.c.l.b16 %v60
  %v208 = vunpack.c.l.b16 %v61
  %v209 = vunpack.c.l.b16 %v62
  %v210 = vunpack.c.l.b16 %v63
  %v211 = vunpack.c.l.b16 %v64
  %v212 = vunpack.c.l.b16 %v65
  %v213 = vunpack.c.l.b16 %v66
  %v214 = vunpack.c.l.b16 %v67
  %v215 = vunpack.c.l.b16 %v68
  %v216 = vunpack.c.l.b16 %v69
  %v217 = vunpack.c.l.b16 %v70
  %v218 = vunpack.c.l.b16 %v71
  %v219 = vunpack.c.l.b16 %v72
  %v220 = vunpack.c.l.b16 %v73
  %v221 = vunpack.c.l.b16 %v74
  %v222 = vunpack.c.l.b16 %v75
  %v223 = vunpack.c.l.b16 %v76
  %v224 = vunpack.c.l.b16 %v77
  %v225 = vunpack.c.l.b16 %v78
  %v226 = vunpack.c.l.b16 %v79
  %v227 = vunpack.c.l.b16 %v80
  %v228 = vunpack.c.l.b16 %v81
  %v229 = vpack.c.b16 %v166, %v165
  %v230 = vpack.c.b16 %v168, %v167
  %v231 = vpack.c.b16 %v170, %v169
  %v232 = vpack.c.b16 %v172, %v171
  %v233 = vpack.c.b16 %v174, %v173
  %v234 = vpack.c.b16 %v176, %v175
  %v235 = vpack.c.b16 %v178, %v177
  %v236 = vpack.c.b16 %v180, %v179
  %v237 = vpack.c.b16 %v182, %v181
  %v238 = vpack.c.b16 %v184, %v183
  %v239 = vpack.c.b16 %v186, %v185
  %v240 = vpack.c.b16 %v188, %v187
  %v241 = vpack.c.b16 %v190, %v189
  %v242 = vpack.c.b16 %v192, %v191
  %v243 = vpack.c.b16 %v194, %v193
  %v244 = vpack.c.b16 %v196, %v195
  %v245 = vpack.c.b16 %v198, %v197
  %v246 = vpack.c.b16 %v200, %v199
  %v247 = vpack.c.b16 %v202, %v201
  %v248 = vpack.c.b16 %v204, %v203
  %v249 = vpack.c.b16 %v206, %v205
  %v250 = vpack.c.b16 %v208, %v207
  %v251 = vpack.c.b16 %v210, %v209
  %v252 = vpack.c.b16 %v212, %v211
  %v253 = vpack.c.b16 %v214, %v213
  %v254 = vpack.c.b16 %v216, %v215
  %v255 = vpack.c.b16 %v218, %v217
  %v256 = vpack.c.b16 %v220, %v219
  %v257 = vpack.c.b16 %v222, %v221
  %v258 = vpack.c.b16 %v224, %v223
  %v259 = vpack.c.b16 %v226, %v225
  %v260 = vpack.c.b16 %v228, %v227
  %v273 = vunpack.c.l.b16 %v82
  %v274 = vunpack.c.l.b16 %v83
  %v275 = vunpack.c.l.b16 %v84
  %v276 = vunpack.c.l.b16 %v85
  %v277 = vunpack.c.l.b16 %v86
  %v278 = vunpack.c.l.b16 %v87
  %v279 = vunpack.c.l.b16 %v88
  %v280 = vunpack.c.l.b16 %v89
  %v281 = vunpack.c.l.b16 %v90
  %v282 = vunpack.c.l.b16 %v91
  %v283 = vunpack.c.l.b16 %v92
  %v284 = vunpack.c.l.b16 %v93
  %v285 = vpack.c.b16 %v274, %v273
  %v286 = vpack.c.b16 %v276, %v275
  %v287 = vpack.c.b16 %v278, %v277
  %v288 = vpack.c.b16 %v280, %v279
  %v289 = vpack.c.b16 %v282, %v281
  %v290 = vpack.c.b16 %v284, %v283
  %vm297 = vcmask 785408
  %v299 = vsel %vm297, %v229, 0
  %v302 = vsel %vm297, %v230, 0
  %v305 = vsel %vm297, %v231, 0
  %v308 = vsel %vm297, %v232, 0
  %v311 = vsel %vm297, %v233, 0
  %v314 = vsel %vm297, %v234, 0
  %v317 = vsel %vm297, %v235, 0
  %v320 = vsel %vm297, %v236, 0
  %v323 = vsel %vm297, %v237, 0
  %v326 = vsel %vm297, %v238, 0
  %v329 = vsel %vm297, %v239, 0
  %v332 = vsel %vm297, %v240, 0
  %v335 = vsel %vm297, %v241, 0
  %v338 = vsel %vm297, %v242, 0
  %v341 = vsel %vm297, %v243, 0
  %v344 = vsel %vm297, %v244, 0
  %v347 = vsel %vm297, %v245, 0
  %v350 = vsel %vm297, %v246, 0
  %v353 = vsel %vm297, %v247, 0
  %v356 = vsel %vm297, %v248, 0
  %v359 = vsel %vm297, %v249, 0
  %v362 = vsel %vm297, %v250, 0
  %v365 = vsel %vm297, %v251, 0
  %v368 = vsel %vm297, %v252, 0
  %v371 = vsel %vm297, %v253, 0
  %v374 = vsel %vm297, %v254, 0
  %v377 = vsel %vm297, %v255, 0
  %v380 = vsel %vm297, %v256, 0
  %v383 = vsel %vm297, %v257, 0
  %v386 = vsel %vm297, %v258, 0
  %v389 = vsel %vm297, %v259, 0
  %v392 = vsel %vm297, %v260, 0
  %394 = vmatprep.subr.bf16.mxu0 0
  %395 = vmatpush1.bf16.msra.mxu0 0
  %396 = vmatprep.subr.bf16.mxu0 0
  %397 = vmatpush1.bf16.msra.mxu0 0
  %398 = vmatprep.subr.bf16.mxu0 0
  %399 = vmatpush1.bf16.msra.mxu0 %v290
  %400 = vmatprep.subr.bf16.mxu0 0
  %401 = vmatpush1.bf16.msra.mxu0 %v289
  %402 = vmatprep.subr.bf16.mxu0 0
  %403 = vmatpush1.bf16.msra.mxu0 %v288
  %404 = vmatprep.subr.bf16.mxu0 0
  %405 = vmatpush1.bf16.msra.mxu0 %v287
  %406 = vmatprep.subr.bf16.mxu0 0
  %407 = vmatpush1.bf16.msra.mxu0 %v286
  %408 = vmatprep.subr.bf16.mxu0 0
  %409 = vmatpush1.bf16.msra.mxu0 %v285
  %410 = vmatprep.subr.bf16.mxu0 0
  %411 = vmatpush2.bf16.msra.mxu0 0
  %412 = vmatprep.subr.bf16.mxu0 0
  %413 = vmatpush2.bf16.msra.mxu0 0
  %414 = vmatprep.subr.bf16.mxu0 0
  %415 = vmatpush2.bf16.msra.mxu0 0
  %416 = vmatprep.subr.bf16.mxu0 0
  %417 = vmatpush2.bf16.msra.mxu0 0
  %418 = vmatprep.subr.bf16.mxu0 0
  %419 = vmatpush2.bf16.msra.mxu0 0
  %420 = vmatprep.subr.bf16.mxu0 0
  %421 = vmatpush2.bf16.msra.mxu0 0
  %422 = vmatprep.subr.bf16.mxu0 0
  %423 = vmatpush2.bf16.msra.mxu0 0
  %424 = vmatprep.subr.bf16.mxu0 0
  %425 = vmatpush2.bf16.msra.mxu0 0
  %426 = vmatprep.mubr.bf16.mxu0 0
  %427 = vmatmul.mubr.bf16.gmra.mxu0 %v299
  %v428 = vpop.f32.mrf.mxu0
  %v429 = vadd.f32 %v99, %v428
  %v430 = vpop.f32.mrf.mxu0
  %v431 = vpop.f32.mrf.mxu0
  %v432 = vadd.f32 %v99, %v431
  %v433 = vpop.f32.mrf.mxu0
  %434 = vmatprep.mubr.bf16.mxu0 0
  %435 = vmatmul.mubr.bf16.gmra.mxu0 %v302
  %v436 = vpop.f32.mrf.mxu0
  %v437 = vadd.f32 %v99, %v436
  %v438 = vpop.f32.mrf.mxu0
  %v439 = vpop.f32.mrf.mxu0
  %v440 = vadd.f32 %v99, %v439
  %v441 = vpop.f32.mrf.mxu0
  %442 = vmatprep.mubr.bf16.mxu0 0
  %443 = vmatmul.mubr.bf16.gmra.mxu0 %v305
  %v444 = vpop.f32.mrf.mxu0
  %v445 = vadd.f32 %v99, %v444
  %v446 = vpop.f32.mrf.mxu0
  %v447 = vpop.f32.mrf.mxu0
  %v448 = vadd.f32 %v99, %v447
  %v449 = vpop.f32.mrf.mxu0
  %450 = vmatprep.mubr.bf16.mxu0 0
  %451 = vmatmul.mubr.bf16.gmra.mxu0 %v308
  %v452 = vpop.f32.mrf.mxu0
  %v453 = vadd.f32 %v99, %v452
  %v454 = vpop.f32.mrf.mxu0
  %v455 = vpop.f32.mrf.mxu0
  %v456 = vadd.f32 %v99, %v455
  %v457 = vpop.f32.mrf.mxu0
  %458 = vmatprep.mubr.bf16.mxu0 0
  %459 = vmatmul.mubr.bf16.gmra.mxu0 %v311
  %v460 = vpop.f32.mrf.mxu0
  %v461 = vadd.f32 %v99, %v460
  %v462 = vpop.f32.mrf.mxu0
  %v463 = vpop.f32.mrf.mxu0
  %v464 = vadd.f32 %v99, %v463
  %v465 = vpop.f32.mrf.mxu0
  %466 = vmatprep.mubr.bf16.mxu0 0
  %467 = vmatmul.mubr.bf16.gmra.mxu0 %v314
  %v468 = vpop.f32.mrf.mxu0
  %v469 = vadd.f32 %v99, %v468
  %v470 = vpop.f32.mrf.mxu0
  %v471 = vpop.f32.mrf.mxu0
  %v472 = vadd.f32 %v99, %v471
  %v473 = vpop.f32.mrf.mxu0
  %474 = vmatprep.mubr.bf16.mxu0 0
  %475 = vmatmul.mubr.bf16.gmra.mxu0 %v317
  %v476 = vpop.f32.mrf.mxu0
  %v477 = vadd.f32 %v99, %v476
  %v478 = vpop.f32.mrf.mxu0
  %v479 = vpop.f32.mrf.mxu0
  %v480 = vadd.f32 %v99, %v479
  %v481 = vpop.f32.mrf.mxu0
  %482 = vmatprep.mubr.bf16.mxu0 0
  %483 = vmatmul.mubr.bf16.gmra.mxu0 %v320
  %v484 = vpop.f32.mrf.mxu0
  %v485 = vadd.f32 %v99, %v484
  %v486 = vpop.f32.mrf.mxu0
  %v487 = vpop.f32.mrf.mxu0
  %v488 = vadd.f32 %v99, %v487
  %v489 = vpop.f32.mrf.mxu0
  %490 = vmatprep.mubr.bf16.mxu0 0
  %491 = vmatmul.mubr.bf16.gmra.mxu0 %v323
  %v492 = vpop.f32.mrf.mxu0
  %v493 = vadd.f32 %v99, %v492
  %v494 = vpop.f32.mrf.mxu0
  %v495 = vpop.f32.mrf.mxu0
  %v496 = vadd.f32 %v99, %v495
  %v497 = vpop.f32.mrf.mxu0
  %498 = vmatprep.mubr.bf16.mxu0 0
  %499 = vmatmul.mubr.bf16.gmra.mxu0 %v326
  %v500 = vpop.f32.mrf.mxu0
  %v501 = vadd.f32 %v99, %v500
  %v502 = vpop.f32.mrf.mxu0
  %v503 = vpop.f32.mrf.mxu0
  %v504 = vadd.f32 %v99, %v503
  %v505 = vpop.f32.mrf.mxu0
  %506 = vmatprep.mubr.bf16.mxu0 0
  %507 = vmatmul.mubr.bf16.gmra.mxu0 %v329
  %v508 = vpop.f32.mrf.mxu0
  %v509 = vadd.f32 %v99, %v508
  %v510 = vpop.f32.mrf.mxu0
  %v511 = vpop.f32.mrf.mxu0
  %v512 = vadd.f32 %v99, %v511
  %v513 = vpop.f32.mrf.mxu0
  %514 = vmatprep.mubr.bf16.mxu0 0
  %515 = vmatmul.mubr.bf16.gmra.mxu0 %v332
  %v516 = vpop.f32.mrf.mxu0
  %v517 = vadd.f32 %v99, %v516
  %v518 = vpop.f32.mrf.mxu0
  %v519 = vpop.f32.mrf.mxu0
  %v520 = vadd.f32 %v99, %v519
  %v521 = vpop.f32.mrf.mxu0
  %522 = vmatprep.mubr.bf16.mxu0 0
  %523 = vmatmul.mubr.bf16.gmra.mxu0 %v335
  %v524 = vpop.f32.mrf.mxu0
  %v525 = vadd.f32 %v99, %v524
  %v526 = vpop.f32.mrf.mxu0
  %v527 = vpop.f32.mrf.mxu0
  %v528 = vadd.f32 %v99, %v527
  %v529 = vpop.f32.mrf.mxu0
  %530 = vmatprep.mubr.bf16.mxu0 0
  %531 = vmatmul.mubr.bf16.gmra.mxu0 %v338
  %v532 = vpop.f32.mrf.mxu0
  %v533 = vadd.f32 %v99, %v532
  %v534 = vpop.f32.mrf.mxu0
  %v535 = vpop.f32.mrf.mxu0
  %v536 = vadd.f32 %v99, %v535
  %v537 = vpop.f32.mrf.mxu0
  %538 = vmatprep.mubr.bf16.mxu0 0
  %539 = vmatmul.mubr.bf16.gmra.mxu0 %v341
  %v540 = vpop.f32.mrf.mxu0
  %v541 = vadd.f32 %v99, %v540
  %v542 = vpop.f32.mrf.mxu0
  %v543 = vpop.f32.mrf.mxu0
  %v544 = vadd.f32 %v99, %v543
  %v545 = vpop.f32.mrf.mxu0
  %546 = vmatprep.mubr.bf16.mxu0 0
  %547 = vmatmul.mubr.bf16.gmra.mxu0 %v344
  %v548 = vpop.f32.mrf.mxu0
  %v549 = vadd.f32 %v99, %v548
  %v550 = vpop.f32.mrf.mxu0
  %v551 = vpop.f32.mrf.mxu0
  %v552 = vadd.f32 %v99, %v551
  %v553 = vpop.f32.mrf.mxu0
  %554 = vmatprep.mubr.bf16.mxu0 0
  %555 = vmatmul.mubr.bf16.gmra.mxu0 %v347
  %v556 = vpop.f32.mrf.mxu0
  %v557 = vadd.f32 %v99, %v556
  %v558 = vpop.f32.mrf.mxu0
  %v559 = vpop.f32.mrf.mxu0
  %v560 = vadd.f32 %v99, %v559
  %v561 = vpop.f32.mrf.mxu0
  %562 = vmatprep.mubr.bf16.mxu0 0
  %563 = vmatmul.mubr.bf16.gmra.mxu0 %v350
  %v564 = vpop.f32.mrf.mxu0
  %v565 = vadd.f32 %v99, %v564
  %v566 = vpop.f32.mrf.mxu0
  %v567 = vpop.f32.mrf.mxu0
  %v568 = vadd.f32 %v99, %v567
  %v569 = vpop.f32.mrf.mxu0
  %570 = vmatprep.mubr.bf16.mxu0 0
  %571 = vmatmul.mubr.bf16.gmra.mxu0 %v353
  %v572 = vpop.f32.mrf.mxu0
  %v573 = vadd.f32 %v99, %v572
  %v574 = vpop.f32.mrf.mxu0
  %v575 = vpop.f32.mrf.mxu0
  %v576 = vadd.f32 %v99, %v575
  %v577 = vpop.f32.mrf.mxu0
  %578 = vmatprep.mubr.bf16.mxu0 0
  %579 = vmatmul.mubr.bf16.gmra.mxu0 %v356
  %v580 = vpop.f32.mrf.mxu0
  %v581 = vadd.f32 %v99, %v580
  %v582 = vpop.f32.mrf.mxu0
  %v583 = vpop.f32.mrf.mxu0
  %v584 = vadd.f32 %v99, %v583
  %v585 = vpop.f32.mrf.mxu0
  %586 = vmatprep.mubr.bf16.mxu0 0
  %587 = vmatmul.mubr.bf16.gmra.mxu0 %v359
  %v588 = vpop.f32.mrf.mxu0
  %v589 = vadd.f32 %v99, %v588
  %v590 = vpop.f32.mrf.mxu0
  %v591 = vpop.f32.mrf.mxu0
  %v592 = vadd.f32 %v99, %v591
  %v593 = vpop.f32.mrf.mxu0
  %594 = vmatprep.mubr.bf16.mxu0 0
  %595 = vmatmul.mubr.bf16.gmra.mxu0 %v362
  %v596 = vpop.f32.mrf.mxu0
  %v597 = vadd.f32 %v99, %v596
  %v598 = vpop.f32.mrf.mxu0
  %v599 = vpop.f32.mrf.mxu0
  %v600 = vadd.f32 %v99, %v599
  %v601 = vpop.f32.mrf.mxu0
  %602 = vmatprep.mubr.bf16.mxu0 0
  %603 = vmatmul.mubr.bf16.gmra.mxu0 %v365
  %v604 = vpop.f32.mrf.mxu0
  %v605 = vadd.f32 %v99, %v604
  %v606 = vpop.f32.mrf.mxu0
  %v607 = vpop.f32.mrf.mxu0
  %v608 = vadd.f32 %v99, %v607
  %v609 = vpop.f32.mrf.mxu0
  %610 = vmatprep.mubr.bf16.mxu0 0
  %611 = vmatmul.mubr.bf16.gmra.mxu0 %v368
  %v612 = vpop.f32.mrf.mxu0
  %v613 = vadd.f32 %v99, %v612
  %v614 = vpop.f32.mrf.mxu0
  %v615 = vpop.f32.mrf.mxu0
  %v616 = vadd.f32 %v99, %v615
  %v617 = vpop.f32.mrf.mxu0
  %618 = vmatprep.mubr.bf16.mxu0 0
  %619 = vmatmul.mubr.bf16.gmra.mxu0 %v371
  %v620 = vpop.f32.mrf.mxu0
  %v621 = vadd.f32 %v99, %v620
  %v622 = vpop.f32.mrf.mxu0
  %v623 = vpop.f32.mrf.mxu0
  %v624 = vadd.f32 %v99, %v623
  %v625 = vpop.f32.mrf.mxu0
  %626 = vmatprep.mubr.bf16.mxu0 0
  %627 = vmatmul.mubr.bf16.gmra.mxu0 %v374
  %v628 = vpop.f32.mrf.mxu0
  %v629 = vadd.f32 %v99, %v628
  %v630 = vpop.f32.mrf.mxu0
  %v631 = vpop.f32.mrf.mxu0
  %v632 = vadd.f32 %v99, %v631
  %v633 = vpop.f32.mrf.mxu0
  %634 = vmatprep.mubr.bf16.mxu0 0
  %635 = vmatmul.mubr.bf16.gmra.mxu0 %v377
  %v636 = vpop.f32.mrf.mxu0
  %v637 = vadd.f32 %v99, %v636
  %v638 = vpop.f32.mrf.mxu0
  %v639 = vpop.f32.mrf.mxu0
  %v640 = vadd.f32 %v99, %v639
  %v641 = vpop.f32.mrf.mxu0
  %642 = vmatprep.mubr.bf16.mxu0 0
  %643 = vmatmul.mubr.bf16.gmra.mxu0 %v380
  %v644 = vpop.f32.mrf.mxu0
  %v645 = vadd.f32 %v99, %v644
  %v646 = vpop.f32.mrf.mxu0
  %v647 = vpop.f32.mrf.mxu0
  %v648 = vadd.f32 %v99, %v647
  %v649 = vpop.f32.mrf.mxu0
  %650 = vmatprep.mubr.bf16.mxu0 0
  %651 = vmatmul.mubr.bf16.gmra.mxu0 %v383
  %v652 = vpop.f32.mrf.mxu0
  %v653 = vadd.f32 %v99, %v652
  %v654 = vpop.f32.mrf.mxu0
  %v655 = vpop.f32.mrf.mxu0
  %v656 = vadd.f32 %v99, %v655
  %v657 = vpop.f32.mrf.mxu0
  %658 = vmatprep.mubr.bf16.mxu0 0
  %659 = vmatmul.mubr.bf16.gmra.mxu0 %v386
  %v660 = vpop.f32.mrf.mxu0
  %v661 = vadd.f32 %v99, %v660
  %v662 = vpop.f32.mrf.mxu0
  %v663 = vpop.f32.mrf.mxu0
  %v664 = vadd.f32 %v99, %v663
  %v665 = vpop.f32.mrf.mxu0
  %666 = vmatprep.mubr.bf16.mxu0 0
  %667 = vmatmul.mubr.bf16.gmra.mxu0 %v389
  %v668 = vpop.f32.mrf.mxu0
  %v669 = vadd.f32 %v99, %v668
  %v670 = vpop.f32.mrf.mxu0
  %v671 = vpop.f32.mrf.mxu0
  %v672 = vadd.f32 %v99, %v671
  %v673 = vpop.f32.mrf.mxu0
  %674 = vmatprep.mubr.bf16.mxu0 0
  %675 = vmatmul.mubr.bf16.gmra.mxu0 %v392
  %v676 = vpop.f32.mrf.mxu0
  %v677 = vadd.f32 %v99, %v676
  %v678 = vpop.f32.mrf.mxu0
  %v679 = vpop.f32.mrf.mxu0
  %v680 = vadd.f32 %v99, %v679
  %v681 = vpop.f32.mrf.mxu0
  %682 = vdwg.mxu0
  %v683 = vld [vmem:[%s3] sm:$0xf]
  %v684 = vld [vmem:[%s3 + $0x4] sm:$0xf]
  %v685 = vld [vmem:[%s3 + $0x8] sm:$0xf]
  %v686 = vld [vmem:[%s3 + $0xc] sm:$0xf]
  %v687 = vld [vmem:[%s3 + $0x10] sm:$0xf]
  %v688 = vld [vmem:[%s3 + $0x14] sm:$0xf]
  %v689 = vld [vmem:[%s3 + $0x18] sm:$0xf]
  %v690 = vld [vmem:[%s3 + $0x1c] sm:$0xf]
  %v691 = vld [vmem:[%s3 + $0x20] sm:$0xf]
  %v692 = vld [vmem:[%s3 + $0x24] sm:$0xf]
  %v693 = vld [vmem:[%s3 + $0x28] sm:$0xf]
  %v694 = vld [vmem:[%s3 + $0x2c] sm:$0xf]
  %v695 = vld [vmem:[%s3 + $0x30] sm:$0xf]
  %v696 = vld [vmem:[%s3 + $0x34] sm:$0xf]
  %v697 = vld [vmem:[%s3 + $0x38] sm:$0xf]
  %v698 = vld [vmem:[%s3 + $0x3c] sm:$0xf]
  %v699 = vld [vmem:[%s3 + $0x40] sm:$0xf]
  %v700 = vld [vmem:[%s3 + $0x44] sm:$0xf]
  %v701 = vld [vmem:[%s3 + $0x48] sm:$0xf]
  %v702 = vld [vmem:[%s3 + $0x4c] sm:$0xf]
  %v703 = vld [vmem:[%s3 + $0x50] sm:$0xf]
  %v704 = vld [vmem:[%s3 + $0x54] sm:$0xf]
  %v705 = vld [vmem:[%s3 + $0x58] sm:$0xf]
  %v706 = vld [vmem:[%s3 + $0x5c] sm:$0xf]
  %v707 = vld [vmem:[%s3 + $0x60] sm:$0xf]
  %v708 = vld [vmem:[%s3 + $0x64] sm:$0xf]
  %v709 = vld [vmem:[%s3 + $0x68] sm:$0xf]
  %v710 = vld [vmem:[%s3 + $0x6c] sm:$0xf]
  %v711 = vld [vmem:[%s3 + $0x70] sm:$0xf]
  %v712 = vld [vmem:[%s3 + $0x74] sm:$0xf]
  %v713 = vld [vmem:[%s3 + $0x78] sm:$0xf]
  %v714 = vld [vmem:[%s3 + $0x7c] sm:$0xf]
  %v715 = vld [vmem:[%s3 + $0x80] sm:$0xf]
  %v716 = vld [vmem:[%s3 + $0x84] sm:$0xf]
  %v717 = vld [vmem:[%s3 + $0x88] sm:$0xf]
  %v718 = vld [vmem:[%s3 + $0x8c] sm:$0xf]
  %v719 = vld [vmem:[%s3 + $0x90] sm:$0xf]
  %v720 = vld [vmem:[%s3 + $0x94] sm:$0xf]
  %v721 = vld [vmem:[%s3 + $0x98] sm:$0xf]
  %v722 = vld [vmem:[%s3 + $0x9c] sm:$0xf]
  %v723 = vld [vmem:[%s3 + $0xa0] sm:$0xf]
  %v724 = vld [vmem:[%s3 + $0xa4] sm:$0xf]
  %v725 = vld [vmem:[%s3 + $0xa8] sm:$0xf]
  %v726 = vld [vmem:[%s3 + $0xac] sm:$0xf]
  %v727 = vld [vmem:[%s3 + $0xb0] sm:$0xf]
  %v728 = vld [vmem:[%s3 + $0xb4] sm:$0xf]
  %v729 = vld [vmem:[%s3 + $0xb8] sm:$0xf]
  %v730 = vld [vmem:[%s3 + $0xbc] sm:$0xf]
  %v731 = vld [vmem:[%s3 + $0xc0] sm:$0xf]
  %v732 = vld [vmem:[%s3 + $0xc4] sm:$0xf]
  %v733 = vld [vmem:[%s3 + $0xc8] sm:$0xf]
  %v734 = vld [vmem:[%s3 + $0xcc] sm:$0xf]
  %v735 = vld [vmem:[%s3 + $0xd0] sm:$0xf]
  %v736 = vld [vmem:[%s3 + $0xd4] sm:$0xf]
  %v737 = vld [vmem:[%s3 + $0xd8] sm:$0xf]
  %v738 = vld [vmem:[%s3 + $0xdc] sm:$0xf]
  %v739 = vld [vmem:[%s3 + $0xe0] sm:$0xf]
  %v740 = vld [vmem:[%s3 + $0xe4] sm:$0xf]
  %v741 = vld [vmem:[%s3 + $0xe8] sm:$0xf]
  %v742 = vld [vmem:[%s3 + $0xec] sm:$0xf]
  %v743 = vld [vmem:[%s3 + $0xf0] sm:$0xf]
  %v744 = vld [vmem:[%s3 + $0xf4] sm:$0xf]
  %v745 = vld [vmem:[%s3 + $0xf8] sm:$0xf]
  %v746 = vld [vmem:[%s3 + $0xfc] sm:$0xf]
  %v747 = vunpack.c.l.bf16 %v683
  %v748 = vunpack.c.l.bf16 %v684
  %v749 = vunpack.c.l.bf16 %v685
  %v750 = vunpack.c.l.bf16 %v686
  %v751 = vunpack.c.l.bf16 %v687
  %v752 = vunpack.c.l.bf16 %v688
  %v753 = vunpack.c.l.bf16 %v689
  %v754 = vunpack.c.l.bf16 %v690
  %v755 = vunpack.c.l.bf16 %v691
  %v756 = vunpack.c.l.bf16 %v692
  %v757 = vunpack.c.l.bf16 %v693
  %v758 = vunpack.c.l.bf16 %v694
  %v759 = vunpack.c.l.bf16 %v695
  %v760 = vunpack.c.l.bf16 %v696
  %v761 = vunpack.c.l.bf16 %v697
  %v762 = vunpack.c.l.bf16 %v698
  %v763 = vunpack.c.l.bf16 %v699
  %v764 = vunpack.c.l.bf16 %v700
  %v765 = vunpack.c.l.bf16 %v701
  %v766 = vunpack.c.l.bf16 %v702
  %v767 = vunpack.c.l.bf16 %v703
  %v768 = vunpack.c.l.bf16 %v704
  %v769 = vunpack.c.l.bf16 %v705
  %v770 = vunpack.c.l.bf16 %v706
  %v771 = vunpack.c.l.bf16 %v707
  %v772 = vunpack.c.l.bf16 %v708
  %v773 = vunpack.c.l.bf16 %v709
  %v774 = vunpack.c.l.bf16 %v710
  %v775 = vunpack.c.l.bf16 %v711
  %v776 = vunpack.c.l.bf16 %v712
  %v777 = vunpack.c.l.bf16 %v713
  %v778 = vunpack.c.l.bf16 %v714
  %v779 = vunpack.c.l.bf16 %v715
  %v780 = vunpack.c.l.bf16 %v716
  %v781 = vunpack.c.l.bf16 %v717
  %v782 = vunpack.c.l.bf16 %v718
  %v783 = vunpack.c.l.bf16 %v719
  %v784 = vunpack.c.l.bf16 %v720
  %v785 = vunpack.c.l.bf16 %v721
  %v786 = vunpack.c.l.bf16 %v722
  %v787 = vunpack.c.l.bf16 %v723
  %v788 = vunpack.c.l.bf16 %v724
  %v789 = vunpack.c.l.bf16 %v725
  %v790 = vunpack.c.l.bf16 %v726
  %v791 = vunpack.c.l.bf16 %v727
  %v792 = vunpack.c.l.bf16 %v728
  %v793 = vunpack.c.l.bf16 %v729
  %v794 = vunpack.c.l.bf16 %v730
  %v795 = vunpack.c.l.bf16 %v731
  %v796 = vunpack.c.l.bf16 %v732
  %v797 = vunpack.c.l.bf16 %v733
  %v798 = vunpack.c.l.bf16 %v734
  %v799 = vunpack.c.l.bf16 %v735
  %v800 = vunpack.c.l.bf16 %v736
  %v801 = vunpack.c.l.bf16 %v737
  %v802 = vunpack.c.l.bf16 %v738
  %v803 = vunpack.c.l.bf16 %v739
  %v804 = vunpack.c.l.bf16 %v740
  %v805 = vunpack.c.l.bf16 %v741
  %v806 = vunpack.c.l.bf16 %v742
  %v807 = vunpack.c.l.bf16 %v743
  %v808 = vunpack.c.l.bf16 %v744
  %v809 = vunpack.c.l.bf16 %v745
  %v810 = vunpack.c.l.bf16 %v746
  %v811 = vadd.f32 %v429, %v747
  %v812 = vadd.f32 %v432, %v748
  %v813 = vadd.f32 %v437, %v749
  %v814 = vadd.f32 %v440, %v750
  %v815 = vadd.f32 %v445, %v751
  %v816 = vadd.f32 %v448, %v752
  %v817 = vadd.f32 %v453, %v753
  %v818 = vadd.f32 %v456, %v754
  %v819 = vadd.f32 %v461, %v755
  %v820 = vadd.f32 %v464, %v756
  %v821 = vadd.f32 %v469, %v757
  %v822 = vadd.f32 %v472, %v758
  %v823 = vadd.f32 %v477, %v759
  %v824 = vadd.f32 %v480, %v760
  %v825 = vadd.f32 %v485, %v761
  %v826 = vadd.f32 %v488, %v762
  %v827 = vadd.f32 %v493, %v763
  %v828 = vadd.f32 %v496, %v764
  %v829 = vadd.f32 %v501, %v765
  %v830 = vadd.f32 %v504, %v766
  %v831 = vadd.f32 %v509, %v767
  %v832 = vadd.f32 %v512, %v768
  %v833 = vadd.f32 %v517, %v769
  %v834 = vadd.f32 %v520, %v770
  %v835 = vadd.f32 %v525, %v771
  %v836 = vadd.f32 %v528, %v772
  %v837 = vadd.f32 %v533, %v773
  %v838 = vadd.f32 %v536, %v774
  %v839 = vadd.f32 %v541, %v775
  %v840 = vadd.f32 %v544, %v776
  %v841 = vadd.f32 %v549, %v777
  %v842 = vadd.f32 %v552, %v778
  %v843 = vadd.f32 %v557, %v779
  %v844 = vadd.f32 %v560, %v780
  %v845 = vadd.f32 %v565, %v781
  %v846 = vadd.f32 %v568, %v782
  %v847 = vadd.f32 %v573, %v783
  %v848 = vadd.f32 %v576, %v784
  %v849 = vadd.f32 %v581, %v785
  %v850 = vadd.f32 %v584, %v786
  %v851 = vadd.f32 %v589, %v787
  %v852 = vadd.f32 %v592, %v788
  %v853 = vadd.f32 %v597, %v789
  %v854 = vadd.f32 %v600, %v790
  %v855 = vadd.f32 %v605, %v791
  %v856 = vadd.f32 %v608, %v792
  %v857 = vadd.f32 %v613, %v793
  %v858 = vadd.f32 %v616, %v794
  %v859 = vadd.f32 %v621, %v795
  %v860 = vadd.f32 %v624, %v796
  %v861 = vadd.f32 %v629, %v797
  %v862 = vadd.f32 %v632, %v798
  %v863 = vadd.f32 %v637, %v799
  %v864 = vadd.f32 %v640, %v800
  %v865 = vadd.f32 %v645, %v801
  %v866 = vadd.f32 %v648, %v802
  %v867 = vadd.f32 %v653, %v803
  %v868 = vadd.f32 %v656, %v804
  %v869 = vadd.f32 %v661, %v805
  %v870 = vadd.f32 %v664, %v806
  %v871 = vadd.f32 %v669, %v807
  %v872 = vadd.f32 %v672, %v808
  %v873 = vadd.f32 %v677, %v809
  %v874 = vadd.f32 %v680, %v810
  %vm875 = vcmask 130048
  %876 = vst.msk [vmem:[%s4] sm:$0xff] %vm875, %v811
  %877 = vst.msk [vmem:[%s4 + $0x8] sm:$0xff] %vm875, %v812
  %878 = vst.msk [vmem:[%s4 + $0x10] sm:$0xff] %vm875, %v813
  %879 = vst.msk [vmem:[%s4 + $0x18] sm:$0xff] %vm875, %v814
  %880 = vst.msk [vmem:[%s4 + $0x20] sm:$0xff] %vm875, %v815
  %881 = vst.msk [vmem:[%s4 + $0x28] sm:$0xff] %vm875, %v816
  %882 = vst.msk [vmem:[%s4 + $0x30] sm:$0xff] %vm875, %v817
  %883 = vst.msk [vmem:[%s4 + $0x38] sm:$0xff] %vm875, %v818
  %884 = vst.msk [vmem:[%s4 + $0x40] sm:$0xff] %vm875, %v819
  %885 = vst.msk [vmem:[%s4 + $0x48] sm:$0xff] %vm875, %v820
  %886 = vst.msk [vmem:[%s4 + $0x50] sm:$0xff] %vm875, %v821
  %887 = vst.msk [vmem:[%s4 + $0x58] sm:$0xff] %vm875, %v822
  %888 = vst.msk [vmem:[%s4 + $0x60] sm:$0xff] %vm875, %v823
  %889 = vst.msk [vmem:[%s4 + $0x68] sm:$0xff] %vm875, %v824
  %890 = vst.msk [vmem:[%s4 + $0x70] sm:$0xff] %vm875, %v825
  %891 = vst.msk [vmem:[%s4 + $0x78] sm:$0xff] %vm875, %v826
  %892 = vst.msk [vmem:[%s4 + $0x80] sm:$0xff] %vm875, %v827
  %893 = vst.msk [vmem:[%s4 + $0x88] sm:$0xff] %vm875, %v828
  %894 = vst.msk [vmem:[%s4 + $0x90] sm:$0xff] %vm875, %v829
  %895 = vst.msk [vmem:[%s4 + $0x98] sm:$0xff] %vm875, %v830
  %896 = vst.msk [vmem:[%s4 + $0xa0] sm:$0xff] %vm875, %v831
  %897 = vst.msk [vmem:[%s4 + $0xa8] sm:$0xff] %vm875, %v832
  %898 = vst.msk [vmem:[%s4 + $0xb0] sm:$0xff] %vm875, %v833
  %899 = vst.msk [vmem:[%s4 + $0xb8] sm:$0xff] %vm875, %v834
  %900 = vst.msk [vmem:[%s4 + $0xc0] sm:$0xff] %vm875, %v835
  %901 = vst.msk [vmem:[%s4 + $0xc8] sm:$0xff] %vm875, %v836
  %902 = vst.msk [vmem:[%s4 + $0xd0] sm:$0xff] %vm875, %v837
  %903 = vst.msk [vmem:[%s4 + $0xd8] sm:$0xff] %vm875, %v838
  %904 = vst.msk [vmem:[%s4 + $0xe0] sm:$0xff] %vm875, %v839
  %905 = vst.msk [vmem:[%s4 + $0xe8] sm:$0xff] %vm875, %v840
  %906 = vst.msk [vmem:[%s4 + $0xf0] sm:$0xff] %vm875, %v841
  %907 = vst.msk [vmem:[%s4 + $0xf8] sm:$0xff] %vm875, %v842
  %908 = vst.msk [vmem:[%s4 + $0x100] sm:$0xff] %vm875, %v843
  %909 = vst.msk [vmem:[%s4 + $0x108] sm:$0xff] %vm875, %v844
  %910 = vst.msk [vmem:[%s4 + $0x110] sm:$0xff] %vm875, %v845
  %911 = vst.msk [vmem:[%s4 + $0x118] sm:$0xff] %vm875, %v846
  %912 = vst.msk [vmem:[%s4 + $0x120] sm:$0xff] %vm875, %v847
  %913 = vst.msk [vmem:[%s4 + $0x128] sm:$0xff] %vm875, %v848
  %914 = vst.msk [vmem:[%s4 + $0x130] sm:$0xff] %vm875, %v849
  %915 = vst.msk [vmem:[%s4 + $0x138] sm:$0xff] %vm875, %v850
  %916 = vst.msk [vmem:[%s4 + $0x140] sm:$0xff] %vm875, %v851
  %917 = vst.msk [vmem:[%s4 + $0x148] sm:$0xff] %vm875, %v852
  %918 = vst.msk [vmem:[%s4 + $0x150] sm:$0xff] %vm875, %v853
  %919 = vst.msk [vmem:[%s4 + $0x158] sm:$0xff] %vm875, %v854
  %920 = vst.msk [vmem:[%s4 + $0x160] sm:$0xff] %vm875, %v855
  %921 = vst.msk [vmem:[%s4 + $0x168] sm:$0xff] %vm875, %v856
  %922 = vst.msk [vmem:[%s4 + $0x170] sm:$0xff] %vm875, %v857
  %923 = vst.msk [vmem:[%s4 + $0x178] sm:$0xff] %vm875, %v858
  %924 = vst.msk [vmem:[%s4 + $0x180] sm:$0xff] %vm875, %v859
  %925 = vst.msk [vmem:[%s4 + $0x188] sm:$0xff] %vm875, %v860
  %926 = vst.msk [vmem:[%s4 + $0x190] sm:$0xff] %vm875, %v861
  %927 = vst.msk [vmem:[%s4 + $0x198] sm:$0xff] %vm875, %v862
  %928 = vst.msk [vmem:[%s4 + $0x1a0] sm:$0xff] %vm875, %v863
  %929 = vst.msk [vmem:[%s4 + $0x1a8] sm:$0xff] %vm875, %v864
  %930 = vst.msk [vmem:[%s4 + $0x1b0] sm:$0xff] %vm875, %v865
  %931 = vst.msk [vmem:[%s4 + $0x1b8] sm:$0xff] %vm875, %v866
  %932 = vst.msk [vmem:[%s4 + $0x1c0] sm:$0xff] %vm875, %v867
  %933 = vst.msk [vmem:[%s4 + $0x1c8] sm:$0xff] %vm875, %v868
  %934 = vst.msk [vmem:[%s4 + $0x1d0] sm:$0xff] %vm875, %v869
  %935 = vst.msk [vmem:[%s4 + $0x1d8] sm:$0xff] %vm875, %v870
  %936 = vst.msk [vmem:[%s4 + $0x1e0] sm:$0xff] %vm875, %v871
  %937 = vst.msk [vmem:[%s4 + $0x1e8] sm:$0xff] %vm875, %v872
  %938 = vst.msk [vmem:[%s4 + $0x1f0] sm:$0xff] %vm875, %v873
  %939 = vst.msk [vmem:[%s4 + $0x1f8] sm:$0xff] %vm875, %v874
  // Predicated region
  $region18: #{block_forward.5} parent=0 // pred_check
    _
  $region19: #{block_forward.5} parent=0 // pred_check_branch
    %941 = sbr.rel (0) target = $region21
  $region20: #{block_forward.5} parent=0 // pred_region
    _
  $region21: #{block_forward.5} parent=0 // pred_fallthru
    _
  // Predicated region
  $region22: #{block_forward.5} parent=0 // pred_check
    _
  $region23: #{block_forward.5} parent=0 // pred_check_branch
    %943 = sbr.rel (0) target = $region25
  $region24: #{block_forward.5} parent=0 // pred_region
    _
  $region25: #{block_forward.5} parent=0 // pred_fallthru
    _

// kernel: block_forward.4
$region0: #{block_forward.4}
  #allocation0 [shape = 'u32[]', space=smem, size = 0x4, offset = 0x4, fixed_abs, tag = 'smem constant byte address 0x4 - core index']
  #allocation1 [shape = 'u32[144,128]{1,0:T(1,128)}', space=vmem, size = 0x12000, scoped, tag = 'internal scratch']
  %s0 = inlined_call_operand.vmem [shape: bf16[2,18,18,96], index: 0, kind: input, shape index: {}]
  %s1 = inlined_call_operand.vmem [shape: f32[3,3,96], index: 1, kind: input, shape index: {}]
  %s2 = inlined_call_operand.vmem [shape: f32[1,1,96], index: 2, kind: input, shape index: {}]
  %s3 = inlined_call_operand.vmem [shape: bf16[2,16,16,96], index: 3, kind: output, shape index: {}]
  %s4 = sld [smem:[#allocation0]]
  $region45: #{block_forward.4} parent=0
    _
  %s6 = ssub.s32 1, %s4
  %s7 = scalar_select 0, %s6, %s4
  loop: start=0, step=1, limit=4
  $region2: #{block_forward.4} parent=0 // loop_pre_header
    _
  $region3: #{block_forward.4} parent=0 // loop_header
    %s9 = sphi 0, %s13
    %p10 = scmp.ge.s32.totalorder %s9, 4
    %s16 = sphi 0, %s28
    %s17 = sphi 0, %s24
    %s18 = sphi 0, %s16
    %s19 = sphi 0, %s17
    %s20 = sphi 0, %s18
    %s21 = sphi 0, %s19
    %s33 = sphi 0, %s35
    %s36 = sphi 0, %s33
    %s37 = sphi 0, %s36
    %s53 = sphi 0, %s37
    %s59 = sphi 0, %s61
    %s62 = sphi 0, %s59
    %s63 = sphi 0, %s62
    %s79 = sphi 0, %s63
    %s85 = sphi 0, %s87
    %s88 = sphi 0, %s85
    %s89 = sphi 0, %s88
    %s105 = sphi 0, %s89
    %s113 = sphi 0, %s115
    %s116 = sphi 0, %s113
    %s117 = sphi 0, %s116
    %s133 = sphi 0, %s117
  $region4: #{block_forward.4} parent=0 // loop_header_branch
    %12 = sbr.rel (%p10) target = $region8
  $region5: #{block_forward.4} parent=0 // loop_body
    %s14 = ssub.s32 %s9, 1
    %s15 = ssub.s32 %s9, 2
    %s22 = sadd.s32 1, %s17
    %p23 = scmp.ge.s32.totalorder %s22, 1
    %s24 = scalar_select %p23, 0, %s22
    %s25 = sadd.s32 1, %s16
    %s26 = scalar_select %p23, %s25, %s16
    %p27 = scmp.ge.s32.totalorder %s26, 2
    %s28 = scalar_select %p27, 0, %s26
    %s29 = ssub.s32 %s16, %s28
    %s30 = ssub.s32 %s17, %s24
    %s31 = sor.u32 %s29, %s30
    %p32 = scmp.eq.s32.totalorder %s31, 0
    %s34 = sadd.s32 %s33, 1
    %s35 = scalar_select %p32, %s33, %s34
    %p38 = pneg %p32
    %p39 = scmp.eq.s32.totalorder %s9, 1
    %p40 = por %p38, %p39
    %p41 = scmp.ne.s32.totalorder %s33, %s36
    %p42 = scmp.eq.s32.totalorder %s9, 0
    %p43 = por %p41, %p42
    %p44 = scmp.ne.s32.totalorder %s33, %s36
    %p45 = scmp.eq.s32.totalorder %s14, 1
    %p46 = por %p44, %p45
    %p47 = scmp.ne.s32.totalorder %s36, %s37
    %p48 = scmp.eq.s32.totalorder %s14, 0
    %p49 = por %p47, %p48
    %p50 = scmp.ne.s32.totalorder %s36, %s37
    %p51 = scmp.eq.s32.totalorder %s15, 1
    %p52 = por %p50, %p51
    %p54 = scmp.ne.s32.totalorder %s37, %s53
    %p55 = scmp.eq.s32.totalorder %s15, 0
    %p56 = por %p54, %p55
    %s57 = ssub.s32 %s17, %s24
    %p58 = scmp.eq.s32.totalorder %s57, 0
    %s60 = sadd.s32 %s59, 1
    %s61 = scalar_select %p58, %s59, %s60
    %p64 = pneg %p58
    %p65 = scmp.eq.s32.totalorder %s9, 1
    %p66 = por %p64, %p65
    %p67 = scmp.ne.s32.totalorder %s59, %s62
    %p68 = scmp.eq.s32.totalorder %s9, 0
    %p69 = por %p67, %p68
    %p70 = scmp.ne.s32.totalorder %s59, %s62
    %p71 = scmp.eq.s32.totalorder %s14, 1
    %p72 = por %p70, %p71
    %p73 = scmp.ne.s32.totalorder %s62, %s63
    %p74 = scmp.eq.s32.totalorder %s14, 0
    %p75 = por %p73, %p74
    %p76 = scmp.ne.s32.totalorder %s62, %s63
    %p77 = scmp.eq.s32.totalorder %s15, 1
    %p78 = por %p76, %p77
    %p80 = scmp.ne.s32.totalorder %s63, %s79
    %p81 = scmp.eq.s32.totalorder %s15, 0
    %p82 = por %p80, %p81
    %s83 = ssub.s32 %s17, %s24
    %p84 = scmp.eq.s32.totalorder %s83, 0
    %s86 = sadd.s32 %s85, 1
    %s87 = scalar_select %p84, %s85, %s86
    %p90 = pneg %p84
    %p91 = scmp.eq.s32.totalorder %s9, 1
    %p92 = por %p90, %p91
    %p93 = scmp.ne.s32.totalorder %s85, %s88
    %p94 = scmp.eq.s32.totalorder %s9, 0
    %p95 = por %p93, %p94
    %p96 = scmp.ne.s32.totalorder %s85, %s88
    %p97 = scmp.eq.s32.totalorder %s14, 1
    %p98 = por %p96, %p97
    %p99 = scmp.ne.s32.totalorder %s88, %s89
    %p100 = scmp.eq.s32.totalorder %s14, 0
    %p101 = por %p99, %p100
    %p102 = scmp.ne.s32.totalorder %s88, %s89
    %p103 = scmp.eq.s32.totalorder %s15, 1
    %p104 = por %p102, %p103
    %p106 = scmp.ne.s32.totalorder %s89, %s105
    %p107 = scmp.eq.s32.totalorder %s15, 0
    %p108 = por %p106, %p107
    %s109 = ssub.s32 %s16, %s28
    %s110 = ssub.s32 %s17, %s24
    %s111 = sor.u32 %s109, %s110
    %p112 = scmp.eq.s32.totalorder %s111, 0
    %s114 = sadd.s32 %s113, 1
    %s115 = scalar_select %p112, %s113, %s114
    %p118 = pneg %p112
    %p119 = scmp.eq.s32.totalorder %s9, 1
    %p120 = por %p118, %p119
    %p121 = scmp.ne.s32.totalorder %s113, %s116
    %p122 = scmp.eq.s32.totalorder %s9, 0
    %p123 = por %p121, %p122
    %p124 = scmp.ne.s32.totalorder %s113, %s116
    %p125 = scmp.eq.s32.totalorder %s14, 1
    %p126 = por %p124, %p125
    %p127 = scmp.ne.s32.totalorder %s116, %s117
    %p128 = scmp.eq.s32.totalorder %s14, 0
    %p129 = por %p127, %p128
    %p130 = scmp.ne.s32.totalorder %s116, %s117
    %p131 = scmp.eq.s32.totalorder %s15, 1
    %p132 = por %p130, %p131
    %p134 = scmp.ne.s32.totalorder %s117, %s133
    %p135 = scmp.eq.s32.totalorder %s15, 0
    %p136 = por %p134, %p135
    %p137 = scmp.le.s32.totalorder 1, %s9
    %p138 = scmp.lt.s32.totalorder %s9, 3
    %p139 = pnand %p137, %p138
    %p140 = pneg %p139
    // Predicated region
    $region9: #{block_forward.4} parent=5 // pred_check
      _
    $region10: #{block_forward.4} parent=5 // pred_check_branch
      %142 = sbr.rel (%p139) target = $region12
    $region11: #{block_forward.4} parent=5 // pred_region
      %s143 = ssub.s32 %s9, 1
      // Predicated region
      $region13: #{block_forward.4} parent=11 // pred_check
        %p144 = pneg %p75
      $region14: #{block_forward.4} parent=11 // pred_check_branch
        %146 = sbr.rel (%p144) target = $region16
      $region15: #{block_forward.4} parent=11 // pred_region
        %p147 = scmp.lt.s32.totalorder %s19, 0
        %s148 = scalar_select %p147, %s19, 0
        %s149 = smul.addr %s148, 4
        %s150 = scalar_lea.vmem %s1, %s149
      $region16: #{block_forward.4} parent=11 // pred_fallthru
        _
      // Predicated region
      $region17: #{block_forward.4} parent=11 // pred_check
        %p151 = pneg %p101
      $region18: #{block_forward.4} parent=11 // pred_check_branch
        %153 = sbr.rel (%p151) target = $region20
      $region19: #{block_forward.4} parent=11 // pred_region
        %p154 = scmp.lt.s32.totalorder %s19, 0
        %s155 = scalar_select %p154, %s19, 0
        %s156 = scalar_lea.vmem %s2, %s155
      $region20: #{block_forward.4} parent=11 // pred_fallthru
        _
    $region12: #{block_forward.4} parent=5 // pred_fallthru
      _
    %p157 = scmp.lt.s32.totalorder %s9, 2
    // Predicated region
    $region21: #{block_forward.4} parent=5 // pred_check
      %p158 = pneg %p157
    $region22: #{block_forward.4} parent=5 // pred_check_branch
      %160 = sbr.rel (%p158) target = $region24
    $region23: #{block_forward.4} parent=5 // pred_region
      // Predicated region
      $region25: #{block_forward.4} parent=23 // pred_check
        %p161 = pneg %p43
      $region26: #{block_forward.4} parent=23 // pred_check_branch
        %163 = sbr.rel (%p161) target = $region28
      $region27: #{block_forward.4} parent=23 // pred_region
        %p164 = scmp.lt.s32.totalorder %s16, 1
        %s165 = scalar_select %p164, %s16, 1
        %p166 = scmp.lt.s32.totalorder %s17, 0
        %s167 = scalar_select %p166, %s17, 0
        %s168 = smul.addr %s165, 54
        %s169 = sadd.s32 %s167, %s168
        %s170 = smul.addr %s169, 4
        %s171 = scalar_lea.vmem %s0, %s170
      $region28: #{block_forward.4} parent=23 // pred_fallthru
        _
    $region24: #{block_forward.4} parent=5 // pred_fallthru
      _
    %p172 = scmp.le.s32.totalorder 1, %s9
    %p173 = scmp.lt.s32.totalorder %s9, 3
    %p174 = pnand %p172, %p173
    %p175 = pneg %p174
    // Predicated region
    $region29: #{block_forward.4} parent=5 // pred_check
      _
    $region30: #{block_forward.4} parent=5 // pred_check_branch
      %177 = sbr.rel (%p174) target = $region32
    $region31: #{block_forward.4} parent=5 // pred_region
      %s178 = ssub.s32 %s9, 1
      %p179 = scmp.lt.s32.totalorder %s18, 1
      %s180 = scalar_select %p179, %s18, 1
      %p181 = scmp.lt.s32.totalorder %s19, 0
      %s182 = scalar_select %p181, %s19, 0
      %s183 = smul.addr %s180, 54
      %s184 = sadd.s32 %s182, %s183
      %s185 = smul.addr %s184, 4
      %s186 = scalar_lea.vmem %s0, %s185
      %p187 = pneg %p49
      %p188 = pneg %p46
      %p189 = scmp.lt.s32.totalorder %s19, 0
      %s190 = scalar_select %p189, %s19, 0
      %s191 = smul.addr %s190, 4
      %s192 = scalar_lea.vmem %s1, %s191
      %p193 = pneg %p75
      %p194 = pneg %p72
      %p195 = scmp.lt.s32.totalorder %s19, 0
      %s196 = scalar_select %p195, %s19, 0
      %s197 = scalar_lea.vmem %s2, %s196
      %p198 = pneg %p101
      %p199 = pneg %p98
      %p200 = pneg %p129
      %p201 = pneg %p126
      %p202 = scmp.lt.s32.totalorder %s18, 1
      %s203 = scalar_select %p202, %s18, 1
      %p204 = scmp.lt.s32.totalorder %s19, 0
      %s205 = scalar_select %p204, %s19, 0
      %s206 = smul.addr %s203, 32
      %s207 = sadd.s32 %s205, %s206
      %s208 = smul.addr %s207, 4
      %s209 = scalar_lea.vmem %s3, %s208
      %p210 = scmp.lt.s32.totalorder %s18, 1
      %s211 = scalar_select %p210, %s18, 1
      %p212 = scmp.lt.s32.totalorder %s19, 0
      %s213 = scalar_select %p212, %s19, 0
      %s214 = smul.addr %s211, 54
      %s215 = sadd.s32 %s213, %s214
      %s216 = smul.addr %s215, 4
      %s217 = scalar_lea.vmem %s0, %s216
      %p218 = scmp.lt.s32.totalorder %s19, 0
      %s219 = scalar_select %p218, %s19, 0
      %s220 = smul.addr %s219, 4
      %s221 = scalar_lea.vmem %s1, %s220
      %p222 = scmp.lt.s32.totalorder %s19, 0
      %s223 = scalar_select %p222, %s19, 0
      %s224 = scalar_lea.vmem %s2, %s223
      %p225 = scmp.lt.s32.totalorder %s18, 1
      %s226 = scalar_select %p225, %s18, 1
      %p227 = scmp.lt.s32.totalorder %s19, 0
      %s228 = scalar_select %p227, %s19, 0
      %s229 = smul.addr %s226, 32
      %s230 = sadd.s32 %s228, %s229
      %s231 = smul.addr %s230, 4
      %s232 = scalar_lea.vmem %s3, %s231
      %v233 = vld [vmem:[%s217] sm:$0xf]
      %v234 = vld [vmem:[%s217 + $0x4] sm:$0xf]
      %v235 = vld [vmem:[%s217 + $0xc] sm:$0xf]
      %v236 = vld [vmem:[%s217 + $0x10] sm:$0xf]
      %v237 = vld [vmem:[%s217 + $0x18] sm:$0xf]
      %v238 = vld [vmem:[%s217 + $0x1c] sm:$0xf]
      %v239 = vld [vmem:[%s217 + $0x24] sm:$0xf]
      %v240 = vld [vmem:[%s217 + $0x28] sm:$0xf]
      %v241 = vld [vmem:[%s217 + $0x30] sm:$0xf]
      %v242 = vld [vmem:[%s217 + $0x34] sm:$0xf]
      %v243 = vld [vmem:[%s217 + $0x3c] sm:$0xf]
      %v244 = vld [vmem:[%s217 + $0x40] sm:$0xf]
      %v245 = vld [vmem:[%s217 + $0x48] sm:$0xf]
      %v246 = vld [vmem:[%s217 + $0x4c] sm:$0xf]
      %v247 = vld [vmem:[%s217 + $0x54] sm:$0xf]
      %v248 = vld [vmem:[%s217 + $0x58] sm:$0xf]
      %v249 = vld [vmem:[%s217 + $0x60] sm:$0xf]
      %v250 = vld [vmem:[%s217 + $0x64] sm:$0xf]
      %v251 = vld [vmem:[%s217 + $0x6c] sm:$0xf]
      %v252 = vld [vmem:[%s217 + $0x70] sm:$0xf]
      %v253 = vld [vmem:[%s217 + $0x78] sm:$0xf]
      %v254 = vld [vmem:[%s217 + $0x7c] sm:$0xf]
      %v255 = vld [vmem:[%s217 + $0x84] sm:$0xf]
      %v256 = vld [vmem:[%s217 + $0x88] sm:$0xf]
      %v257 = vld [vmem:[%s217 + $0x90] sm:$0xf]
      %v258 = vld [vmem:[%s217 + $0x94] sm:$0xf]
      %v259 = vld [vmem:[%s217 + $0x9c] sm:$0xf]
      %v260 = vld [vmem:[%s217 + $0xa0] sm:$0xf]
      %v261 = vld [vmem:[%s217 + $0xa8] sm:$0xf]
      %v262 = vld [vmem:[%s217 + $0xac] sm:$0xf]
      %v263 = vld [vmem:[%s217 + $0xb4] sm:$0xf]
      %v264 = vld [vmem:[%s217 + $0xb8] sm:$0xf]
      %v265 = vunpack.c.l.bf16 %v233
      %v266 = vunpack.c.l.bf16 %v234
      %v267 = vunpack.c.l.bf16 %v235
      %v268 = vunpack.c.l.bf16 %v236
      %v269 = vunpack.c.l.bf16 %v237
      %v270 = vunpack.c.l.bf16 %v238
      %v271 = vunpack.c.l.bf16 %v239
      %v272 = vunpack.c.l.bf16 %v240
      %v273 = vunpack.c.l.bf16 %v241
      %v274 = vunpack.c.l.bf16 %v242
      %v275 = vunpack.c.l.bf16 %v243
      %v276 = vunpack.c.l.bf16 %v244
      %v277 = vunpack.c.l.bf16 %v245
      %v278 = vunpack.c.l.bf16 %v246
      %v279 = vunpack.c.l.bf16 %v247
      %v280 = vunpack.c.l.bf16 %v248
      %v281 = vunpack.c.l.bf16 %v249
      %v282 = vunpack.c.l.bf16 %v250
      %v283 = vunpack.c.l.bf16 %v251
      %v284 = vunpack.c.l.bf16 %v252
      %v285 = vunpack.c.l.bf16 %v253
      %v286 = vunpack.c.l.bf16 %v254
      %v287 = vunpack.c.l.bf16 %v255
      %v288 = vunpack.c.l.bf16 %v256
      %v289 = vunpack.c.l.bf16 %v257
      %v290 = vunpack.c.l.bf16 %v258
      %v291 = vunpack.c.l.bf16 %v259
      %v292 = vunpack.c.l.bf16 %v260
      %v293 = vunpack.c.l.bf16 %v261
      %v294 = vunpack.c.l.bf16 %v262
      %v295 = vunpack.c.l.bf16 %v263
      %v296 = vunpack.c.l.bf16 %v264
      %v297 = vld [vmem:[%s221] sm:$0x1]
      %v298 = vlaneseq
      %v299 = vshrl.u32 %v298, 7
      %v300 = vsub.s32 0, %v299
      %v301 = vrot.slane %v297, %v300
      %v302 = vmul.f32 %v265, %v301
      %v303 = vmul.f32 %v266, %v301
      %v304 = vmul.f32 %v267, %v301
      %v305 = vmul.f32 %v268, %v301
      %v306 = vmul.f32 %v269, %v301
      %v307 = vmul.f32 %v270, %v301
      %v308 = vmul.f32 %v271, %v301
      %v309 = vmul.f32 %v272, %v301
      %v310 = vmul.f32 %v273, %v301
      %v311 = vmul.f32 %v274, %v301
      %v312 = vmul.f32 %v275, %v301
      %v313 = vmul.f32 %v276, %v301
      %v314 = vmul.f32 %v277, %v301
      %v315 = vmul.f32 %v278, %v301
      %v316 = vmul.f32 %v279, %v301
      %v317 = vmul.f32 %v280, %v301
      %v318 = vmul.f32 %v281, %v301
      %v319 = vmul.f32 %v282, %v301
      %v320 = vmul.f32 %v283, %v301
      %v321 = vmul.f32 %v284, %v301
      %v322 = vmul.f32 %v285, %v301
      %v323 = vmul.f32 %v286, %v301
      %v324 = vmul.f32 %v287, %v301
      %v325 = vmul.f32 %v288, %v301
      %v326 = vmul.f32 %v289, %v301
      %v327 = vmul.f32 %v290, %v301
      %v328 = vmul.f32 %v291, %v301
      %v329 = vmul.f32 %v292, %v301
      %v330 = vmul.f32 %v293, %v301
      %v331 = vmul.f32 %v294, %v301
      %v332 = vmul.f32 %v295, %v301
      %v333 = vmul.f32 %v296, %v301
      %v334 = vadd.f32 %v302, 0.0
      %v335 = vadd.f32 %v303, 0.0
      %v336 = vadd.f32 %v304, 0.0
      %v337 = vadd.f32 %v305, 0.0
      %v338 = vadd.f32 %v306, 0.0
      %v339 = vadd.f32 %v307, 0.0
      %v340 = vadd.f32 %v308, 0.0
      %v341 = vadd.f32 %v309, 0.0
      %v342 = vadd.f32 %v310, 0.0
      %v343 = vadd.f32 %v311, 0.0
      %v344 = vadd.f32 %v312, 0.0
      %v345 = vadd.f32 %v313, 0.0
      %v346 = vadd.f32 %v314, 0.0
      %v347 = vadd.f32 %v315, 0.0
      %v348 = vadd.f32 %v316, 0.0
      %v349 = vadd.f32 %v317, 0.0
      %v350 = vadd.f32 %v318, 0.0
      %v351 = vadd.f32 %v319, 0.0
      %v352 = vadd.f32 %v320, 0.0
      %v353 = vadd.f32 %v321, 0.0
      %v354 = vadd.f32 %v322, 0.0
      %v355 = vadd.f32 %v323, 0.0
      %v356 = vadd.f32 %v324, 0.0
      %v357 = vadd.f32 %v325, 0.0
      %v358 = vadd.f32 %v326, 0.0
      %v359 = vadd.f32 %v327, 0.0
      %v360 = vadd.f32 %v328, 0.0
      %v361 = vadd.f32 %v329, 0.0
      %v362 = vadd.f32 %v330, 0.0
      %v363 = vadd.f32 %v331, 0.0
      %v364 = vadd.f32 %v332, 0.0
      %v365 = vadd.f32 %v333, 0.0
      %v366 = vld [vmem:[%s217 + $0x8] sm:$0x1]
      %v367 = vld [vmem:[%s217 + $0x14] sm:$0x1]
      %v368 = vld [vmem:[%s217 + $0x20] sm:$0x1]
      %v369 = vld [vmem:[%s217 + $0x2c] sm:$0x1]
      %v370 = vld [vmem:[%s217 + $0x38] sm:$0x1]
      %v371 = vld [vmem:[%s217 + $0x44] sm:$0x1]
      %v372 = vld [vmem:[%s217 + $0x50] sm:$0x1]
      %v373 = vld [vmem:[%s217 + $0x5c] sm:$0x1]
      %v374 = vld [vmem:[%s217 + $0x68] sm:$0x1]
      %v375 = vld [vmem:[%s217 + $0x74] sm:$0x1]
      %v376 = vld [vmem:[%s217 + $0x80] sm:$0x1]
      %v377 = vld [vmem:[%s217 + $0x8c] sm:$0x1]
      %v378 = vld [vmem:[%s217 + $0x98] sm:$0x1]
      %v379 = vld [vmem:[%s217 + $0xa4] sm:$0x1]
      %v380 = vld [vmem:[%s217 + $0xb0] sm:$0x1]
      %v381 = vld [vmem:[%s217 + $0xbc] sm:$0x1]
      %v382 = vunpack.c.l.bf16 %v366
      %v383 = vunpack.c.l.bf16 %v367
      %v384 = vunpack.c.l.bf16 %v368
      %v385 = vunpack.c.l.bf16 %v369
      %v386 = vunpack.c.l.bf16 %v370
      %v387 = vunpack.c.l.bf16 %v371
      %v388 = vunpack.c.l.bf16 %v372
      %v389 = vunpack.c.l.bf16 %v373
      %v390 = vunpack.c.l.bf16 %v374
      %v391 = vunpack.c.l.bf16 %v375
      %v392 = vunpack.c.l.bf16 %v376
      %v393 = vunpack.c.l.bf16 %v377
      %v394 = vunpack.c.l.bf16 %v378
      %v395 = vunpack.c.l.bf16 %v379
      %v396 = vunpack.c.l.bf16 %v380
      %v397 = vunpack.c.l.bf16 %v381
      %v398 = vld [vmem:[%s221 + $0x1] sm:$0x1]
      %v399 = vlaneseq
      %v400 = vshrl.u32 %v399, 7
      %v401 = vsub.s32 0, %v400
      %v402 = vrot.slane %v398, %v401
      %v403 = vmul.f32 %v265, %v402
      %v404 = vmul.f32 %v266, %v402
      %v405 = vmul.f32 %v382, %v402
      %v406 = vmul.f32 %v267, %v402
      %v407 = vmul.f32 %v268, %v402
      %v408 = vmul.f32 %v383, %v402
      %v409 = vmul.f32 %v269, %v402
      %v410 = vmul.f32 %v270, %v402
      %v411 = vmul.f32 %v384, %v402
      %v412 = vmul.f32 %v271, %v402
      %v413 = vmul.f32 %v272, %v402
      %v414 = vmul.f32 %v385, %v402
      %v415 = vmul.f32 %v273, %v402
      %v416 = vmul.f32 %v274, %v402
      %v417 = vmul.f32 %v386, %v402
      %v418 = vmul.f32 %v275, %v402
      %v419 = vmul.f32 %v276, %v402
      %v420 = vmul.f32 %v387, %v402
      %v421 = vmul.f32 %v277, %v402
      %v422 = vmul.f32 %v278, %v402
      %v423 = vmul.f32 %v388, %v402
      %v424 = vmul.f32 %v279, %v402
      %v425 = vmul.f32 %v280, %v402
      %v426 = vmul.f32 %v389, %v402
      %v427 = vmul.f32 %v281, %v402
      %v428 = vmul.f32 %v282, %v402
      %v429 = vmul.f32 %v390, %v402
      %v430 = vmul.f32 %v283, %v402
      %v431 = vmul.f32 %v284, %v402
      %v432 = vmul.f32 %v391, %v402
      %v433 = vmul.f32 %v285, %v402
      %v434 = vmul.f32 %v286, %v402
      %v435 = vmul.f32 %v392, %v402
      %v436 = vmul.f32 %v287, %v402
      %v437 = vmul.f32 %v288, %v402
      %v438 = vmul.f32 %v393, %v402
      %v439 = vmul.f32 %v289, %v402
      %v440 = vmul.f32 %v290, %v402
      %v441 = vmul.f32 %v394, %v402
      %v442 = vmul.f32 %v291, %v402
      %v443 = vmul.f32 %v292, %v402
      %v444 = vmul.f32 %v395, %v402
      %v445 = vmul.f32 %v293, %v402
      %v446 = vmul.f32 %v294, %v402
      %v447 = vmul.f32 %v396, %v402
      %v448 = vmul.f32 %v295, %v402
      %v449 = vmul.f32 %v296, %v402
      %v450 = vmul.f32 %v397, %v402
      %vm499 = vcmask 1046528
      %v500 = vrot.slane %v403, 1
      %v501 = vrot.slane %v404, 1
      %v502 = vsel %vm499, %v500, %v501
      %v503 = vrot.slane %v405, 1
      %v504 = vsel %vm499, %v501, %v503
      %v505 = vrot.slane %v406, 1
      %v506 = vrot.slane %v407, 1
      %v507 = vsel %vm499, %v505, %v506
      %v508 = vrot.slane %v408, 1
      %v509 = vsel %vm499, %v506, %v508
      %v510 = vrot.slane %v409, 1
      %v511 = vrot.slane %v410, 1
      %v512 = vsel %vm499, %v510, %v511
      %v513 = vrot.slane %v411, 1
      %v514 = vsel %vm499, %v511, %v513
      %v515 = vrot.slane %v412, 1
      %v516 = vrot.slane %v413, 1
      %v517 = vsel %vm499, %v515, %v516
      %v518 = vrot.slane %v414, 1
      %v519 = vsel %vm499, %v516, %v518
      %v520 = vrot.slane %v415, 1
      %v521 = vrot.slane %v416, 1
      %v522 = vsel %vm499, %v520, %v521
      %v523 = vrot.slane %v417, 1
      %v524 = vsel %vm499, %v521, %v523
      %v525 = vrot.slane %v418, 1
      %v526 = vrot.slane %v419, 1
      %v527 = vsel %vm499, %v525, %v526
      %v528 = vrot.slane %v420, 1
      %v529 = vsel %vm499, %v526, %v528
      %v530 = vrot.slane %v421, 1
      %v531 = vrot.slane %v422, 1
      %v532 = vsel %vm499, %v530, %v531
      %v533 = vrot.slane %v423, 1
      %v534 = vsel %vm499, %v531, %v533
      %v535 = vrot.slane %v424, 1
      %v536 = vrot.slane %v425, 1
      %v537 = vsel %vm499, %v535, %v536
      %v538 = vrot.slane %v426, 1
      %v539 = vsel %vm499, %v536, %v538
      %v540 = vrot.slane %v427, 1
      %v541 = vrot.slane %v428, 1
      %v542 = vsel %vm499, %v540, %v541
      %v543 = vrot.slane %v429, 1
      %v544 = vsel %vm499, %v541, %v543
      %v545 = vrot.slane %v430, 1
      %v546 = vrot.slane %v431, 1
      %v547 = vsel %vm499, %v545, %v546
      %v548 = vrot.slane %v432, 1
      %v549 = vsel %vm499, %v546, %v548
      %v550 = vrot.slane %v433, 1
      %v551 = vrot.slane %v434, 1
      %v552 = vsel %vm499, %v550, %v551
      %v553 = vrot.slane %v435, 1
      %v554 = vsel %vm499, %v551, %v553
      %v555 = vrot.slane %v436, 1
      %v556 = vrot.slane %v437, 1
      %v557 = vsel %vm499, %v555, %v556
      %v558 = vrot.slane %v438, 1
      %v559 = vsel %vm499, %v556, %v558
      %v560 = vrot.slane %v439, 1
      %v561 = vrot.slane %v440, 1
      %v562 = vsel %vm499, %v560, %v561
      %v563 = vrot.slane %v441, 1
      %v564 = vsel %vm499, %v561, %v563
      %v565 = vrot.slane %v442, 1
      %v566 = vrot.slane %v443, 1
      %v567 = vsel %vm499, %v565, %v566
      %v568 = vrot.slane %v444, 1
      %v569 = vsel %vm499, %v566, %v568
      %v570 = vrot.slane %v445, 1
      %v571 = vrot.slane %v446, 1
      %v572 = vsel %vm499, %v570, %v571
      %v573 = vrot.slane %v447, 1
      %v574 = vsel %vm499, %v571, %v573
      %v575 = vrot.slane %v448, 1
      %v576 = vrot.slane %v449, 1
      %v577 = vsel %vm499, %v575, %v576
      %v578 = vrot.slane %v450, 1
      %v579 = vsel %vm499, %v576, %v578
      %v612 = vadd.f32 %v334, %v502
      %v613 = vadd.f32 %v335, %v504
      %v614 = vadd.f32 %v336, %v507
      %v615 = vadd.f32 %v337, %v509
      %v616 = vadd.f32 %v338, %v512
      %v617 = vadd.f32 %v339, %v514
      %v618 = vadd.f32 %v340, %v517
      %v619 = vadd.f32 %v341, %v519
      %v620 = vadd.f32 %v342, %v522
      %v621 = vadd.f32 %v343, %v524
      %v622 = vadd.f32 %v344, %v527
      %v623 = vadd.f32 %v345, %v529
      %v624 = vadd.f32 %v346, %v532
      %v625 = vadd.f32 %v347, %v534
      %v626 = vadd.f32 %v348, %v537
      %v627 = vadd.f32 %v349, %v539
      %v628 = vadd.f32 %v350, %v542
      %v629 = vadd.f32 %v351, %v544
      %v630 = vadd.f32 %v352, %v547
      %v631 = vadd.f32 %v353, %v549
      %v632 = vadd.f32 %v354, %v552
      %v633 = vadd.f32 %v355, %v554
      %v634 = vadd.f32 %v356, %v557
      %v635 = vadd.f32 %v357, %v559
      %v636 = vadd.f32 %v358, %v562
      %v637 = vadd.f32 %v359, %v564
      %v638 = vadd.f32 %v360, %v567
      %v639 = vadd.f32 %v361, %v569
      %v640 = vadd.f32 %v362, %v572
      %v641 = vadd.f32 %v363, %v574
      %v642 = vadd.f32 %v364, %v577
      %v643 = vadd.f32 %v365, %v579
      %v644 = vld [vmem:[%s217] sm:$0xe]
      %v645 = vld [vmem:[%s217 + $0xc] sm:$0xe]
      %v646 = vld [vmem:[%s217 + $0x18] sm:$0xe]
      %v647 = vld [vmem:[%s217 + $0x24] sm:$0xe]
      %v648 = vld [vmem:[%s217 + $0x30] sm:$0xe]
      %v649 = vld [vmem:[%s217 + $0x3c] sm:$0xe]
      %v650 = vld [vmem:[%s217 + $0x48] sm:$0xe]
      %v651 = vld [vmem:[%s217 + $0x54] sm:$0xe]
      %v652 = vld [vmem:[%s217 + $0x60] sm:$0xe]
      %v653 = vld [vmem:[%s217 + $0x6c] sm:$0xe]
      %v654 = vld [vmem:[%s217 + $0x78] sm:$0xe]
      %v655 = vld [vmem:[%s217 + $0x84] sm:$0xe]
      %v656 = vld [vmem:[%s217 + $0x90] sm:$0xe]
      %v657 = vld [vmem:[%s217 + $0x9c] sm:$0xe]
      %v658 = vld [vmem:[%s217 + $0xa8] sm:$0xe]
      %v659 = vld [vmem:[%s217 + $0xb4] sm:$0xe]
      %v660 = vunpack.c.l.bf16 %v644
      %v661 = vunpack.c.l.bf16 %v645
      %v662 = vunpack.c.l.bf16 %v646
      %v663 = vunpack.c.l.bf16 %v647
      %v664 = vunpack.c.l.bf16 %v648
      %v665 = vunpack.c.l.bf16 %v649
      %v666 = vunpack.c.l.bf16 %v650
      %v667 = vunpack.c.l.bf16 %v651
      %v668 = vunpack.c.l.bf16 %v652
      %v669 = vunpack.c.l.bf16 %v653
      %v670 = vunpack.c.l.bf16 %v654
      %v671 = vunpack.c.l.bf16 %v655
      %v672 = vunpack.c.l.bf16 %v656
      %v673 = vunpack.c.l.bf16 %v657
      %v674 = vunpack.c.l.bf16 %v658
      %v675 = vunpack.c.l.bf16 %v659
      %v676 = vld [vmem:[%s221 + $0x2] sm:$0x1]
      %v677 = vlaneseq
      %v678 = vshrl.u32 %v677, 7
      %v679 = vsub.s32 0, %v678
      %v680 = vrot.slane %v676, %v679
      %v681 = vmul.f32 %v660, %v680
      %v682 = vmul.f32 %v266, %v680
      %v683 = vmul.f32 %v382, %v680
      %v684 = vmul.f32 %v661, %v680
      %v685 = vmul.f32 %v268, %v680
      %v686 = vmul.f32 %v383, %v680
      %v687 = vmul.f32 %v662, %v680
      %v688 = vmul.f32 %v270, %v680
      %v689 = vmul.f32 %v384, %v680
      %v690 = vmul.f32 %v663, %v680
      %v691 = vmul.f32 %v272, %v680
      %v692 = vmul.f32 %v385, %v680
      %v693 = vmul.f32 %v664, %v680
      %v694 = vmul.f32 %v274, %v680
      %v695 = vmul.f32 %v386, %v680
      %v696 = vmul.f32 %v665, %v680
      %v697 = vmul.f32 %v276, %v680
      %v698 = vmul.f32 %v387, %v680
      %v699 = vmul.f32 %v666, %v680
      %v700 = vmul.f32 %v278, %v680
      %v701 = vmul.f32 %v388, %v680
      %v702 = vmul.f32 %v667, %v680
      %v703 = vmul.f32 %v280, %v680
      %v704 = vmul.f32 %v389, %v680
      %v705 = vmul.f32 %v668, %v680
      %v706 = vmul.f32 %v282, %v680
      %v707 = vmul.f32 %v390, %v680
      %v708 = vmul.f32 %v669, %v680
      %v709 = vmul.f32 %v284, %v680
      %v710 = vmul.f32 %v391, %v680
      %v711 = vmul.f32 %v670, %v680
      %v712 = vmul.f32 %v286, %v680
      %v713 = vmul.f32 %v392, %v680
      %v714 = vmul.f32 %v671, %v680
      %v715 = vmul.f32 %v288, %v680
      %v716 = vmul.f32 %v393, %v680
      %v717 = vmul.f32 %v672, %v680
      %v718 = vmul.f32 %v290, %v680
      %v719 = vmul.f32 %v394, %v680
      %v720 = vmul.f32 %v673, %v680
      %v721 = vmul.f32 %v292, %v680
      %v722 = vmul.f32 %v395, %v680
      %v723 = vmul.f32 %v674, %v680
      %v724 = vmul.f32 %v294, %v680
      %v725 = vmul.f32 %v396, %v680
      %v726 = vmul.f32 %v675, %v680
      %v727 = vmul.f32 %v296, %v680
      %v728 = vmul.f32 %v397, %v680
      %vm777 = vcmask 1045504
      %v778 = vrot.slane %v681, 2
      %v779 = vrot.slane %v682, 2
      %v780 = vsel %vm777, %v778, %v779
      %v781 = vrot.slane %v683, 2
      %v782 = vsel %vm777, %v779, %v781
      %v783 = vrot.slane %v684, 2
      %v784 = vrot.slane %v685, 2
      %v785 = vsel %vm777, %v783, %v784
      %v786 = vrot.slane %v686, 2
      %v787 = vsel %vm777, %v784, %v786
      %v788 = vrot.slane %v687, 2
      %v789 = vrot.slane %v688, 2
      %v790 = vsel %vm777, %v788, %v789
      %v791 = vrot.slane %v689, 2
      %v792 = vsel %vm777, %v789, %v791
      %v793 = vrot.slane %v690, 2
      %v794 = vrot.slane %v691, 2
      %v795 = vsel %vm777, %v793, %v794
      %v796 = vrot.slane %v692, 2
      %v797 = vsel %vm777, %v794, %v796
      %v798 = vrot.slane %v693, 2
      %v799 = vrot.slane %v694, 2
      %v800 = vsel %vm777, %v798, %v799
      %v801 = vrot.slane %v695, 2
      %v802 = vsel %vm777, %v799, %v801
      %v803 = vrot.slane %v696, 2
      %v804 = vrot.slane %v697, 2
      %v805 = vsel %vm777, %v803, %v804
      %v806 = vrot.slane %v698, 2
      %v807 = vsel %vm777, %v804, %v806
      %v808 = vrot.slane %v699, 2
      %v809 = vrot.slane %v700, 2
      %v810 = vsel %vm777, %v808, %v809
      %v811 = vrot.slane %v701, 2
      %v812 = vsel %vm777, %v809, %v811
      %v813 = vrot.slane %v702, 2
      %v814 = vrot.slane %v703, 2
      %v815 = vsel %vm777, %v813, %v814
      %v816 = vrot.slane %v704, 2
      %v817 = vsel %vm777, %v814, %v816
      %v818 = vrot.slane %v705, 2
      %v819 = vrot.slane %v706, 2
      %v820 = vsel %vm777, %v818, %v819
      %v821 = vrot.slane %v707, 2
      %v822 = vsel %vm777, %v819, %v821
      %v823 = vrot.slane %v708, 2
      %v824 = vrot.slane %v709, 2
      %v825 = vsel %vm777, %v823, %v824
      %v826 = vrot.slane %v710, 2
      %v827 = vsel %vm777, %v824, %v826
      %v828 = vrot.slane %v711, 2
      %v829 = vrot.slane %v712, 2
      %v830 = vsel %vm777, %v828, %v829
      %v831 = vrot.slane %v713, 2
      %v832 = vsel %vm777, %v829, %v831
      %v833 = vrot.slane %v714, 2
      %v834 = vrot.slane %v715, 2
      %v835 = vsel %vm777, %v833, %v834
      %v836 = vrot.slane %v716, 2
      %v837 = vsel %vm777, %v834, %v836
      %v838 = vrot.slane %v717, 2
      %v839 = vrot.slane %v718, 2
      %v840 = vsel %vm777, %v838, %v839
      %v841 = vrot.slane %v719, 2
      %v842 = vsel %vm777, %v839, %v841
      %v843 = vrot.slane %v720, 2
      %v844 = vrot.slane %v721, 2
      %v845 = vsel %vm777, %v843, %v844
      %v846 = vrot.slane %v722, 2
      %v847 = vsel %vm777, %v844, %v846
      %v848 = vrot.slane %v723, 2
      %v849 = vrot.slane %v724, 2
      %v850 = vsel %vm777, %v848, %v849
      %v851 = vrot.slane %v725, 2
      %v852 = vsel %vm777, %v849, %v851
      %v853 = vrot.slane %v726, 2
      %v854 = vrot.slane %v727, 2
      %v855 = vsel %vm777, %v853, %v854
      %v856 = vrot.slane %v728, 2
      %v857 = vsel %vm777, %v854, %v856
      %v890 = vadd.f32 %v612, %v780
      %v891 = vadd.f32 %v613, %v782
      %v892 = vadd.f32 %v614, %v785
      %v893 = vadd.f32 %v615, %v787
      %v894 = vadd.f32 %v616, %v790
      %v895 = vadd.f32 %v617, %v792
      %v896 = vadd.f32 %v618, %v795
      %v897 = vadd.f32 %v619, %v797
      %v898 = vadd.f32 %v620, %v800
      %v899 = vadd.f32 %v621, %v802
      %v900 = vadd.f32 %v622, %v805
      %v901 = vadd.f32 %v623, %v807
      %v902 = vadd.f32 %v624, %v810
      %v903 = vadd.f32 %v625, %v812
      %v904 = vadd.f32 %v626, %v815
      %v905 = vadd.f32 %v627, %v817
      %v906 = vadd.f32 %v628, %v820
      %v907 = vadd.f32 %v629, %v822
      %v908 = vadd.f32 %v630, %v825
      %v909 = vadd.f32 %v631, %v827
      %v910 = vadd.f32 %v632, %v830
      %v911 = vadd.f32 %v633, %v832
      %v912 = vadd.f32 %v634, %v835
      %v913 = vadd.f32 %v635, %v837
      %v914 = vadd.f32 %v636, %v840
      %v915 = vadd.f32 %v637, %v842
      %v916 = vadd.f32 %v638, %v845
      %v917 = vadd.f32 %v639, %v847
      %v918 = vadd.f32 %v640, %v850
      %v919 = vadd.f32 %v641, %v852
      %v920 = vadd.f32 %v642, %v855
      %v921 = vadd.f32 %v643, %v857
      %s922 = scalar_lea.vmem %s217, 12
      %v923 = vld [vmem:[%s922] sm:$0xf]
      %v924 = vld [vmem:[%s922 + $0x4] sm:$0xf]
      %v925 = vld [vmem:[%s922 + $0xc] sm:$0xf]
      %v926 = vld [vmem:[%s922 + $0x10] sm:$0xf]
      %v927 = vld [vmem:[%s922 + $0x18] sm:$0xf]
      %v928 = vld [vmem:[%s922 + $0x1c] sm:$0xf]
      %v929 = vld [vmem:[%s922 + $0x24] sm:$0xf]
      %v930 = vld [vmem:[%s922 + $0x28] sm:$0xf]
      %v931 = vld [vmem:[%s922 + $0x30] sm:$0xf]
      %v932 = vld [vmem:[%s922 + $0x34] sm:$0xf]
      %v933 = vld [vmem:[%s922 + $0x3c] sm:$0xf]
      %v934 = vld [vmem:[%s922 + $0x40] sm:$0xf]
      %v935 = vld [vmem:[%s922 + $0x48] sm:$0xf]
      %v936 = vld [vmem:[%s922 + $0x4c] sm:$0xf]
      %v937 = vld [vmem:[%s922 + $0x54] sm:$0xf]
      %v938 = vld [vmem:[%s922 + $0x58] sm:$0xf]
      %v939 = vld [vmem:[%s922 + $0x60] sm:$0xf]
      %v940 = vld [vmem:[%s922 + $0x64] sm:$0xf]
      %v941 = vld [vmem:[%s922 + $0x6c] sm:$0xf]
      %v942 = vld [vmem:[%s922 + $0x70] sm:$0xf]
      %v943 = vld [vmem:[%s922 + $0x78] sm:$0xf]
      %v944 = vld [vmem:[%s922 + $0x7c] sm:$0xf]
      %v945 = vld [vmem:[%s922 + $0x84] sm:$0xf]
      %v946 = vld [vmem:[%s922 + $0x88] sm:$0xf]
      %v947 = vld [vmem:[%s922 + $0x90] sm:$0xf]
      %v948 = vld [vmem:[%s922 + $0x94] sm:$0xf]
      %v949 = vld [vmem:[%s922 + $0x9c] sm:$0xf]
      %v950 = vld [vmem:[%s922 + $0xa0] sm:$0xf]
      %v951 = vld [vmem:[%s922 + $0xa8] sm:$0xf]
      %v952 = vld [vmem:[%s922 + $0xac] sm:$0xf]
      %v953 = vld [vmem:[%s922 + $0xb4] sm:$0xf]
      %v954 = vld [vmem:[%s922 + $0xb8] sm:$0xf]
      %v955 = vunpack.c.l.bf16 %v923
      %v956 = vunpack.c.l.bf16 %v924
      %v957 = vunpack.c.l.bf16 %v925
      %v958 = vunpack.c.l.bf16 %v926
      %v959 = vunpack.c.l.bf16 %v927
      %v960 = vunpack.c.l.bf16 %v928
      %v961 = vunpack.c.l.bf16 %v929
      %v962 = vunpack.c.l.bf16 %v930
      %v963 = vunpack.c.l.bf16 %v931
      %v964 = vunpack.c.l.bf16 %v932
      %v965 = vunpack.c.l.bf16 %v933
      %v966 = vunpack.c.l.bf16 %v934
      %v967 = vunpack.c.l.bf16 %v935
      %v968 = vunpack.c.l.bf16 %v936
      %v969 = vunpack.c.l.bf16 %v937
      %v970 = vunpack.c.l.bf16 %v938
      %v971 = vunpack.c.l.bf16 %v939
      %v972 = vunpack.c.l.bf16 %v940
      %v973 = vunpack.c.l.bf16 %v941
      %v974 = vunpack.c.l.bf16 %v942
      %v975 = vunpack.c.l.bf16 %v943
      %v976 = vunpack.c.l.bf16 %v944
      %v977 = vunpack.c.l.bf16 %v945
      %v978 = vunpack.c.l.bf16 %v946
      %v979 = vunpack.c.l.bf16 %v947
      %v980 = vunpack.c.l.bf16 %v948
      %v981 = vunpack.c.l.bf16 %v949
      %v982 = vunpack.c.l.bf16 %v950
      %v983 = vunpack.c.l.bf16 %v951
      %v984 = vunpack.c.l.bf16 %v952
      %v985 = vunpack.c.l.bf16 %v953
      %v986 = vunpack.c.l.bf16 %v954
      %s987 = scalar_lea.vmem %s221, 4
      %v988 = vld [vmem:[%s987] sm:$0x1]
      %v989 = vlaneseq
      %v990 = vshrl.u32 %v989, 7
      %v991 = vsub.s32 0, %v990
      %v992 = vrot.slane %v988, %v991
      %v993 = vmul.f32 %v955, %v992
      %v994 = vmul.f32 %v956, %v992
      %v995 = vmul.f32 %v957, %v992
      %v996 = vmul.f32 %v958, %v992
      %v997 = vmul.f32 %v959, %v992
      %v998 = vmul.f32 %v960, %v992
      %v999 = vmul.f32 %v961, %v992
      %v1000 = vmul.f32 %v962, %v992
      %v1001 = vmul.f32 %v963, %v992
      %v1002 = vmul.f32 %v964, %v992
      %v1003 = vmul.f32 %v965, %v992
      %v1004 = vmul.f32 %v966, %v992
      %v1005 = vmul.f32 %v967, %v992
      %v1006 = vmul.f32 %v968, %v992
      %v1007 = vmul.f32 %v969, %v992
      %v1008 = vmul.f32 %v970, %v992
      %v1009 = vmul.f32 %v971, %v992
      %v1010 = vmul.f32 %v972, %v992
      %v1011 = vmul.f32 %v973, %v992
      %v1012 = vmul.f32 %v974, %v992
      %v1013 = vmul.f32 %v975, %v992
      %v1014 = vmul.f32 %v976, %v992
      %v1015 = vmul.f32 %v977, %v992
      %v1016 = vmul.f32 %v978, %v992
      %v1017 = vmul.f32 %v979, %v992
      %v1018 = vmul.f32 %v980, %v992
      %v1019 = vmul.f32 %v981, %v992
      %v1020 = vmul.f32 %v982, %v992
      %v1021 = vmul.f32 %v983, %v992
      %v1022 = vmul.f32 %v984, %v992
      %v1023 = vmul.f32 %v985, %v992
      %v1024 = vmul.f32 %v986, %v992
      %v1025 = vadd.f32 %v890, %v993
      %v1026 = vadd.f32 %v891, %v994
      %v1027 = vadd.f32 %v892, %v995
      %v1028 = vadd.f32 %v893, %v996
      %v1029 = vadd.f32 %v894, %v997
      %v1030 = vadd.f32 %v895, %v998
      %v1031 = vadd.f32 %v896, %v999
      %v1032 = vadd.f32 %v897, %v1000
      %v1033 = vadd.f32 %v898, %v1001
      %v1034 = vadd.f32 %v899, %v1002
      %v1035 = vadd.f32 %v900, %v1003
      %v1036 = vadd.f32 %v901, %v1004
      %v1037 = vadd.f32 %v902, %v1005
      %v1038 = vadd.f32 %v903, %v1006
      %v1039 = vadd.f32 %v904, %v1007
      %v1040 = vadd.f32 %v905, %v1008
      %v1041 = vadd.f32 %v906, %v1009
      %v1042 = vadd.f32 %v907, %v1010
      %v1043 = vadd.f32 %v908, %v1011
      %v1044 = vadd.f32 %v909, %v1012
      %v1045 = vadd.f32 %v910, %v1013
      %v1046 = vadd.f32 %v911, %v1014
      %v1047 = vadd.f32 %v912, %v1015
      %v1048 = vadd.f32 %v913, %v1016
      %v1049 = vadd.f32 %v914, %v1017
      %v1050 = vadd.f32 %v915, %v1018
      %v1051 = vadd.f32 %v916, %v1019
      %v1052 = vadd.f32 %v917, %v1020
      %v1053 = vadd.f32 %v918, %v1021
      %v1054 = vadd.f32 %v919, %v1022
      %v1055 = vadd.f32 %v920, %v1023
      %v1056 = vadd.f32 %v921, %v1024
      %v1057 = vld [vmem:[%s922 + $0x8] sm:$0x1]
      %v1058 = vld [vmem:[%s922 + $0x14] sm:$0x1]
      %v1059 = vld [vmem:[%s922 + $0x20] sm:$0x1]
      %v1060 = vld [vmem:[%s922 + $0x2c] sm:$0x1]
      %v1061 = vld [vmem:[%s922 + $0x38] sm:$0x1]
      %v1062 = vld [vmem:[%s922 + $0x44] sm:$0x1]
      %v1063 = vld [vmem:[%s922 + $0x50] sm:$0x1]
      %v1064 = vld [vmem:[%s922 + $0x5c] sm:$0x1]
      %v1065 = vld [vmem:[%s922 + $0x68] sm:$0x1]
      %v1066 = vld [vmem:[%s922 + $0x74] sm:$0x1]
      %v1067 = vld [vmem:[%s922 + $0x80] sm:$0x1]
      %v1068 = vld [vmem:[%s922 + $0x8c] sm:$0x1]
      %v1069 = vld [vmem:[%s922 + $0x98] sm:$0x1]
      %v1070 = vld [vmem:[%s922 + $0xa4] sm:$0x1]
      %v1071 = vld [vmem:[%s922 + $0xb0] sm:$0x1]
      %v1072 = vld [vmem:[%s922 + $0xbc] sm:$0x1]
      %v1073 = vunpack.c.l.bf16 %v1057
      %v1074 = vunpack.c.l.bf16 %v1058
      %v1075 = vunpack.c.l.bf16 %v1059
      %v1076 = vunpack.c.l.bf16 %v1060
      %v1077 = vunpack.c.l.bf16 %v1061
      %v1078 = vunpack.c.l.bf16 %v1062
      %v1079 = vunpack.c.l.bf16 %v1063
      %v1080 = vunpack.c.l.bf16 %v1064
      %v1081 = vunpack.c.l.bf16 %v1065
      %v1082 = vunpack.c.l.bf16 %v1066
      %v1083 = vunpack.c.l.bf16 %v1067
      %v1084 = vunpack.c.l.bf16 %v1068
      %v1085 = vunpack.c.l.bf16 %v1069
      %v1086 = vunpack.c.l.bf16 %v1070
      %v1087 = vunpack.c.l.bf16 %v1071
      %v1088 = vunpack.c.l.bf16 %v1072
      %v1089 = vld [vmem:[%s987 + $0x1] sm:$0x1]
      %v1090 = vlaneseq
      %v1091 = vshrl.u32 %v1090, 7
      %v1092 = vsub.s32 0, %v1091
      %v1093 = vrot.slane %v1089, %v1092
      %v1094 = vmul.f32 %v955, %v1093
      %v1095 = vmul.f32 %v956, %v1093
      %v1096 = vmul.f32 %v1073, %v1093
      %v1097 = vmul.f32 %v957, %v1093
      %v1098 = vmul.f32 %v958, %v1093
      %v1099 = vmul.f32 %v1074, %v1093
      %v1100 = vmul.f32 %v959, %v1093
      %v1101 = vmul.f32 %v960, %v1093
      %v1102 = vmul.f32 %v1075, %v1093
      %v1103 = vmul.f32 %v961, %v1093
      %v1104 = vmul.f32 %v962, %v1093
      %v1105 = vmul.f32 %v1076, %v1093
      %v1106 = vmul.f32 %v963, %v1093
      %v1107 = vmul.f32 %v964, %v1093
      %v1108 = vmul.f32 %v1077, %v1093
      %v1109 = vmul.f32 %v965, %v1093
      %v1110 = vmul.f32 %v966, %v1093
      %v1111 = vmul.f32 %v1078, %v1093
      %v1112 = vmul.f32 %v967, %v1093
      %v1113 = vmul.f32 %v968, %v1093
      %v1114 = vmul.f32 %v1079, %v1093
      %v1115 = vmul.f32 %v969, %v1093
      %v1116 = vmul.f32 %v970, %v1093
      %v1117 = vmul.f32 %v1080, %v1093
      %v1118 = vmul.f32 %v971, %v1093
      %v1119 = vmul.f32 %v972, %v1093
      %v1120 = vmul.f32 %v1081, %v1093
      %v1121 = vmul.f32 %v973, %v1093
      %v1122 = vmul.f32 %v974, %v1093
      %v1123 = vmul.f32 %v1082, %v1093
      %v1124 = vmul.f32 %v975, %v1093
      %v1125 = vmul.f32 %v976, %v1093
      %v1126 = vmul.f32 %v1083, %v1093
      %v1127 = vmul.f32 %v977, %v1093
      %v1128 = vmul.f32 %v978, %v1093
      %v1129 = vmul.f32 %v1084, %v1093
      %v1130 = vmul.f32 %v979, %v1093
      %v1131 = vmul.f32 %v980, %v1093
      %v1132 = vmul.f32 %v1085, %v1093
      %v1133 = vmul.f32 %v981, %v1093
      %v1134 = vmul.f32 %v982, %v1093
      %v1135 = vmul.f32 %v1086, %v1093
      %v1136 = vmul.f32 %v983, %v1093
      %v1137 = vmul.f32 %v984, %v1093
      %v1138 = vmul.f32 %v1087, %v1093
      %v1139 = vmul.f32 %v985, %v1093
      %v1140 = vmul.f32 %v986, %v1093
      %v1141 = vmul.f32 %v1088, %v1093
      %v1190 = vrot.slane %v1094, 1
      %v1191 = vrot.slane %v1095, 1
      %v1192 = vsel %vm499, %v1190, %v1191
      %v1193 = vrot.slane %v1096, 1
      %v1194 = vsel %vm499, %v1191, %v1193
      %v1195 = vrot.slane %v1097, 1
      %v1196 = vrot.slane %v1098, 1
      %v1197 = vsel %vm499, %v1195, %v1196
      %v1198 = vrot.slane %v1099, 1
      %v1199 = vsel %vm499, %v1196, %v1198
      %v1200 = vrot.slane %v1100, 1
      %v1201 = vrot.slane %v1101, 1
      %v1202 = vsel %vm499, %v1200, %v1201
      %v1203 = vrot.slane %v1102, 1
      %v1204 = vsel %vm499, %v1201, %v1203
      %v1205 = vrot.slane %v1103, 1
      %v1206 = vrot.slane %v1104, 1
      %v1207 = vsel %vm499, %v1205, %v1206
      %v1208 = vrot.slane %v1105, 1
      %v1209 = vsel %vm499, %v1206, %v1208
      %v1210 = vrot.slane %v1106, 1
      %v1211 = vrot.slane %v1107, 1
      %v1212 = vsel %vm499, %v1210, %v1211
      %v1213 = vrot.slane %v1108, 1
      %v1214 = vsel %vm499, %v1211, %v1213
      %v1215 = vrot.slane %v1109, 1
      %v1216 = vrot.slane %v1110, 1
      %v1217 = vsel %vm499, %v1215, %v1216
      %v1218 = vrot.slane %v1111, 1
      %v1219 = vsel %vm499, %v1216, %v1218
      %v1220 = vrot.slane %v1112, 1
      %v1221 = vrot.slane %v1113, 1
      %v1222 = vsel %vm499, %v1220, %v1221
      %v1223 = vrot.slane %v1114, 1
      %v1224 = vsel %vm499, %v1221, %v1223
      %v1225 = vrot.slane %v1115, 1
      %v1226 = vrot.slane %v1116, 1
      %v1227 = vsel %vm499, %v1225, %v1226
      %v1228 = vrot.slane %v1117, 1
      %v1229 = vsel %vm499, %v1226, %v1228
      %v1230 = vrot.slane %v1118, 1
      %v1231 = vrot.slane %v1119, 1
      %v1232 = vsel %vm499, %v1230, %v1231
      %v1233 = vrot.slane %v1120, 1
      %v1234 = vsel %vm499, %v1231, %v1233
      %v1235 = vrot.slane %v1121, 1
      %v1236 = vrot.slane %v1122, 1
      %v1237 = vsel %vm499, %v1235, %v1236
      %v1238 = vrot.slane %v1123, 1
      %v1239 = vsel %vm499, %v1236, %v1238
      %v1240 = vrot.slane %v1124, 1
      %v1241 = vrot.slane %v1125, 1
      %v1242 = vsel %vm499, %v1240, %v1241
      %v1243 = vrot.slane %v1126, 1
      %v1244 = vsel %vm499, %v1241, %v1243
      %v1245 = vrot.slane %v1127, 1
      %v1246 = vrot.slane %v1128, 1
      %v1247 = vsel %vm499, %v1245, %v1246
      %v1248 = vrot.slane %v1129, 1
      %v1249 = vsel %vm499, %v1246, %v1248
      %v1250 = vrot.slane %v1130, 1
      %v1251 = vrot.slane %v1131, 1
      %v1252 = vsel %vm499, %v1250, %v1251
      %v1253 = vrot.slane %v1132, 1
      %v1254 = vsel %vm499, %v1251, %v1253
      %v1255 = vrot.slane %v1133, 1
      %v1256 = vrot.slane %v1134, 1
      %v1257 = vsel %vm499, %v1255, %v1256
      %v1258 = vrot.slane %v1135, 1
      %v1259 = vsel %vm499, %v1256, %v1258
      %v1260 = vrot.slane %v1136, 1
      %v1261 = vrot.slane %v1137, 1
      %v1262 = vsel %vm499, %v1260, %v1261
      %v1263 = vrot.slane %v1138, 1
      %v1264 = vsel %vm499, %v1261, %v1263
      %v1265 = vrot.slane %v1139, 1
      %v1266 = vrot.slane %v1140, 1
      %v1267 = vsel %vm499, %v1265, %v1266
      %v1268 = vrot.slane %v1141, 1
      %v1269 = vsel %vm499, %v1266, %v1268
      %v1302 = vadd.f32 %v1025, %v1192
      %v1303 = vadd.f32 %v1026, %v1194
      %v1304 = vadd.f32 %v1027, %v1197
      %v1305 = vadd.f32 %v1028, %v1199
      %v1306 = vadd.f32 %v1029, %v1202
      %v1307 = vadd.f32 %v1030, %v1204
      %v1308 = vadd.f32 %v1031, %v1207
      %v1309 = vadd.f32 %v1032, %v1209
      %v1310 = vadd.f32 %v1033, %v1212
      %v1311 = vadd.f32 %v1034, %v1214
      %v1312 = vadd.f32 %v1035, %v1217
      %v1313 = vadd.f32 %v1036, %v1219
      %v1314 = vadd.f32 %v1037, %v1222
      %v1315 = vadd.f32 %v1038, %v1224
      %v1316 = vadd.f32 %v1039, %v1227
      %v1317 = vadd.f32 %v1040, %v1229
      %v1318 = vadd.f32 %v1041, %v1232
      %v1319 = vadd.f32 %v1042, %v1234
      %v1320 = vadd.f32 %v1043, %v1237
      %v1321 = vadd.f32 %v1044, %v1239
      %v1322 = vadd.f32 %v1045, %v1242
      %v1323 = vadd.f32 %v1046, %v1244
      %v1324 = vadd.f32 %v1047, %v1247
      %v1325 = vadd.f32 %v1048, %v1249
      %v1326 = vadd.f32 %v1049, %v1252
      %v1327 = vadd.f32 %v1050, %v1254
      %v1328 = vadd.f32 %v1051, %v1257
      %v1329 = vadd.f32 %v1052, %v1259
      %v1330 = vadd.f32 %v1053, %v1262
      %v1331 = vadd.f32 %v1054, %v1264
      %v1332 = vadd.f32 %v1055, %v1267
      %v1333 = vadd.f32 %v1056, %v1269
      %v1334 = vld [vmem:[%s922] sm:$0xe]
      %v1335 = vld [vmem:[%s922 + $0xc] sm:$0xe]
      %v1336 = vld [vmem:[%s922 + $0x18] sm:$0xe]
      %v1337 = vld [vmem:[%s922 + $0x24] sm:$0xe]
      %v1338 = vld [vmem:[%s922 + $0x30] sm:$0xe]
      %v1339 = vld [vmem:[%s922 + $0x3c] sm:$0xe]
      %v1340 = vld [vmem:[%s922 + $0x48] sm:$0xe]
      %v1341 = vld [vmem:[%s922 + $0x54] sm:$0xe]
      %v1342 = vld [vmem:[%s922 + $0x60] sm:$0xe]
      %v1343 = vld [vmem:[%s922 + $0x6c] sm:$0xe]
      %v1344 = vld [vmem:[%s922 + $0x78] sm:$0xe]
      %v1345 = vld [vmem:[%s922 + $0x84] sm:$0xe]
      %v1346 = vld [vmem:[%s922 + $0x90] sm:$0xe]
      %v1347 = vld [vmem:[%s922 + $0x9c] sm:$0xe]
      %v1348 = vld [vmem:[%s922 + $0xa8] sm:$0xe]
      %v1349 = vld [vmem:[%s922 + $0xb4] sm:$0xe]
      %v1350 = vunpack.c.l.bf16 %v1334
      %v1351 = vunpack.c.l.bf16 %v1335
      %v1352 = vunpack.c.l.bf16 %v1336
      %v1353 = vunpack.c.l.bf16 %v1337
      %v1354 = vunpack.c.l.bf16 %v1338
      %v1355 = vunpack.c.l.bf16 %v1339
      %v1356 = vunpack.c.l.bf16 %v1340
      %v1357 = vunpack.c.l.bf16 %v1341
      %v1358 = vunpack.c.l.bf16 %v1342
      %v1359 = vunpack.c.l.bf16 %v1343
      %v1360 = vunpack.c.l.bf16 %v1344
      %v1361 = vunpack.c.l.bf16 %v1345
      %v1362 = vunpack.c.l.bf16 %v1346
      %v1363 = vunpack.c.l.bf16 %v1347
      %v1364 = vunpack.c.l.bf16 %v1348
      %v1365 = vunpack.c.l.bf16 %v1349
      %v1366 = vld [vmem:[%s987 + $0x2] sm:$0x1]
      %v1367 = vlaneseq
      %v1368 = vshrl.u32 %v1367, 7
      %v1369 = vsub.s32 0, %v1368
      %v1370 = vrot.slane %v1366, %v1369
      %v1371 = vmul.f32 %v1350, %v1370
      %v1372 = vmul.f32 %v956, %v1370
      %v1373 = vmul.f32 %v1073, %v1370
      %v1374 = vmul.f32 %v1351, %v1370
      %v1375 = vmul.f32 %v958, %v1370
      %v1376 = vmul.f32 %v1074, %v1370
      %v1377 = vmul.f32 %v1352, %v1370
      %v1378 = vmul.f32 %v960, %v1370
      %v1379 = vmul.f32 %v1075, %v1370
      %v1380 = vmul.f32 %v1353, %v1370
      %v1381 = vmul.f32 %v962, %v1370
      %v1382 = vmul.f32 %v1076, %v1370
      %v1383 = vmul.f32 %v1354, %v1370
      %v1384 = vmul.f32 %v964, %v1370
      %v1385 = vmul.f32 %v1077, %v1370
      %v1386 = vmul.f32 %v1355, %v1370
      %v1387 = vmul.f32 %v966, %v1370
      %v1388 = vmul.f32 %v1078, %v1370
      %v1389 = vmul.f32 %v1356, %v1370
      %v1390 = vmul.f32 %v968, %v1370
      %v1391 = vmul.f32 %v1079, %v1370
      %v1392 = vmul.f32 %v1357, %v1370
      %v1393 = vmul.f32 %v970, %v1370
      %v1394 = vmul.f32 %v1080, %v1370
      %v1395 = vmul.f32 %v1358, %v1370
      %v1396 = vmul.f32 %v972, %v1370
      %v1397 = vmul.f32 %v1081, %v1370
      %v1398 = vmul.f32 %v1359, %v1370
      %v1399 = vmul.f32 %v974, %v1370
      %v1400 = vmul.f32 %v1082, %v1370
      %v1401 = vmul.f32 %v1360, %v1370
      %v1402 = vmul.f32 %v976, %v1370
      %v1403 = vmul.f32 %v1083, %v1370
      %v1404 = vmul.f32 %v1361, %v1370
      %v1405 = vmul.f32 %v978, %v1370
      %v1406 = vmul.f32 %v1084, %v1370
      %v1407 = vmul.f32 %v1362, %v1370
      %v1408 = vmul.f32 %v980, %v1370
      %v1409 = vmul.f32 %v1085, %v1370
      %v1410 = vmul.f32 %v1363, %v1370
      %v1411 = vmul.f32 %v982, %v1370
      %v1412 = vmul.f32 %v1086, %v1370
      %v1413 = vmul.f32 %v1364, %v1370
      %v1414 = vmul.f32 %v984, %v1370
      %v1415 = vmul.f32 %v1087, %v1370
      %v1416 = vmul.f32 %v1365, %v1370
      %v1417 = vmul.f32 %v986, %v1370
      %v1418 = vmul.f32 %v1088, %v1370
      %v1467 = vrot.slane %v1371, 2
      %v1468 = vrot.slane %v1372, 2
      %v1469 = vsel %vm777, %v1467, %v1468
      %v1470 = vrot.slane %v1373, 2
      %v1471 = vsel %vm777, %v1468, %v1470
      %v1472 = vrot.slane %v1374, 2
      %v1473 = vrot.slane %v1375, 2
      %v1474 = vsel %vm777, %v1472, %v1473
      %v1475 = vrot.slane %v1376, 2
      %v1476 = vsel %vm777, %v1473, %v1475
      %v1477 = vrot.slane %v1377, 2
      %v1478 = vrot.slane %v1378, 2
      %v1479 = vsel %vm777, %v1477, %v1478
      %v1480 = vrot.slane %v1379, 2
      %v1481 = vsel %vm777, %v1478, %v1480
      %v1482 = vrot.slane %v1380, 2
      %v1483 = vrot.slane %v1381, 2
      %v1484 = vsel %vm777, %v1482, %v1483
      %v1485 = vrot.slane %v1382, 2
      %v1486 = vsel %vm777, %v1483, %v1485
      %v1487 = vrot.slane %v1383, 2
      %v1488 = vrot.slane %v1384, 2
      %v1489 = vsel %vm777, %v1487, %v1488
      %v1490 = vrot.slane %v1385, 2
      %v1491 = vsel %vm777, %v1488, %v1490
      %v1492 = vrot.slane %v1386, 2
      %v1493 = vrot.slane %v1387, 2
      %v1494 = vsel %vm777, %v1492, %v1493
      %v1495 = vrot.slane %v1388, 2
      %v1496 = vsel %vm777, %v1493, %v1495
      %v1497 = vrot.slane %v1389, 2
      %v1498 = vrot.slane %v1390, 2
      %v1499 = vsel %vm777, %v1497, %v1498
      %v1500 = vrot.slane %v1391, 2
      %v1501 = vsel %vm777, %v1498, %v1500
      %v1502 = vrot.slane %v1392, 2
      %v1503 = vrot.slane %v1393, 2
      %v1504 = vsel %vm777, %v1502, %v1503
      %v1505 = vrot.slane %v1394, 2
      %v1506 = vsel %vm777, %v1503, %v1505
      %v1507 = vrot.slane %v1395, 2
      %v1508 = vrot.slane %v1396, 2
      %v1509 = vsel %vm777, %v1507, %v1508
      %v1510 = vrot.slane %v1397, 2
      %v1511 = vsel %vm777, %v1508, %v1510
      %v1512 = vrot.slane %v1398, 2
      %v1513 = vrot.slane %v1399, 2
      %v1514 = vsel %vm777, %v1512, %v1513
      %v1515 = vrot.slane %v1400, 2
      %v1516 = vsel %vm777, %v1513, %v1515
      %v1517 = vrot.slane %v1401, 2
      %v1518 = vrot.slane %v1402, 2
      %v1519 = vsel %vm777, %v1517, %v1518
      %v1520 = vrot.slane %v1403, 2
      %v1521 = vsel %vm777, %v1518, %v1520
      %v1522 = vrot.slane %v1404, 2
      %v1523 = vrot.slane %v1405, 2
      %v1524 = vsel %vm777, %v1522, %v1523
      %v1525 = vrot.slane %v1406, 2
      %v1526 = vsel %vm777, %v1523, %v1525
      %v1527 = vrot.slane %v1407, 2
      %v1528 = vrot.slane %v1408, 2
      %v1529 = vsel %vm777, %v1527, %v1528
      %v1530 = vrot.slane %v1409, 2
      %v1531 = vsel %vm777, %v1528, %v1530
      %v1532 = vrot.slane %v1410, 2
      %v1533 = vrot.slane %v1411, 2
      %v1534 = vsel %vm777, %v1532, %v1533
      %v1535 = vrot.slane %v1412, 2
      %v1536 = vsel %vm777, %v1533, %v1535
      %v1537 = vrot.slane %v1413, 2
      %v1538 = vrot.slane %v1414, 2
      %v1539 = vsel %vm777, %v1537, %v1538
      %v1540 = vrot.slane %v1415, 2
      %v1541 = vsel %vm777, %v1538, %v1540
      %v1542 = vrot.slane %v1416, 2
      %v1543 = vrot.slane %v1417, 2
      %v1544 = vsel %vm777, %v1542, %v1543
      %v1545 = vrot.slane %v1418, 2
      %v1546 = vsel %vm777, %v1543, %v1545
      %v1579 = vadd.f32 %v1302, %v1469
      %v1580 = vadd.f32 %v1303, %v1471
      %v1581 = vadd.f32 %v1304, %v1474
      %v1582 = vadd.f32 %v1305, %v1476
      %v1583 = vadd.f32 %v1306, %v1479
      %v1584 = vadd.f32 %v1307, %v1481
      %v1585 = vadd.f32 %v1308, %v1484
      %v1586 = vadd.f32 %v1309, %v1486
      %v1587 = vadd.f32 %v1310, %v1489
      %v1588 = vadd.f32 %v1311, %v1491
      %v1589 = vadd.f32 %v1312, %v1494
      %v1590 = vadd.f32 %v1313, %v1496
      %v1591 = vadd.f32 %v1314, %v1499
      %v1592 = vadd.f32 %v1315, %v1501
      %v1593 = vadd.f32 %v1316, %v1504
      %v1594 = vadd.f32 %v1317, %v1506
      %v1595 = vadd.f32 %v1318, %v1509
      %v1596 = vadd.f32 %v1319, %v1511
      %v1597 = vadd.f32 %v1320, %v1514
      %v1598 = vadd.f32 %v1321, %v1516
      %v1599 = vadd.f32 %v1322, %v1519
      %v1600 = vadd.f32 %v1323, %v1521
      %v1601 = vadd.f32 %v1324, %v1524
      %v1602 = vadd.f32 %v1325, %v1526
      %v1603 = vadd.f32 %v1326, %v1529
      %v1604 = vadd.f32 %v1327, %v1531
      %v1605 = vadd.f32 %v1328, %v1534
      %v1606 = vadd.f32 %v1329, %v1536
      %v1607 = vadd.f32 %v1330, %v1539
      %v1608 = vadd.f32 %v1331, %v1541
      %v1609 = vadd.f32 %v1332, %v1544
      %v1610 = vadd.f32 %v1333, %v1546
      %s1611 = scalar_lea.vmem %s217, 24
      %v1612 = vld [vmem:[%s1611] sm:$0xf]
      %v1613 = vld [vmem:[%s1611 + $0x4] sm:$0xf]
      %v1614 = vld [vmem:[%s1611 + $0xc] sm:$0xf]
      %v1615 = vld [vmem:[%s1611 + $0x10] sm:$0xf]
      %v1616 = vld [vmem:[%s1611 + $0x18] sm:$0xf]
      %v1617 = vld [vmem:[%s1611 + $0x1c] sm:$0xf]
      %v1618 = vld [vmem:[%s1611 + $0x24] sm:$0xf]
      %v1619 = vld [vmem:[%s1611 + $0x28] sm:$0xf]
      %v1620 = vld [vmem:[%s1611 + $0x30] sm:$0xf]
      %v1621 = vld [vmem:[%s1611 + $0x34] sm:$0xf]
      %v1622 = vld [vmem:[%s1611 + $0x3c] sm:$0xf]
      %v1623 = vld [vmem:[%s1611 + $0x40] sm:$0xf]
      %v1624 = vld [vmem:[%s1611 + $0x48] sm:$0xf]
      %v1625 = vld [vmem:[%s1611 + $0x4c] sm:$0xf]
      %v1626 = vld [vmem:[%s1611 + $0x54] sm:$0xf]
      %v1627 = vld [vmem:[%s1611 + $0x58] sm:$0xf]
      %v1628 = vld [vmem:[%s1611 + $0x60] sm:$0xf]
      %v1629 = vld [vmem:[%s1611 + $0x64] sm:$0xf]
      %v1630 = vld [vmem:[%s1611 + $0x6c] sm:$0xf]
      %v1631 = vld [vmem:[%s1611 + $0x70] sm:$0xf]
      %v1632 = vld [vmem:[%s1611 + $0x78] sm:$0xf]
      %v1633 = vld [vmem:[%s1611 + $0x7c] sm:$0xf]
      %v1634 = vld [vmem:[%s1611 + $0x84] sm:$0xf]
      %v1635 = vld [vmem:[%s1611 + $0x88] sm:$0xf]
      %v1636 = vld [vmem:[%s1611 + $0x90] sm:$0xf]
      %v1637 = vld [vmem:[%s1611 + $0x94] sm:$0xf]
      %v1638 = vld [vmem:[%s1611 + $0x9c] sm:$0xf]
      %v1639 = vld [vmem:[%s1611 + $0xa0] sm:$0xf]
      %v1640 = vld [vmem:[%s1611 + $0xa8] sm:$0xf]
      %v1641 = vld [vmem:[%s1611 + $0xac] sm:$0xf]
      %v1642 = vld [vmem:[%s1611 + $0xb4] sm:$0xf]
      %v1643 = vld [vmem:[%s1611 + $0xb8] sm:$0xf]
      %v1644 = vunpack.c.l.bf16 %v1612
      %v1645 = vunpack.c.l.bf16 %v1613
      %v1646 = vunpack.c.l.bf16 %v1614
      %v1647 = vunpack.c.l.bf16 %v1615
      %v1648 = vunpack.c.l.bf16 %v1616
      %v1649 = vunpack.c.l.bf16 %v1617
      %v1650 = vunpack.c.l.bf16 %v1618
      %v1651 = vunpack.c.l.bf16 %v1619
      %v1652 = vunpack.c.l.bf16 %v1620
      %v1653 = vunpack.c.l.bf16 %v1621
      %v1654 = vunpack.c.l.bf16 %v1622
      %v1655 = vunpack.c.l.bf16 %v1623
      %v1656 = vunpack.c.l.bf16 %v1624
      %v1657 = vunpack.c.l.bf16 %v1625
      %v1658 = vunpack.c.l.bf16 %v1626
      %v1659 = vunpack.c.l.bf16 %v1627
      %v1660 = vunpack.c.l.bf16 %v1628
      %v1661 = vunpack.c.l.bf16 %v1629
      %v1662 = vunpack.c.l.bf16 %v1630
      %v1663 = vunpack.c.l.bf16 %v1631
      %v1664 = vunpack.c.l.bf16 %v1632
      %v1665 = vunpack.c.l.bf16 %v1633
      %v1666 = vunpack.c.l.bf16 %v1634
      %v1667 = vunpack.c.l.bf16 %v1635
      %v1668 = vunpack.c.l.bf16 %v1636
      %v1669 = vunpack.c.l.bf16 %v1637
      %v1670 = vunpack.c.l.bf16 %v1638
      %v1671 = vunpack.c.l.bf16 %v1639
      %v1672 = vunpack.c.l.bf16 %v1640
      %v1673 = vunpack.c.l.bf16 %v1641
      %v1674 = vunpack.c.l.bf16 %v1642
      %v1675 = vunpack.c.l.bf16 %v1643
      %s1676 = scalar_lea.vmem %s221, 8
      %v1677 = vld [vmem:[%s1676] sm:$0x1]
      %v1678 = vlaneseq
      %v1679 = vshrl.u32 %v1678, 7
      %v1680 = vsub.s32 0, %v1679
      %v1681 = vrot.slane %v1677, %v1680
      %v1682 = vmul.f32 %v1644, %v1681
      %v1683 = vmul.f32 %v1645, %v1681
      %v1684 = vmul.f32 %v1646, %v1681
      %v1685 = vmul.f32 %v1647, %v1681
      %v1686 = vmul.f32 %v1648, %v1681
      %v1687 = vmul.f32 %v1649, %v1681
      %v1688 = vmul.f32 %v1650, %v1681
      %v1689 = vmul.f32 %v1651, %v1681
      %v1690 = vmul.f32 %v1652, %v1681
      %v1691 = vmul.f32 %v1653, %v1681
      %v1692 = vmul.f32 %v1654, %v1681
      %v1693 = vmul.f32 %v1655, %v1681
      %v1694 = vmul.f32 %v1656, %v1681
      %v1695 = vmul.f32 %v1657, %v1681
      %v1696 = vmul.f32 %v1658, %v1681
      %v1697 = vmul.f32 %v1659, %v1681
      %v1698 = vmul.f32 %v1660, %v1681
      %v1699 = vmul.f32 %v1661, %v1681
      %v1700 = vmul.f32 %v1662, %v1681
      %v1701 = vmul.f32 %v1663, %v1681
      %v1702 = vmul.f32 %v1664, %v1681
      %v1703 = vmul.f32 %v1665, %v1681
      %v1704 = vmul.f32 %v1666, %v1681
      %v1705 = vmul.f32 %v1667, %v1681
      %v1706 = vmul.f32 %v1668, %v1681
      %v1707 = vmul.f32 %v1669, %v1681
      %v1708 = vmul.f32 %v1670, %v1681
      %v1709 = vmul.f32 %v1671, %v1681
      %v1710 = vmul.f32 %v1672, %v1681
      %v1711 = vmul.f32 %v1673, %v1681
      %v1712 = vmul.f32 %v1674, %v1681
      %v1713 = vmul.f32 %v1675, %v1681
      %v1714 = vadd.f32 %v1579, %v1682
      %v1715 = vadd.f32 %v1580, %v1683
      %v1716 = vadd.f32 %v1581, %v1684
      %v1717 = vadd.f32 %v1582, %v1685
      %v1718 = vadd.f32 %v1583, %v1686
      %v1719 = vadd.f32 %v1584, %v1687
      %v1720 = vadd.f32 %v1585, %v1688
      %v1721 = vadd.f32 %v1586, %v1689
      %v1722 = vadd.f32 %v1587, %v1690
      %v1723 = vadd.f32 %v1588, %v1691
      %v1724 = vadd.f32 %v1589, %v1692
      %v1725 = vadd.f32 %v1590, %v1693
      %v1726 = vadd.f32 %v1591, %v1694
      %v1727 = vadd.f32 %v1592, %v1695
      %v1728 = vadd.f32 %v1593, %v1696
      %v1729 = vadd.f32 %v1594, %v1697
      %v1730 = vadd.f32 %v1595, %v1698
      %v1731 = vadd.f32 %v1596, %v1699
      %v1732 = vadd.f32 %v1597, %v1700
      %v1733 = vadd.f32 %v1598, %v1701
      %v1734 = vadd.f32 %v1599, %v1702
      %v1735 = vadd.f32 %v1600, %v1703
      %v1736 = vadd.f32 %v1601, %v1704
      %v1737 = vadd.f32 %v1602, %v1705
      %v1738 = vadd.f32 %v1603, %v1706
      %v1739 = vadd.f32 %v1604, %v1707
      %v1740 = vadd.f32 %v1605, %v1708
      %v1741 = vadd.f32 %v1606, %v1709
      %v1742 = vadd.f32 %v1607, %v1710
      %v1743 = vadd.f32 %v1608, %v1711
      %v1744 = vadd.f32 %v1609, %v1712
      %v1745 = vadd.f32 %v1610, %v1713
      %v1746 = vld [vmem:[%s1611 + $0x8] sm:$0x1]
      %v1747 = vld [vmem:[%s1611 + $0x14] sm:$0x1]
      %v1748 = vld [vmem:[%s1611 + $0x20] sm:$0x1]
      %v1749 = vld [vmem:[%s1611 + $0x2c] sm:$0x1]
      %v1750 = vld [vmem:[%s1611 + $0x38] sm:$0x1]
      %v1751 = vld [vmem:[%s1611 + $0x44] sm:$0x1]
      %v1752 = vld [vmem:[%s1611 + $0x50] sm:$0x1]
      %v1753 = vld [vmem:[%s1611 + $0x5c] sm:$0x1]
      %v1754 = vld [vmem:[%s1611 + $0x68] sm:$0x1]
      %v1755 = vld [vmem:[%s1611 + $0x74] sm:$0x1]
      %v1756 = vld [vmem:[%s1611 + $0x80] sm:$0x1]
      %v1757 = vld [vmem:[%s1611 + $0x8c] sm:$0x1]
      %v1758 = vld [vmem:[%s1611 + $0x98] sm:$0x1]
      %v1759 = vld [vmem:[%s1611 + $0xa4] sm:$0x1]
      %v1760 = vld [vmem:[%s1611 + $0xb0] sm:$0x1]
      %v1761 = vld [vmem:[%s1611 + $0xbc] sm:$0x1]
      %v1762 = vunpack.c.l.bf16 %v1746
      %v1763 = vunpack.c.l.bf16 %v1747
      %v1764 = vunpack.c.l.bf16 %v1748
      %v1765 = vunpack.c.l.bf16 %v1749
      %v1766 = vunpack.c.l.bf16 %v1750
      %v1767 = vunpack.c.l.bf16 %v1751
      %v1768 = vunpack.c.l.bf16 %v1752
      %v1769 = vunpack.c.l.bf16 %v1753
      %v1770 = vunpack.c.l.bf16 %v1754
      %v1771 = vunpack.c.l.bf16 %v1755
      %v1772 = vunpack.c.l.bf16 %v1756
      %v1773 = vunpack.c.l.bf16 %v1757
      %v1774 = vunpack.c.l.bf16 %v1758
      %v1775 = vunpack.c.l.bf16 %v1759
      %v1776 = vunpack.c.l.bf16 %v1760
      %v1777 = vunpack.c.l.bf16 %v1761
      %v1778 = vld [vmem:[%s1676 + $0x1] sm:$0x1]
      %v1779 = vlaneseq
      %v1780 = vshrl.u32 %v1779, 7
      %v1781 = vsub.s32 0, %v1780
      %v1782 = vrot.slane %v1778, %v1781
      %v1783 = vmul.f32 %v1644, %v1782
      %v1784 = vmul.f32 %v1645, %v1782
      %v1785 = vmul.f32 %v1762, %v1782
      %v1786 = vmul.f32 %v1646, %v1782
      %v1787 = vmul.f32 %v1647, %v1782
      %v1788 = vmul.f32 %v1763, %v1782
      %v1789 = vmul.f32 %v1648, %v1782
      %v1790 = vmul.f32 %v1649, %v1782
      %v1791 = vmul.f32 %v1764, %v1782
      %v1792 = vmul.f32 %v1650, %v1782
      %v1793 = vmul.f32 %v1651, %v1782
      %v1794 = vmul.f32 %v1765, %v1782
      %v1795 = vmul.f32 %v1652, %v1782
      %v1796 = vmul.f32 %v1653, %v1782
      %v1797 = vmul.f32 %v1766, %v1782
      %v1798 = vmul.f32 %v1654, %v1782
      %v1799 = vmul.f32 %v1655, %v1782
      %v1800 = vmul.f32 %v1767, %v1782
      %v1801 = vmul.f32 %v1656, %v1782
      %v1802 = vmul.f32 %v1657, %v1782
      %v1803 = vmul.f32 %v1768, %v1782
      %v1804 = vmul.f32 %v1658, %v1782
      %v1805 = vmul.f32 %v1659, %v1782
      %v1806 = vmul.f32 %v1769, %v1782
      %v1807 = vmul.f32 %v1660, %v1782
      %v1808 = vmul.f32 %v1661, %v1782
      %v1809 = vmul.f32 %v1770, %v1782
      %v1810 = vmul.f32 %v1662, %v1782
      %v1811 = vmul.f32 %v1663, %v1782
      %v1812 = vmul.f32 %v1771, %v1782
      %v1813 = vmul.f32 %v1664, %v1782
      %v1814 = vmul.f32 %v1665, %v1782
      %v1815 = vmul.f32 %v1772, %v1782
      %v1816 = vmul.f32 %v1666, %v1782
      %v1817 = vmul.f32 %v1667, %v1782
      %v1818 = vmul.f32 %v1773, %v1782
      %v1819 = vmul.f32 %v1668, %v1782
      %v1820 = vmul.f32 %v1669, %v1782
      %v1821 = vmul.f32 %v1774, %v1782
      %v1822 = vmul.f32 %v1670, %v1782
      %v1823 = vmul.f32 %v1671, %v1782
      %v1824 = vmul.f32 %v1775, %v1782
      %v1825 = vmul.f32 %v1672, %v1782
      %v1826 = vmul.f32 %v1673, %v1782
      %v1827 = vmul.f32 %v1776, %v1782
      %v1828 = vmul.f32 %v1674, %v1782
      %v1829 = vmul.f32 %v1675, %v1782
      %v1830 = vmul.f32 %v1777, %v1782
      %v1879 = vrot.slane %v1783, 1
      %v1880 = vrot.slane %v1784, 1
      %v1881 = vsel %vm499, %v1879, %v1880
      %v1882 = vrot.slane %v1785, 1
      %v1883 = vsel %vm499, %v1880, %v1882
      %v1884 = vrot.slane %v1786, 1
      %v1885 = vrot.slane %v1787, 1
      %v1886 = vsel %vm499, %v1884, %v1885
      %v1887 = vrot.slane %v1788, 1
      %v1888 = vsel %vm499, %v1885, %v1887
      %v1889 = vrot.slane %v1789, 1
      %v1890 = vrot.slane %v1790, 1
      %v1891 = vsel %vm499, %v1889, %v1890
      %v1892 = vrot.slane %v1791, 1
      %v1893 = vsel %vm499, %v1890, %v1892
      %v1894 = vrot.slane %v1792, 1
      %v1895 = vrot.slane %v1793, 1
      %v1896 = vsel %vm499, %v1894, %v1895
      %v1897 = vrot.slane %v1794, 1
      %v1898 = vsel %vm499, %v1895, %v1897
      %v1899 = vrot.slane %v1795, 1
      %v1900 = vrot.slane %v1796, 1
      %v1901 = vsel %vm499, %v1899, %v1900
      %v1902 = vrot.slane %v1797, 1
      %v1903 = vsel %vm499, %v1900, %v1902
      %v1904 = vrot.slane %v1798, 1
      %v1905 = vrot.slane %v1799, 1
      %v1906 = vsel %vm499, %v1904, %v1905
      %v1907 = vrot.slane %v1800, 1
      %v1908 = vsel %vm499, %v1905, %v1907
      %v1909 = vrot.slane %v1801, 1
      %v1910 = vrot.slane %v1802, 1
      %v1911 = vsel %vm499, %v1909, %v1910
      %v1912 = vrot.slane %v1803, 1
      %v1913 = vsel %vm499, %v1910, %v1912
      %v1914 = vrot.slane %v1804, 1
      %v1915 = vrot.slane %v1805, 1
      %v1916 = vsel %vm499, %v1914, %v1915
      %v1917 = vrot.slane %v1806, 1
      %v1918 = vsel %vm499, %v1915, %v1917
      %v1919 = vrot.slane %v1807, 1
      %v1920 = vrot.slane %v1808, 1
      %v1921 = vsel %vm499, %v1919, %v1920
      %v1922 = vrot.slane %v1809, 1
      %v1923 = vsel %vm499, %v1920, %v1922
      %v1924 = vrot.slane %v1810, 1
      %v1925 = vrot.slane %v1811, 1
      %v1926 = vsel %vm499, %v1924, %v1925
      %v1927 = vrot.slane %v1812, 1
      %v1928 = vsel %vm499, %v1925, %v1927
      %v1929 = vrot.slane %v1813, 1
      %v1930 = vrot.slane %v1814, 1
      %v1931 = vsel %vm499, %v1929, %v1930
      %v1932 = vrot.slane %v1815, 1
      %v1933 = vsel %vm499, %v1930, %v1932
      %v1934 = vrot.slane %v1816, 1
      %v1935 = vrot.slane %v1817, 1
      %v1936 = vsel %vm499, %v1934, %v1935
      %v1937 = vrot.slane %v1818, 1
      %v1938 = vsel %vm499, %v1935, %v1937
      %v1939 = vrot.slane %v1819, 1
      %v1940 = vrot.slane %v1820, 1
      %v1941 = vsel %vm499, %v1939, %v1940
      %v1942 = vrot.slane %v1821, 1
      %v1943 = vsel %vm499, %v1940, %v1942
      %v1944 = vrot.slane %v1822, 1
      %v1945 = vrot.slane %v1823, 1
      %v1946 = vsel %vm499, %v1944, %v1945
      %v1947 = vrot.slane %v1824, 1
      %v1948 = vsel %vm499, %v1945, %v1947
      %v1949 = vrot.slane %v1825, 1
      %v1950 = vrot.slane %v1826, 1
      %v1951 = vsel %vm499, %v1949, %v1950
      %v1952 = vrot.slane %v1827, 1
      %v1953 = vsel %vm499, %v1950, %v1952
      %v1954 = vrot.slane %v1828, 1
      %v1955 = vrot.slane %v1829, 1
      %v1956 = vsel %vm499, %v1954, %v1955
      %v1957 = vrot.slane %v1830, 1
      %v1958 = vsel %vm499, %v1955, %v1957
      %v1991 = vadd.f32 %v1714, %v1881
      %v1992 = vadd.f32 %v1715, %v1883
      %v1993 = vadd.f32 %v1716, %v1886
      %v1994 = vadd.f32 %v1717, %v1888
      %v1995 = vadd.f32 %v1718, %v1891
      %v1996 = vadd.f32 %v1719, %v1893
      %v1997 = vadd.f32 %v1720, %v1896
      %v1998 = vadd.f32 %v1721, %v1898
      %v1999 = vadd.f32 %v1722, %v1901
      %v2000 = vadd.f32 %v1723, %v1903
      %v2001 = vadd.f32 %v1724, %v1906
      %v2002 = vadd.f32 %v1725, %v1908
      %v2003 = vadd.f32 %v1726, %v1911
      %v2004 = vadd.f32 %v1727, %v1913
      %v2005 = vadd.f32 %v1728, %v1916
      %v2006 = vadd.f32 %v1729, %v1918
      %v2007 = vadd.f32 %v1730, %v1921
      %v2008 = vadd.f32 %v1731, %v1923
      %v2009 = vadd.f32 %v1732, %v1926
      %v2010 = vadd.f32 %v1733, %v1928
      %v2011 = vadd.f32 %v1734, %v1931
      %v2012 = vadd.f32 %v1735, %v1933
      %v2013 = vadd.f32 %v1736, %v1936
      %v2014 = vadd.f32 %v1737, %v1938
      %v2015 = vadd.f32 %v1738, %v1941
      %v2016 = vadd.f32 %v1739, %v1943
      %v2017 = vadd.f32 %v1740, %v1946
      %v2018 = vadd.f32 %v1741, %v1948
      %v2019 = vadd.f32 %v1742, %v1951
      %v2020 = vadd.f32 %v1743, %v1953
      %v2021 = vadd.f32 %v1744, %v1956
      %v2022 = vadd.f32 %v1745, %v1958
      %v2023 = vld [vmem:[%s1611] sm:$0xe]
      %v2024 = vld [vmem:[%s1611 + $0xc] sm:$0xe]
      %v2025 = vld [vmem:[%s1611 + $0x18] sm:$0xe]
      %v2026 = vld [vmem:[%s1611 + $0x24] sm:$0xe]
      %v2027 = vld [vmem:[%s1611 + $0x30] sm:$0xe]
      %v2028 = vld [vmem:[%s1611 + $0x3c] sm:$0xe]
      %v2029 = vld [vmem:[%s1611 + $0x48] sm:$0xe]
      %v2030 = vld [vmem:[%s1611 + $0x54] sm:$0xe]
      %v2031 = vld [vmem:[%s1611 + $0x60] sm:$0xe]
      %v2032 = vld [vmem:[%s1611 + $0x6c] sm:$0xe]
      %v2033 = vld [vmem:[%s1611 + $0x78] sm:$0xe]
      %v2034 = vld [vmem:[%s1611 + $0x84] sm:$0xe]
      %v2035 = vld [vmem:[%s1611 + $0x90] sm:$0xe]
      %v2036 = vld [vmem:[%s1611 + $0x9c] sm:$0xe]
      %v2037 = vld [vmem:[%s1611 + $0xa8] sm:$0xe]
      %v2038 = vld [vmem:[%s1611 + $0xb4] sm:$0xe]
      %v2039 = vunpack.c.l.bf16 %v2023
      %v2040 = vunpack.c.l.bf16 %v2024
      %v2041 = vunpack.c.l.bf16 %v2025
      %v2042 = vunpack.c.l.bf16 %v2026
      %v2043 = vunpack.c.l.bf16 %v2027
      %v2044 = vunpack.c.l.bf16 %v2028
      %v2045 = vunpack.c.l.bf16 %v2029
      %v2046 = vunpack.c.l.bf16 %v2030
      %v2047 = vunpack.c.l.bf16 %v2031
      %v2048 = vunpack.c.l.bf16 %v2032
      %v2049 = vunpack.c.l.bf16 %v2033
      %v2050 = vunpack.c.l.bf16 %v2034
      %v2051 = vunpack.c.l.bf16 %v2035
      %v2052 = vunpack.c.l.bf16 %v2036
      %v2053 = vunpack.c.l.bf16 %v2037
      %v2054 = vunpack.c.l.bf16 %v2038
      %v2055 = vld [vmem:[%s1676 + $0x2] sm:$0x1]
      %v2056 = vlaneseq
      %v2057 = vshrl.u32 %v2056, 7
      %v2058 = vsub.s32 0, %v2057
      %v2059 = vrot.slane %v2055, %v2058
      %v2060 = vmul.f32 %v2039, %v2059
      %v2061 = vmul.f32 %v1645, %v2059
      %v2062 = vmul.f32 %v1762, %v2059
      %v2063 = vmul.f32 %v2040, %v2059
      %v2064 = vmul.f32 %v1647, %v2059
      %v2065 = vmul.f32 %v1763, %v2059
      %v2066 = vmul.f32 %v2041, %v2059
      %v2067 = vmul.f32 %v1649, %v2059
      %v2068 = vmul.f32 %v1764, %v2059
      %v2069 = vmul.f32 %v2042, %v2059
      %v2070 = vmul.f32 %v1651, %v2059
      %v2071 = vmul.f32 %v1765, %v2059
      %v2072 = vmul.f32 %v2043, %v2059
      %v2073 = vmul.f32 %v1653, %v2059
      %v2074 = vmul.f32 %v1766, %v2059
      %v2075 = vmul.f32 %v2044, %v2059
      %v2076 = vmul.f32 %v1655, %v2059
      %v2077 = vmul.f32 %v1767, %v2059
      %v2078 = vmul.f32 %v2045, %v2059
      %v2079 = vmul.f32 %v1657, %v2059
      %v2080 = vmul.f32 %v1768, %v2059
      %v2081 = vmul.f32 %v2046, %v2059
      %v2082 = vmul.f32 %v1659, %v2059
      %v2083 = vmul.f32 %v1769, %v2059
      %v2084 = vmul.f32 %v2047, %v2059
      %v2085 = vmul.f32 %v1661, %v2059
      %v2086 = vmul.f32 %v1770, %v2059
      %v2087 = vmul.f32 %v2048, %v2059
      %v2088 = vmul.f32 %v1663, %v2059
      %v2089 = vmul.f32 %v1771, %v2059
      %v2090 = vmul.f32 %v2049, %v2059
      %v2091 = vmul.f32 %v1665, %v2059
      %v2092 = vmul.f32 %v1772, %v2059
      %v2093 = vmul.f32 %v2050, %v2059
      %v2094 = vmul.f32 %v1667, %v2059
      %v2095 = vmul.f32 %v1773, %v2059
      %v2096 = vmul.f32 %v2051, %v2059
      %v2097 = vmul.f32 %v1669, %v2059
      %v2098 = vmul.f32 %v1774, %v2059
      %v2099 = vmul.f32 %v2052, %v2059
      %v2100 = vmul.f32 %v1671, %v2059
      %v2101 = vmul.f32 %v1775, %v2059
      %v2102 = vmul.f32 %v2053, %v2059
      %v2103 = vmul.f32 %v1673, %v2059
      %v2104 = vmul.f32 %v1776, %v2059
      %v2105 = vmul.f32 %v2054, %v2059
      %v2106 = vmul.f32 %v1675, %v2059
      %v2107 = vmul.f32 %v1777, %v2059
      %v2156 = vrot.slane %v2060, 2
      %v2157 = vrot.slane %v2061, 2
      %v2158 = vsel %vm777, %v2156, %v2157
      %v2159 = vrot.slane %v2062, 2
      %v2160 = vsel %vm777, %v2157, %v2159
      %v2161 = vrot.slane %v2063, 2
      %v2162 = vrot.slane %v2064, 2
      %v2163 = vsel %vm777, %v2161, %v2162
      %v2164 = vrot.slane %v2065, 2
      %v2165 = vsel %vm777, %v2162, %v2164
      %v2166 = vrot.slane %v2066, 2
      %v2167 = vrot.slane %v2067, 2
      %v2168 = vsel %vm777, %v2166, %v2167
      %v2169 = vrot.slane %v2068, 2
      %v2170 = vsel %vm777, %v2167, %v2169
      %v2171 = vrot.slane %v2069, 2
      %v2172 = vrot.slane %v2070, 2
      %v2173 = vsel %vm777, %v2171, %v2172
      %v2174 = vrot.slane %v2071, 2
      %v2175 = vsel %vm777, %v2172, %v2174
      %v2176 = vrot.slane %v2072, 2
      %v2177 = vrot.slane %v2073, 2
      %v2178 = vsel %vm777, %v2176, %v2177
      %v2179 = vrot.slane %v2074, 2
      %v2180 = vsel %vm777, %v2177, %v2179
      %v2181 = vrot.slane %v2075, 2
      %v2182 = vrot.slane %v2076, 2
      %v2183 = vsel %vm777, %v2181, %v2182
      %v2184 = vrot.slane %v2077, 2
      %v2185 = vsel %vm777, %v2182, %v2184
      %v2186 = vrot.slane %v2078, 2
      %v2187 = vrot.slane %v2079, 2
      %v2188 = vsel %vm777, %v2186, %v2187
      %v2189 = vrot.slane %v2080, 2
      %v2190 = vsel %vm777, %v2187, %v2189
      %v2191 = vrot.slane %v2081, 2
      %v2192 = vrot.slane %v2082, 2
      %v2193 = vsel %vm777, %v2191, %v2192
      %v2194 = vrot.slane %v2083, 2
      %v2195 = vsel %vm777, %v2192, %v2194
      %v2196 = vrot.slane %v2084, 2
      %v2197 = vrot.slane %v2085, 2
      %v2198 = vsel %vm777, %v2196, %v2197
      %v2199 = vrot.slane %v2086, 2
      %v2200 = vsel %vm777, %v2197, %v2199
      %v2201 = vrot.slane %v2087, 2
      %v2202 = vrot.slane %v2088, 2
      %v2203 = vsel %vm777, %v2201, %v2202
      %v2204 = vrot.slane %v2089, 2
      %v2205 = vsel %vm777, %v2202, %v2204
      %v2206 = vrot.slane %v2090, 2
      %v2207 = vrot.slane %v2091, 2
      %v2208 = vsel %vm777, %v2206, %v2207
      %v2209 = vrot.slane %v2092, 2
      %v2210 = vsel %vm777, %v2207, %v2209
      %v2211 = vrot.slane %v2093, 2
      %v2212 = vrot.slane %v2094, 2
      %v2213 = vsel %vm777, %v2211, %v2212
      %v2214 = vrot.slane %v2095, 2
      %v2215 = vsel %vm777, %v2212, %v2214
      %v2216 = vrot.slane %v2096, 2
      %v2217 = vrot.slane %v2097, 2
      %v2218 = vsel %vm777, %v2216, %v2217
      %v2219 = vrot.slane %v2098, 2
      %v2220 = vsel %vm777, %v2217, %v2219
      %v2221 = vrot.slane %v2099, 2
      %v2222 = vrot.slane %v2100, 2
      %v2223 = vsel %vm777, %v2221, %v2222
      %v2224 = vrot.slane %v2101, 2
      %v2225 = vsel %vm777, %v2222, %v2224
      %v2226 = vrot.slane %v2102, 2
      %v2227 = vrot.slane %v2103, 2
      %v2228 = vsel %vm777, %v2226, %v2227
      %v2229 = vrot.slane %v2104, 2
      %v2230 = vsel %vm777, %v2227, %v2229
      %v2231 = vrot.slane %v2105, 2
      %v2232 = vrot.slane %v2106, 2
      %v2233 = vsel %vm777, %v2231, %v2232
      %v2234 = vrot.slane %v2107, 2
      %v2235 = vsel %vm777, %v2232, %v2234
      %v2268 = vadd.f32 %v1991, %v2158
      %v2269 = vadd.f32 %v1992, %v2160
      %v2270 = vadd.f32 %v1993, %v2163
      %v2271 = vadd.f32 %v1994, %v2165
      %v2272 = vadd.f32 %v1995, %v2168
      %v2273 = vadd.f32 %v1996, %v2170
      %v2274 = vadd.f32 %v1997, %v2173
      %v2275 = vadd.f32 %v1998, %v2175
      %v2276 = vadd.f32 %v1999, %v2178
      %v2277 = vadd.f32 %v2000, %v2180
      %v2278 = vadd.f32 %v2001, %v2183
      %v2279 = vadd.f32 %v2002, %v2185
      %v2280 = vadd.f32 %v2003, %v2188
      %v2281 = vadd.f32 %v2004, %v2190
      %v2282 = vadd.f32 %v2005, %v2193
      %v2283 = vadd.f32 %v2006, %v2195
      %v2284 = vadd.f32 %v2007, %v2198
      %v2285 = vadd.f32 %v2008, %v2200
      %v2286 = vadd.f32 %v2009, %v2203
      %v2287 = vadd.f32 %v2010, %v2205
      %v2288 = vadd.f32 %v2011, %v2208
      %v2289 = vadd.f32 %v2012, %v2210
      %v2290 = vadd.f32 %v2013, %v2213
      %v2291 = vadd.f32 %v2014, %v2215
      %v2292 = vadd.f32 %v2015, %v2218
      %v2293 = vadd.f32 %v2016, %v2220
      %v2294 = vadd.f32 %v2017, %v2223
      %v2295 = vadd.f32 %v2018, %v2225
      %v2296 = vadd.f32 %v2019, %v2228
      %v2297 = vadd.f32 %v2020, %v2230
      %v2298 = vadd.f32 %v2021, %v2233
      %v2299 = vadd.f32 %v2022, %v2235
      %v2300 = vld [vmem:[%s224] sm:$0x1]
      %v2302 = vlaneseq
      %v2303 = vshrl.u32 %v2302, 7
      %v2304 = vsub.s32 0, %v2303
      %v2305 = vrot.slane %v2300, %v2304
      %v2307 = vadd.f32 %v2268, %v2305
      %v2308 = vadd.f32 %v2269, %v2305
      %v2309 = vadd.f32 %v2270, %v2305
      %v2310 = vadd.f32 %v2271, %v2305
      %v2311 = vadd.f32 %v2272, %v2305
      %v2312 = vadd.f32 %v2273, %v2305
      %v2313 = vadd.f32 %v2274, %v2305
      %v2314 = vadd.f32 %v2275, %v2305
      %v2315 = vadd.f32 %v2276, %v2305
      %v2316 = vadd.f32 %v2277, %v2305
      %v2317 = vadd.f32 %v2278, %v2305
      %v2318 = vadd.f32 %v2279, %v2305
      %v2319 = vadd.f32 %v2280, %v2305
      %v2320 = vadd.f32 %v2281, %v2305
      %v2321 = vadd.f32 %v2282, %v2305
      %v2322 = vadd.f32 %v2283, %v2305
      %v2323 = vadd.f32 %v2284, %v2305
      %v2324 = vadd.f32 %v2285, %v2305
      %v2325 = vadd.f32 %v2286, %v2305
      %v2326 = vadd.f32 %v2287, %v2305
      %v2327 = vadd.f32 %v2288, %v2305
      %v2328 = vadd.f32 %v2289, %v2305
      %v2329 = vadd.f32 %v2290, %v2305
      %v2330 = vadd.f32 %v2291, %v2305
      %v2331 = vadd.f32 %v2292, %v2305
      %v2332 = vadd.f32 %v2293, %v2305
      %v2333 = vadd.f32 %v2294, %v2305
      %v2334 = vadd.f32 %v2295, %v2305
      %v2335 = vadd.f32 %v2296, %v2305
      %v2336 = vadd.f32 %v2297, %v2305
      %v2337 = vadd.f32 %v2298, %v2305
      %v2338 = vadd.f32 %v2299, %v2305
      %v2339 = vmax.f32 %v2307, 0.0
      %v2340 = vmax.f32 %v2308, 0.0
      %v2341 = vmax.f32 %v2309, 0.0
      %v2342 = vmax.f32 %v2310, 0.0
      %v2343 = vmax.f32 %v2311, 0.0
      %v2344 = vmax.f32 %v2312, 0.0
      %v2345 = vmax.f32 %v2313, 0.0
      %v2346 = vmax.f32 %v2314, 0.0
      %v2347 = vmax.f32 %v2315, 0.0
      %v2348 = vmax.f32 %v2316, 0.0
      %v2349 = vmax.f32 %v2317, 0.0
      %v2350 = vmax.f32 %v2318, 0.0
      %v2351 = vmax.f32 %v2319, 0.0
      %v2352 = vmax.f32 %v2320, 0.0
      %v2353 = vmax.f32 %v2321, 0.0
      %v2354 = vmax.f32 %v2322, 0.0
      %v2355 = vmax.f32 %v2323, 0.0
      %v2356 = vmax.f32 %v2324, 0.0
      %v2357 = vmax.f32 %v2325, 0.0
      %v2358 = vmax.f32 %v2326, 0.0
      %v2359 = vmax.f32 %v2327, 0.0
      %v2360 = vmax.f32 %v2328, 0.0
      %v2361 = vmax.f32 %v2329, 0.0
      %v2362 = vmax.f32 %v2330, 0.0
      %v2363 = vmax.f32 %v2331, 0.0
      %v2364 = vmax.f32 %v2332, 0.0
      %v2365 = vmax.f32 %v2333, 0.0
      %v2366 = vmax.f32 %v2334, 0.0
      %v2367 = vmax.f32 %v2335, 0.0
      %v2368 = vmax.f32 %v2336, 0.0
      %v2369 = vmax.f32 %v2337, 0.0
      %v2370 = vmax.f32 %v2338, 0.0
      %v2371 = vmin.f32 %v2339, 6.0
      %v2372 = vmin.f32 %v2340, 6.0
      %v2373 = vmin.f32 %v2341, 6.0
      %v2374 = vmin.f32 %v2342, 6.0
      %v2375 = vmin.f32 %v2343, 6.0
      %v2376 = vmin.f32 %v2344, 6.0
      %v2377 = vmin.f32 %v2345, 6.0
      %v2378 = vmin.f32 %v2346, 6.0
      %v2379 = vmin.f32 %v2347, 6.0
      %v2380 = vmin.f32 %v2348, 6.0
      %v2381 = vmin.f32 %v2349, 6.0
      %v2382 = vmin.f32 %v2350, 6.0
      %v2383 = vmin.f32 %v2351, 6.0
      %v2384 = vmin.f32 %v2352, 6.0
      %v2385 = vmin.f32 %v2353, 6.0
      %v2386 = vmin.f32 %v2354, 6.0
      %v2387 = vmin.f32 %v2355, 6.0
      %v2388 = vmin.f32 %v2356, 6.0
      %v2389 = vmin.f32 %v2357, 6.0
      %v2390 = vmin.f32 %v2358, 6.0
      %v2391 = vmin.f32 %v2359, 6.0
      %v2392 = vmin.f32 %v2360, 6.0
      %v2393 = vmin.f32 %v2361, 6.0
      %v2394 = vmin.f32 %v2362, 6.0
      %v2395 = vmin.f32 %v2363, 6.0
      %v2396 = vmin.f32 %v2364, 6.0
      %v2397 = vmin.f32 %v2365, 6.0
      %v2398 = vmin.f32 %v2366, 6.0
      %v2399 = vmin.f32 %v2367, 6.0
      %v2400 = vmin.f32 %v2368, 6.0
      %v2401 = vmin.f32 %v2369, 6.0
      %v2402 = vmin.f32 %v2370, 6.0
      %v2403 = vpack.c.bf16 %v2372, %v2371
      %v2404 = vpack.c.bf16 %v2374, %v2373
      %v2405 = vpack.c.bf16 %v2376, %v2375
      %v2406 = vpack.c.bf16 %v2378, %v2377
      %v2407 = vpack.c.bf16 %v2380, %v2379
      %v2408 = vpack.c.bf16 %v2382, %v2381
      %v2409 = vpack.c.bf16 %v2384, %v2383
      %v2410 = vpack.c.bf16 %v2386, %v2385
      %v2411 = vpack.c.bf16 %v2388, %v2387
      %v2412 = vpack.c.bf16 %v2390, %v2389
      %v2413 = vpack.c.bf16 %v2392, %v2391
      %v2414 = vpack.c.bf16 %v2394, %v2393
      %v2415 = vpack.c.bf16 %v2396, %v2395
      %v2416 = vpack.c.bf16 %v2398, %v2397
      %v2417 = vpack.c.bf16 %v2400, %v2399
      %v2418 = vpack.c.bf16 %v2402, %v2401
      %v2435 = vunpack.c.l.b16 %v2403
      %v2436 = vunpack.c.h.b16 %v2403
      %v2437 = vunpack.c.l.b16 %v2404
      %v2438 = vunpack.c.h.b16 %v2404
      %v2439 = vunpack.c.l.b16 %v2405
      %v2440 = vunpack.c.h.b16 %v2405
      %v2441 = vunpack.c.l.b16 %v2406
      %v2442 = vunpack.c.h.b16 %v2406
      %v2443 = vunpack.c.l.b16 %v2407
      %v2444 = vunpack.c.h.b16 %v2407
      %v2445 = vunpack.c.l.b16 %v2408
      %v2446 = vunpack.c.h.b16 %v2408
      %v2447 = vunpack.c.l.b16 %v2409
      %v2448 = vunpack.c.h.b16 %v2409
      %v2449 = vunpack.c.l.b16 %v2410
      %v2450 = vunpack.c.h.b16 %v2410
      %v2451 = vunpack.c.l.b16 %v2411
      %v2452 = vunpack.c.h.b16 %v2411
      %v2453 = vunpack.c.l.b16 %v2412
      %v2454 = vunpack.c.h.b16 %v2412
      %v2455 = vunpack.c.l.b16 %v2413
      %v2456 = vunpack.c.h.b16 %v2413
      %v2457 = vunpack.c.l.b16 %v2414
      %v2458 = vunpack.c.h.b16 %v2414
      %v2459 = vunpack.c.l.b16 %v2415
      %v2460 = vunpack.c.h.b16 %v2415
      %v2461 = vunpack.c.l.b16 %v2416
      %v2462 = vunpack.c.h.b16 %v2416
      %v2463 = vunpack.c.l.b16 %v2417
      %v2464 = vunpack.c.h.b16 %v2417
      %v2465 = vunpack.c.l.b16 %v2418
      %v2466 = vunpack.c.h.b16 %v2418
      %v2467 = vpack.c.b16 %v2435, %v2435
      %v2468 = vpack.c.b16 %v2436, %v2436
      %v2469 = vpack.c.b16 %v2437, %v2437
      %v2470 = vpack.c.b16 %v2438, %v2438
      %v2471 = vpack.c.b16 %v2439, %v2439
      %v2472 = vpack.c.b16 %v2440, %v2440
      %v2473 = vpack.c.b16 %v2441, %v2441
      %v2474 = vpack.c.b16 %v2442, %v2442
      %v2475 = vpack.c.b16 %v2443, %v2443
      %v2476 = vpack.c.b16 %v2444, %v2444
      %v2477 = vpack.c.b16 %v2445, %v2445
      %v2478 = vpack.c.b16 %v2446, %v2446
      %v2479 = vpack.c.b16 %v2447, %v2447
      %v2480 = vpack.c.b16 %v2448, %v2448
      %v2481 = vpack.c.b16 %v2449, %v2449
      %v2482 = vpack.c.b16 %v2450, %v2450
      %v2483 = vpack.c.b16 %v2451, %v2451
      %v2484 = vpack.c.b16 %v2452, %v2452
      %v2485 = vpack.c.b16 %v2453, %v2453
      %v2486 = vpack.c.b16 %v2454, %v2454
      %v2487 = vpack.c.b16 %v2455, %v2455
      %v2488 = vpack.c.b16 %v2456, %v2456
      %v2489 = vpack.c.b16 %v2457, %v2457
      %v2490 = vpack.c.b16 %v2458, %v2458
      %v2491 = vpack.c.b16 %v2459, %v2459
      %v2492 = vpack.c.b16 %v2460, %v2460
      %v2493 = vpack.c.b16 %v2461, %v2461
      %v2494 = vpack.c.b16 %v2462, %v2462
      %v2495 = vpack.c.b16 %v2463, %v2463
      %v2496 = vpack.c.b16 %v2464, %v2464
      %v2497 = vpack.c.b16 %v2465, %v2465
      %v2498 = vpack.c.b16 %v2466, %v2466
      %vm2531 = vcmask 781312
      %2532 = vst.msk [vmem:[%s232] sm:$0xf] %vm2531, %v2467
      %2533 = vst.msk [vmem:[%s232 + $0x4] sm:$0xf] %vm2531, %v2468
      %2534 = vst.msk [vmem:[%s232 + $0x8] sm:$0xf] %vm2531, %v2469
      %2535 = vst.msk [vmem:[%s232 + $0xc] sm:$0xf] %vm2531, %v2470
      %2536 = vst.msk [vmem:[%s232 + $0x10] sm:$0xf] %vm2531, %v2471
      %2537 = vst.msk [vmem:[%s232 + $0x14] sm:$0xf] %vm2531, %v2472
      %2538 = vst.msk [vmem:[%s232 + $0x18] sm:$0xf] %vm2531, %v2473
      %2539 = vst.msk [vmem:[%s232 + $0x1c] sm:$0xf] %vm2531, %v2474
      %2540 = vst.msk [vmem:[%s232 + $0x20] sm:$0xf] %vm2531, %v2475
      %2541 = vst.msk [vmem:[%s232 + $0x24] sm:$0xf] %vm2531, %v2476
      %2542 = vst.msk [vmem:[%s232 + $0x28] sm:$0xf] %vm2531, %v2477
      %2543 = vst.msk [vmem:[%s232 + $0x2c] sm:$0xf] %vm2531, %v2478
      %2544 = vst.msk [vmem:[%s232 + $0x30] sm:$0xf] %vm2531, %v2479
      %2545 = vst.msk [vmem:[%s232 + $0x34] sm:$0xf] %vm2531, %v2480
      %2546 = vst.msk [vmem:[%s232 + $0x38] sm:$0xf] %vm2531, %v2481
      %2547 = vst.msk [vmem:[%s232 + $0x3c] sm:$0xf] %vm2531, %v2482
      %2548 = vst.msk [vmem:[%s232 + $0x40] sm:$0xf] %vm2531, %v2483
      %2549 = vst.msk [vmem:[%s232 + $0x44] sm:$0xf] %vm2531, %v2484
      %2550 = vst.msk [vmem:[%s232 + $0x48] sm:$0xf] %vm2531, %v2485
      %2551 = vst.msk [vmem:[%s232 + $0x4c] sm:$0xf] %vm2531, %v2486
      %2552 = vst.msk [vmem:[%s232 + $0x50] sm:$0xf] %vm2531, %v2487
      %2553 = vst.msk [vmem:[%s232 + $0x54] sm:$0xf] %vm2531, %v2488
      %2554 = vst.msk [vmem:[%s232 + $0x58] sm:$0xf] %vm2531, %v2489
      %2555 = vst.msk [vmem:[%s232 + $0x5c] sm:$0xf] %vm2531, %v2490
      %2556 = vst.msk [vmem:[%s232 + $0x60] sm:$0xf] %vm2531, %v2491
      %2557 = vst.msk [vmem:[%s232 + $0x64] sm:$0xf] %vm2531, %v2492
      %2558 = vst.msk [vmem:[%s232 + $0x68] sm:$0xf] %vm2531, %v2493
      %2559 = vst.msk [vmem:[%s232 + $0x6c] sm:$0xf] %vm2531, %v2494
      %2560 = vst.msk [vmem:[%s232 + $0x70] sm:$0xf] %vm2531, %v2495
      %2561 = vst.msk [vmem:[%s232 + $0x74] sm:$0xf] %vm2531, %v2496
      %2562 = vst.msk [vmem:[%s232 + $0x78] sm:$0xf] %vm2531, %v2497
      %2563 = vst.msk [vmem:[%s232 + $0x7c] sm:$0xf] %vm2531, %v2498
      %p2564 = scmp.lt.s32.totalorder %s18, 1
      %s2565 = scalar_select %p2564, %s18, 1
      %p2566 = scmp.lt.s32.totalorder %s19, 0
      %s2567 = scalar_select %p2566, %s19, 0
      %s2568 = smul.addr %s2565, 32
      %s2569 = sadd.s32 %s2567, %s2568
      %s2570 = smul.addr %s2569, 4
      %s2571 = scalar_lea.vmem %s3, %s2570
      // Predicated region
      $region33: #{block_forward.4} parent=31 // pred_check
        %p2572 = pneg %p126
      $region34: #{block_forward.4} parent=31 // pred_check_branch
        %2574 = sbr.rel (%p2572) target = $region36
      $region35: #{block_forward.4} parent=31 // pred_region
        _
      $region36: #{block_forward.4} parent=31 // pred_fallthru
        _
    $region32: #{block_forward.4} parent=5 // pred_fallthru
      _
    %p2575 = scmp.le.s32.totalorder 2, %s9
    // Predicated region
    $region37: #{block_forward.4} parent=5 // pred_check
      %p2576 = pneg %p2575
    $region38: #{block_forward.4} parent=5 // pred_check_branch
      %2578 = sbr.rel (%p2576) target = $region40
    $region39: #{block_forward.4} parent=5 // pred_region
      %s2579 = ssub.s32 %s9, 2
      // Predicated region
      $region41: #{block_forward.4} parent=39 // pred_check
        %p2580 = pneg %p132
      $region42: #{block_forward.4} parent=39 // pred_check_branch
        %2582 = sbr.rel (%p2580) target = $region44
      $region43: #{block_forward.4} parent=39 // pred_region
        %p2583 = scmp.lt.s32.totalorder %s20, 1
        %s2584 = scalar_select %p2583, %s20, 1
        %p2585 = scmp.lt.s32.totalorder %s21, 0
        %s2586 = scalar_select %p2585, %s21, 0
        %s2587 = smul.addr %s2584, 32
        %s2588 = sadd.s32 %s2586, %s2587
        %s2589 = smul.addr %s2588, 4
        %s2590 = scalar_lea.vmem %s3, %s2589
      $region44: #{block_forward.4} parent=39 // pred_fallthru
        _
    $region40: #{block_forward.4} parent=5 // pred_fallthru
      _
  $region6: #{block_forward.4} parent=0 // loop_footer
    %s13 = sadd.s32 1, %s9
  $region7: #{block_forward.4} parent=0 // loop_footer_branch
    %8 = sbr.rel target = $region3
  $region8: #{block_forward.4} parent=0 // loop_exit
    _

</llo_original>
